<compile_context>
chip_gen: v7x
topology: tpu7x:2x2x1
jax: 0.10.0
libtpu: 0.0.40
codegen_flags: <defaults>
</compile_context>

<pallas_src>
import functools

import jax
import jax.numpy as jnp
import numpy as np
from jax.experimental import pallas as pl
from jax.experimental.pallas import tpu as pltpu

HIDDEN = 512
LANE = 128
EPS_GUMBEL = 1e-20
EPS_VAR = 1e-10
NEG_INF = -1e30


def _round_up(n, m):
    return ((n + m - 1) // m) * m


def _softmax(x):
    m = jnp.max(x, axis=-1, keepdims=True)
    e = jnp.exp(x - m)
    s = jnp.sum(e, axis=-1, keepdims=True)
    return e * pl.reciprocal(s, approx=True)


def _softplus(x):
    # numerically stable softplus
    return jnp.maximum(x, 0.0) + jnp.log(1.0 + jnp.exp(-jnp.abs(x)))


def inference_net_kernel(
    # inputs
    x_ref,
    w13_ref, b13_ref,          # fused [x_dim, 1024] / [1, 1024]
    w2_ref, b2_ref,
    wy_ref, by_ref,            # by padded lanes hold -1e30 (softmax mask)
    w3y_ref,
    w4_ref, b4_ref,
    wmv_ref, bmv_ref,          # fused mu|var projection [512, 2*zpad]
    u_ref, nrm_ref,
    # outputs (two lane-dense bf16 slabs)
    yslab_ref,                 # [tb, 3*ypad] = logits | prob | y
    zslab_ref,                 # [tb, 3*zpad] = mu | var | z
    *, inv_temp,
):
    ypad = yslab_ref.shape[1] // 3
    zpad = zslab_ref.shape[1] // 3

    xb = x_ref[...]  # bf16 [tb, x_dim]

    # ---- fused first layer: x pushed through the MXU once ----
    h_both = jnp.dot(xb, w13_ref[...], preferred_element_type=jnp.float32) + b13_ref[...]
    h = jnp.maximum(h_both[:, :HIDDEN], 0.0).astype(jnp.bfloat16)   # q(y|x) branch
    x3 = h_both[:, HIDDEN:]                                         # x + b3 part of q(z|x,y)

    # ---- q(y|x) branch ----
    h = jnp.dot(h, w2_ref[...], preferred_element_type=jnp.float32) + b2_ref[...]
    h = jnp.maximum(h, 0.0).astype(jnp.bfloat16)

    # by's padded lanes are -1e30 (wy padded columns are zero) -> padded logits
    # are already masked for both softmaxes.
    logits = jnp.dot(h, wy_ref[...], preferred_element_type=jnp.float32) + by_ref[...]
    prob = _softmax(logits)

    # Gumbel-softmax sample (soft, hard=0)
    u = u_ref[...]
    gumbel = -jnp.log(-jnp.log(u + EPS_GUMBEL) + EPS_GUMBEL)
    scaled = logits + gumbel
    if inv_temp is not None:          # statically skipped when temperature == 1
        scaled = scaled * inv_temp
    y = _softmax(scaled)

    # ---- q(z|x,y) branch: concat(x, y) folded into two matmuls ----
    yb = y.astype(jnp.bfloat16)
    h2 = x3 + jnp.dot(yb, w3y_ref[...], preferred_element_type=jnp.float32)
    h2 = jnp.maximum(h2, 0.0).astype(jnp.bfloat16)
    h2 = jnp.dot(h2, w4_ref[...], preferred_element_type=jnp.float32) + b4_ref[...]
    h2 = jnp.maximum(h2, 0.0).astype(jnp.bfloat16)

    # Fused mu/var projection: lanes [0, zpad) -> mu, [zpad, 2*zpad) -> pre-softplus var
    fused = jnp.dot(h2, wmv_ref[...], preferred_element_type=jnp.float32) + bmv_ref[...]
    mu = fused[:, :zpad]
    var = _softplus(fused[:, zpad:])
    z = mu + nrm_ref[...] * jnp.sqrt(var + EPS_VAR)

    # ---- packed lane-dense stores (static 128-aligned column offsets) ----
    yslab_ref[:, 0:ypad] = logits.astype(yslab_ref.dtype)
    yslab_ref[:, ypad:2 * ypad] = prob.astype(yslab_ref.dtype)
    yslab_ref[:, 2 * ypad:3 * ypad] = y.astype(yslab_ref.dtype)
    zslab_ref[:, 0:zpad] = mu.astype(zslab_ref.dtype)
    zslab_ref[:, zpad:2 * zpad] = var.astype(zslab_ref.dtype)
    zslab_ref[:, 2 * zpad:3 * zpad] = z.astype(zslab_ref.dtype)


def prepare_params(p):
    """Pad / fuse / bf16-cast an f32 parameter dict for the kernel."""
    x_dim = p["w1"].shape[0]
    y_dim = p["wy"].shape[1]
    z_dim = p["wmu"].shape[1]
    ypad = _round_up(y_dim, LANE)
    zpad = _round_up(z_dim, LANE)
    bf = jnp.bfloat16

    # Fused x-layer: [x_dim, 512 | 512] and biases [b1 | b3]
    w13 = jnp.concatenate([p["w1"], p["w3x"]], axis=1).astype(bf)
    b13 = jnp.concatenate([p["b1"], p["b3"]], axis=1)

    wy = jnp.zeros((HIDDEN, ypad), jnp.float32).at[:, :y_dim].set(p["wy"]).astype(bf)
    # Bake the padded-lane softmax mask into the bias (wy padded cols are zero).
    by = jnp.full((1, ypad), NEG_INF, jnp.float32).at[:, :y_dim].set(p["by"])
    w3y = jnp.zeros((ypad, HIDDEN), jnp.float32).at[:y_dim, :].set(p["w3y"]).astype(bf)

    wmv = (
        jnp.zeros((HIDDEN, 2 * zpad), jnp.float32)
        .at[:, :z_dim].set(p["wmu"])
        .at[:, zpad:zpad + z_dim].set(p["wvar"])
        .astype(bf)
    )
    bmv = (
        jnp.zeros((1, 2 * zpad), jnp.float32)
        .at[:, :z_dim].set(p["bmu"])
        .at[:, zpad:zpad + z_dim].set(p["bvar"])
    )
    packed = {
        "w13": w13, "b13": b13,
        "w2": p["w2"].astype(bf), "b2": p["b2"],
        "wy": wy, "by": by,
        "w3y": w3y,
        "w4": p["w4"].astype(bf), "b4": p["b4"],
        "wmv": wmv, "bmv": bmv,
    }
    dims = dict(x_dim=x_dim, y_dim=y_dim, z_dim=z_dim, ypad=ypad, zpad=zpad)
    return packed, dims


def _choose_tiling(B):
    """Pick (tile_b, padded_B).  Target tb=256; otherwise split the batch into
    two tiles (>=2 grid steps keeps both v7x TensorCores busy).  Padded rows
    are sliced off by the wrapper."""
    tb = 256
    if B < 2 * tb:
        tb = max(8, _round_up((B + 1) // 2, 8))
    b_pad = _round_up(B, tb)
    return tb, b_pad


def inference_net_forward(x, params, u_noise, normal_noise, temperature=1.0):
    pp, dims = prepare_params(params)
    B = x.shape[0]
    x_dim, y_dim, z_dim = dims["x_dim"], dims["y_dim"], dims["z_dim"]
    ypad, zpad = dims["ypad"], dims["zpad"]

    tb, b_pad = _choose_tiling(B)
    grid = (b_pad // tb,)

    # Batch-pad inputs (zero x rows / benign noise rows); outputs sliced to B below.
    xb = jnp.zeros((b_pad, x_dim), jnp.bfloat16).at[:B].set(x.astype(jnp.bfloat16))
    u_pad = jnp.full((b_pad, ypad), 0.5, jnp.float32).at[:B, :y_dim].set(u_noise)
    nrm_pad = jnp.zeros((b_pad, zpad), jnp.float32).at[:B, :z_dim].set(normal_noise)

    def full_spec(shape):
        return pl.BlockSpec(shape, lambda i: (0,) * len(shape))

    def batch_spec(feat):
        return pl.BlockSpec((tb, feat), lambda i: (i, 0))

    in_specs = [
        batch_spec(x_dim),
        full_spec((x_dim, 2 * HIDDEN)), full_spec((1, 2 * HIDDEN)),
        full_spec((HIDDEN, HIDDEN)), full_spec((1, HIDDEN)),
        full_spec((HIDDEN, ypad)), full_spec((1, ypad)),
        full_spec((ypad, HIDDEN)),
        full_spec((HIDDEN, HIDDEN)), full_spec((1, HIDDEN)),
        full_spec((HIDDEN, 2 * zpad)), full_spec((1, 2 * zpad)),
        batch_spec(ypad), batch_spec(zpad),
    ]
    out_specs = [batch_spec(3 * ypad), batch_spec(3 * zpad)]
    out_shapes = (
        jax.ShapeDtypeStruct((b_pad, 3 * ypad), jnp.bfloat16),   # logits | prob | y
        jax.ShapeDtypeStruct((b_pad, 3 * zpad), jnp.bfloat16),   # mu | var | z
    )

    inv_temp = None if float(temperature) == 1.0 else float(1.0 / temperature)
    kernel = functools.partial(inference_net_kernel, inv_temp=inv_temp)

    yslab, zslab = pl.pallas_call(
        kernel,
        out_shape=out_shapes,
        grid=grid,
        in_specs=in_specs,
        out_specs=out_specs,
        compiler_params=pltpu.CompilerParams(
            dimension_semantics=("parallel",),
        ),
    )(
        xb,
        pp["w13"], pp["b13"],
        pp["w2"], pp["b2"],
        pp["wy"], pp["by"],
        pp["w3y"],
        pp["w4"], pp["b4"],
        pp["wmv"], pp["bmv"],
        u_pad, nrm_pad,
    )

    def f32(a):
        return a.astype(jnp.float32)

    return {
        "mean": f32(zslab[:B, 0:z_dim]),
        "var": f32(zslab[:B, zpad:zpad + z_dim]),
        "gaussian": f32(zslab[:B, 2 * zpad:2 * zpad + z_dim]),
        "logits": f32(yslab[:B, 0:y_dim]),
        "prob_cat": f32(yslab[:B, ypad:ypad + y_dim]),
        "categorical": f32(yslab[:B, 2 * ypad:2 * ypad + y_dim]),
    }


def make_params(key, x_dim, z_dim, y_dim):
    ks = jax.random.split(key, 16)
    scale = 0.05

    def lin(kw, kb, fan_in, fan_out):
        w = scale * jax.random.normal(kw, (fan_in, fan_out), jnp.float32)
        b = scale * jax.random.normal(kb, (1, fan_out), jnp.float32)
        return w, b

    w1, b1 = lin(ks[0], ks[1], x_dim, HIDDEN)
    w2, b2 = lin(ks[2], ks[3], HIDDEN, HIDDEN)
    wy, by = lin(ks[4], ks[5], HIDDEN, y_dim)
    # Linear(x_dim + y_dim, 512) split into x-part and y-part
    w3, b3 = lin(ks[6], ks[7], x_dim + y_dim, HIDDEN)
    w3x, w3y = w3[:x_dim], w3[x_dim:]
    w4, b4 = lin(ks[8], ks[9], HIDDEN, HIDDEN)
    wmu, bmu = lin(ks[10], ks[11], HIDDEN, z_dim)
    wvar, bvar = lin(ks[12], ks[13], HIDDEN, z_dim)
    return dict(
        w1=w1, b1=b1, w2=w2, b2=b2, wy=wy, by=by,
        w3x=w3x, w3y=w3y, b3=b3, w4=w4, b4=b4,
        wmu=wmu, bmu=bmu, wvar=wvar, bvar=bvar,
    )


def reference_forward(x, p, u, nrm, temperature=1.0):
    """Pure-JAX reference in f32.  Weights and x are round-tripped through
    bfloat16 (the kernel's chosen quantization); the math itself follows the
    PyTorch module exactly (hard=0 path)."""
    def q(a):
        return a.astype(jnp.bfloat16).astype(jnp.float32)

    xq = q(x)
    h = jax.nn.relu(xq @ q(p["w1"]) + p["b1"])
    h = jax.nn.relu(h @ q(p["w2"]) + p["b2"])
    logits = h @ q(p["wy"]) + p["by"]
    prob = jax.nn.softmax(logits, axis=-1)
    g = -jnp.log(-jnp.log(u + EPS_GUMBEL) + EPS_GUMBEL)
    y = jax.nn.softmax((logits + g) / temperature, axis=-1)
    h2 = jax.nn.relu(xq @ q(p["w3x"]) + y @ q(p["w3y"]) + p["b3"])
    h2 = jax.nn.relu(h2 @ q(p["w4"]) + p["b4"])
    mu = h2 @ q(p["wmu"]) + p["bmu"]
    var = jax.nn.softplus(h2 @ q(p["wvar"]) + p["bvar"])
    z = mu + nrm * jnp.sqrt(var + EPS_VAR)
    return {"mean": mu, "var": var, "gaussian": z,
            "logits": logits, "prob_cat": prob, "categorical": y}


if __name__ == "__main__":
    # small shapes consistent with the module (hidden=512 is fixed by the module);
    # B=10 exercises the batch-padding / multi-step-grid path.
    B, X_DIM, Z_DIM, Y_DIM = 10, 64, 32, 10

    key = jax.random.PRNGKey(0)
    k_x, k_p, k_u, k_n = jax.random.split(key, 4)

    x = jax.random.normal(k_x, (B, X_DIM), jnp.float32)
    params = make_params(k_p, X_DIM, Z_DIM, Y_DIM)
    u_noise = jax.random.uniform(k_u, (B, Y_DIM), jnp.float32)
    normal_noise = jax.random.normal(k_n, (B, Z_DIM), jnp.float32)

    out = inference_net_forward(x, params, u_noise, normal_noise, temperature=1.0)
    out = jax.tree_util.tree_map(jax.block_until_ready, out)

    ref = reference_forward(x, params, u_noise, normal_noise, temperature=1.0)
    # Tolerances account for bf16 intermediate activations and bf16 packed outputs.
    for k in out:
        np.testing.assert_allclose(np.asarray(out[k]), np.asarray(ref[k]),
                                   rtol=2e-2, atol=2e-2)

    print("KERNEL_OK")
</pallas_src>

<mosaic_0001>
module attributes {stable_mosaic.version = 11 : i64} {
  func.func @inference_net_kernel(%arg0: i32, %arg1: memref<8x64xbf16, #tpu.memory_space<vmem>>, %arg2: memref<64x1024xbf16, #tpu.memory_space<vmem>>, %arg3: memref<1x1024xf32, #tpu.memory_space<vmem>>, %arg4: memref<512x512xbf16, #tpu.memory_space<vmem>>, %arg5: memref<1x512xf32, #tpu.memory_space<vmem>>, %arg6: memref<512x128xbf16, #tpu.memory_space<vmem>>, %arg7: memref<1x128xf32, #tpu.memory_space<vmem>>, %arg8: memref<128x512xbf16, #tpu.memory_space<vmem>>, %arg9: memref<512x512xbf16, #tpu.memory_space<vmem>>, %arg10: memref<1x512xf32, #tpu.memory_space<vmem>>, %arg11: memref<512x256xbf16, #tpu.memory_space<vmem>>, %arg12: memref<1x256xf32, #tpu.memory_space<vmem>>, %arg13: memref<8x128xf32, #tpu.memory_space<vmem>>, %arg14: memref<8x128xf32, #tpu.memory_space<vmem>>, %arg15: memref<8x384xbf16, #tpu.memory_space<vmem>>, %arg16: memref<8x384xbf16, #tpu.memory_space<vmem>>) attributes {dimension_semantics = [#tpu.dimension_semantics<parallel>], iteration_bounds = array<i64: 2>, scalar_prefetch = 0 : i64, scratch_operands = 0 : i64, tpu.core_type = #tpu.core_type<tc>, window_params = [{transform_indices = @transform_0, window_bounds = array<i64: 8, 64>}, {pipeline_mode = #tpu.pipeline_mode<synchronous>, transform_indices = @transform_1, window_bounds = array<i64: 64, 1024>}, {pipeline_mode = #tpu.pipeline_mode<synchronous>, transform_indices = @transform_2, window_bounds = array<i64: 1, 1024>}, {pipeline_mode = #tpu.pipeline_mode<synchronous>, transform_indices = @transform_3, window_bounds = array<i64: 512, 512>}, {pipeline_mode = #tpu.pipeline_mode<synchronous>, transform_indices = @transform_4, window_bounds = array<i64: 1, 512>}, {pipeline_mode = #tpu.pipeline_mode<synchronous>, transform_indices = @transform_5, window_bounds = array<i64: 512, 128>}, {pipeline_mode = #tpu.pipeline_mode<synchronous>, transform_indices = @transform_6, window_bounds = array<i64: 1, 128>}, {pipeline_mode = #tpu.pipeline_mode<synchronous>, transform_indices = @transform_7, window_bounds = array<i64: 128, 512>}, {pipeline_mode = #tpu.pipeline_mode<synchronous>, transform_indices = @transform_8, window_bounds = array<i64: 512, 512>}, {pipeline_mode = #tpu.pipeline_mode<synchronous>, transform_indices = @transform_9, window_bounds = array<i64: 1, 512>}, {pipeline_mode = #tpu.pipeline_mode<synchronous>, transform_indices = @transform_10, window_bounds = array<i64: 512, 256>}, {pipeline_mode = #tpu.pipeline_mode<synchronous>, transform_indices = @transform_11, window_bounds = array<i64: 1, 256>}, {transform_indices = @transform_12, window_bounds = array<i64: 8, 128>}, {transform_indices = @transform_13, window_bounds = array<i64: 8, 128>}, {transform_indices = @transform_14, window_bounds = array<i64: 8, 384>}, {transform_indices = @transform_15, window_bounds = array<i64: 8, 384>}]} {
    %c0 = arith.constant 0 : index
    %c0_0 = arith.constant 0 : index
    %0 = vector.load %arg1[%c0, %c0_0] : memref<8x64xbf16, #tpu.memory_space<vmem>>, vector<8x64xbf16>
    %c0_1 = arith.constant 0 : index
    %c0_2 = arith.constant 0 : index
    %1 = vector.load %arg2[%c0_1, %c0_2] : memref<64x1024xbf16, #tpu.memory_space<vmem>>, vector<64x1024xbf16>
    %cst = arith.constant dense<0.000000e+00> : vector<8x1024xf32>
    %2 = tpu.matmul %0, %1, %cst {dimension_numbers = #tpu.dot_dimension_numbers<[1], [0], [0], [1], [0, 0, 1, 1], [], []>} : vector<8x64xbf16>, vector<64x1024xbf16>, vector<8x1024xf32> -> vector<8x1024xf32>
    %c0_3 = arith.constant 0 : index
    %c0_4 = arith.constant 0 : index
    %3 = vector.load %arg3[%c0_3, %c0_4] : memref<1x1024xf32, #tpu.memory_space<vmem>>, vector<1x1024xf32>
    %4 = vector.broadcast %3 : vector<1x1024xf32> to vector<8x1024xf32>
    %5 = arith.addf %2, %4 : vector<8x1024xf32>
    %6 = vector.extract_strided_slice %5 {offsets = [0, 0], sizes = [8, 512], strides = [1, 1]} : vector<8x1024xf32> to vector<8x512xf32>
    %cst_5 = arith.constant 0.000000e+00 : f32
    %7 = vector.broadcast %cst_5 : f32 to vector<8x512xf32>
    %8 = arith.maximumf %6, %7 : vector<8x512xf32>
    %9 = arith.truncf %8 : vector<8x512xf32> to vector<8x512xbf16>
    %10 = vector.extract_strided_slice %5 {offsets = [0, 512], sizes = [8, 512], strides = [1, 1]} : vector<8x1024xf32> to vector<8x512xf32>
    %c0_6 = arith.constant 0 : index
    %c0_7 = arith.constant 0 : index
    %11 = vector.load %arg4[%c0_6, %c0_7] : memref<512x512xbf16, #tpu.memory_space<vmem>>, vector<512x512xbf16>
    %cst_8 = arith.constant dense<0.000000e+00> : vector<8x512xf32>
    %12 = tpu.matmul %9, %11, %cst_8 {dimension_numbers = #tpu.dot_dimension_numbers<[1], [0], [0], [1], [0, 0, 1, 1], [], []>} : vector<8x512xbf16>, vector<512x512xbf16>, vector<8x512xf32> -> vector<8x512xf32>
    %c0_9 = arith.constant 0 : index
    %c0_10 = arith.constant 0 : index
    %13 = vector.load %arg5[%c0_9, %c0_10] : memref<1x512xf32, #tpu.memory_space<vmem>>, vector<1x512xf32>
    %14 = vector.broadcast %13 : vector<1x512xf32> to vector<8x512xf32>
    %15 = arith.addf %12, %14 : vector<8x512xf32>
    %cst_11 = arith.constant 0.000000e+00 : f32
    %16 = vector.broadcast %cst_11 : f32 to vector<8x512xf32>
    %17 = arith.maximumf %15, %16 : vector<8x512xf32>
    %18 = arith.truncf %17 : vector<8x512xf32> to vector<8x512xbf16>
    %c0_12 = arith.constant 0 : index
    %c0_13 = arith.constant 0 : index
    %19 = vector.load %arg6[%c0_12, %c0_13] : memref<512x128xbf16, #tpu.memory_space<vmem>>, vector<512x128xbf16>
    %cst_14 = arith.constant dense<0.000000e+00> : vector<8x128xf32>
    %20 = tpu.matmul %18, %19, %cst_14 {dimension_numbers = #tpu.dot_dimension_numbers<[1], [0], [0], [1], [0, 0, 1, 1], [], []>} : vector<8x512xbf16>, vector<512x128xbf16>, vector<8x128xf32> -> vector<8x128xf32>
    %c0_15 = arith.constant 0 : index
    %c0_16 = arith.constant 0 : index
    %21 = vector.load %arg7[%c0_15, %c0_16] : memref<1x128xf32, #tpu.memory_space<vmem>>, vector<1x128xf32>
    %22 = vector.broadcast %21 : vector<1x128xf32> to vector<8x128xf32>
    %23 = arith.addf %20, %22 : vector<8x128xf32>
    %cst_17 = arith.constant dense<0xFF800000> : vector<8xf32>
    %24 = vector.multi_reduction <maximumf>, %23, %cst_17 [1] : vector<8x128xf32> to vector<8xf32>
    %25 = vector.shape_cast %24 : vector<8xf32> to vector<8x1xf32>
    %26 = vector.broadcast %25 : vector<8x1xf32> to vector<8x128xf32>
    %27 = arith.subf %23, %26 : vector<8x128xf32>
    %28 = math.exp %27 : vector<8x128xf32>
    %cst_18 = arith.constant dense<0.000000e+00> : vector<8xf32>
    %29 = vector.multi_reduction <add>, %28, %cst_18 [1] : vector<8x128xf32> to vector<8xf32>
    %30 = vector.shape_cast %29 : vector<8xf32> to vector<8x1xf32>
    %31 = tpu.reciprocal %30 {approx = true} : vector<8x1xf32> -> vector<8x1xf32>
    %32 = vector.broadcast %31 : vector<8x1xf32> to vector<8x128xf32>
    %33 = arith.mulf %28, %32 : vector<8x128xf32>
    %c0_19 = arith.constant 0 : index
    %c0_20 = arith.constant 0 : index
    %34 = vector.load %arg13[%c0_19, %c0_20] : memref<8x128xf32, #tpu.memory_space<vmem>>, vector<8x128xf32>
    %cst_21 = arith.constant 9.99999968E-21 : f32
    %35 = vector.broadcast %cst_21 : f32 to vector<8x128xf32>
    %36 = arith.addf %34, %35 : vector<8x128xf32>
    %37 = math.log %36 : vector<8x128xf32>
    %cst_22 = arith.constant 0.000000e+00 : f32
    %38 = vector.broadcast %cst_22 : f32 to vector<8x128xf32>
    %39 = arith.subf %38, %37 : vector<8x128xf32>
    %cst_23 = arith.constant 9.99999968E-21 : f32
    %40 = vector.broadcast %cst_23 : f32 to vector<8x128xf32>
    %41 = arith.addf %39, %40 : vector<8x128xf32>
    %42 = math.log %41 : vector<8x128xf32>
    %cst_24 = arith.constant 0.000000e+00 : f32
    %43 = vector.broadcast %cst_24 : f32 to vector<8x128xf32>
    %44 = arith.subf %43, %42 : vector<8x128xf32>
    %45 = arith.addf %23, %44 : vector<8x128xf32>
    %cst_25 = arith.constant dense<0xFF800000> : vector<8xf32>
    %46 = vector.multi_reduction <maximumf>, %45, %cst_25 [1] : vector<8x128xf32> to vector<8xf32>
    %47 = vector.shape_cast %46 : vector<8xf32> to vector<8x1xf32>
    %48 = vector.broadcast %47 : vector<8x1xf32> to vector<8x128xf32>
    %49 = arith.subf %45, %48 : vector<8x128xf32>
    %50 = math.exp %49 : vector<8x128xf32>
    %cst_26 = arith.constant dense<0.000000e+00> : vector<8xf32>
    %51 = vector.multi_reduction <add>, %50, %cst_26 [1] : vector<8x128xf32> to vector<8xf32>
    %52 = vector.shape_cast %51 : vector<8xf32> to vector<8x1xf32>
    %53 = tpu.reciprocal %52 {approx = true} : vector<8x1xf32> -> vector<8x1xf32>
    %54 = vector.broadcast %53 : vector<8x1xf32> to vector<8x128xf32>
    %55 = arith.mulf %50, %54 : vector<8x128xf32>
    %56 = arith.truncf %55 : vector<8x128xf32> to vector<8x128xbf16>
    %c0_27 = arith.constant 0 : index
    %c0_28 = arith.constant 0 : index
    %57 = vector.load %arg8[%c0_27, %c0_28] : memref<128x512xbf16, #tpu.memory_space<vmem>>, vector<128x512xbf16>
    %cst_29 = arith.constant dense<0.000000e+00> : vector<8x512xf32>
    %58 = tpu.matmul %56, %57, %cst_29 {dimension_numbers = #tpu.dot_dimension_numbers<[1], [0], [0], [1], [0, 0, 1, 1], [], []>} : vector<8x128xbf16>, vector<128x512xbf16>, vector<8x512xf32> -> vector<8x512xf32>
    %59 = arith.addf %10, %58 : vector<8x512xf32>
    %cst_30 = arith.constant 0.000000e+00 : f32
    %60 = vector.broadcast %cst_30 : f32 to vector<8x512xf32>
    %61 = arith.maximumf %59, %60 : vector<8x512xf32>
    %62 = arith.truncf %61 : vector<8x512xf32> to vector<8x512xbf16>
    %c0_31 = arith.constant 0 : index
    %c0_32 = arith.constant 0 : index
    %63 = vector.load %arg9[%c0_31, %c0_32] : memref<512x512xbf16, #tpu.memory_space<vmem>>, vector<512x512xbf16>
    %cst_33 = arith.constant dense<0.000000e+00> : vector<8x512xf32>
    %64 = tpu.matmul %62, %63, %cst_33 {dimension_numbers = #tpu.dot_dimension_numbers<[1], [0], [0], [1], [0, 0, 1, 1], [], []>} : vector<8x512xbf16>, vector<512x512xbf16>, vector<8x512xf32> -> vector<8x512xf32>
    %c0_34 = arith.constant 0 : index
    %c0_35 = arith.constant 0 : index
    %65 = vector.load %arg10[%c0_34, %c0_35] : memref<1x512xf32, #tpu.memory_space<vmem>>, vector<1x512xf32>
    %66 = vector.broadcast %65 : vector<1x512xf32> to vector<8x512xf32>
    %67 = arith.addf %64, %66 : vector<8x512xf32>
    %cst_36 = arith.constant 0.000000e+00 : f32
    %68 = vector.broadcast %cst_36 : f32 to vector<8x512xf32>
    %69 = arith.maximumf %67, %68 : vector<8x512xf32>
    %70 = arith.truncf %69 : vector<8x512xf32> to vector<8x512xbf16>
    %c0_37 = arith.constant 0 : index
    %c0_38 = arith.constant 0 : index
    %71 = vector.load %arg11[%c0_37, %c0_38] : memref<512x256xbf16, #tpu.memory_space<vmem>>, vector<512x256xbf16>
    %cst_39 = arith.constant dense<0.000000e+00> : vector<8x256xf32>
    %72 = tpu.matmul %70, %71, %cst_39 {dimension_numbers = #tpu.dot_dimension_numbers<[1], [0], [0], [1], [0, 0, 1, 1], [], []>} : vector<8x512xbf16>, vector<512x256xbf16>, vector<8x256xf32> -> vector<8x256xf32>
    %c0_40 = arith.constant 0 : index
    %c0_41 = arith.constant 0 : index
    %73 = vector.load %arg12[%c0_40, %c0_41] : memref<1x256xf32, #tpu.memory_space<vmem>>, vector<1x256xf32>
    %74 = vector.broadcast %73 : vector<1x256xf32> to vector<8x256xf32>
    %75 = arith.addf %72, %74 : vector<8x256xf32>
    %76 = vector.extract_strided_slice %75 {offsets = [0, 0], sizes = [8, 128], strides = [1, 1]} : vector<8x256xf32> to vector<8x128xf32>
    %77 = vector.extract_strided_slice %75 {offsets = [0, 128], sizes = [8, 128], strides = [1, 1]} : vector<8x256xf32> to vector<8x128xf32>
    %cst_42 = arith.constant 0.000000e+00 : f32
    %78 = vector.broadcast %cst_42 : f32 to vector<8x128xf32>
    %79 = arith.maximumf %77, %78 : vector<8x128xf32>
    %80 = math.absf %77 : vector<8x128xf32>
    %cst_43 = arith.constant 0.000000e+00 : f32
    %81 = vector.broadcast %cst_43 : f32 to vector<8x128xf32>
    %82 = arith.subf %81, %80 : vector<8x128xf32>
    %83 = math.exp %82 : vector<8x128xf32>
    %cst_44 = arith.constant 1.000000e+00 : f32
    %84 = vector.broadcast %cst_44 : f32 to vector<8x128xf32>
    %85 = arith.addf %84, %83 : vector<8x128xf32>
    %86 = math.log %85 : vector<8x128xf32>
    %87 = arith.addf %79, %86 : vector<8x128xf32>
    %c0_45 = arith.constant 0 : index
    %c0_46 = arith.constant 0 : index
    %88 = vector.load %arg14[%c0_45, %c0_46] : memref<8x128xf32, #tpu.memory_space<vmem>>, vector<8x128xf32>
    %cst_47 = arith.constant 1.000000e-10 : f32
    %89 = vector.broadcast %cst_47 : f32 to vector<8x128xf32>
    %90 = arith.addf %87, %89 : vector<8x128xf32>
    %91 = math.sqrt %90 : vector<8x128xf32>
    %92 = arith.mulf %88, %91 : vector<8x128xf32>
    %93 = arith.addf %76, %92 : vector<8x128xf32>
    %94 = arith.truncf %23 : vector<8x128xf32> to vector<8x128xbf16>
    %c0_48 = arith.constant 0 : index
    %c0_49 = arith.constant 0 : index
    %95 = vector.load %arg15[%c0_48, %c0_49] : memref<8x384xbf16, #tpu.memory_space<vmem>>, vector<8x128xbf16>
    tpu.vector_store %arg15[%c0_48, %c0_49], %94 {strides = array<i32>} : memref<8x384xbf16, #tpu.memory_space<vmem>>, vector<8x128xbf16>,
    %96 = arith.truncf %33 : vector<8x128xf32> to vector<8x128xbf16>
    %c0_50 = arith.constant 0 : index
    %c128 = arith.constant 128 : index
    %97 = vector.load %arg15[%c0_50, %c128] : memref<8x384xbf16, #tpu.memory_space<vmem>>, vector<8x128xbf16>
    tpu.vector_store %arg15[%c0_50, %c128], %96 {strides = array<i32>} : memref<8x384xbf16, #tpu.memory_space<vmem>>, vector<8x128xbf16>,
    %98 = arith.truncf %55 : vector<8x128xf32> to vector<8x128xbf16>
    %c0_51 = arith.constant 0 : index
    %c256 = arith.constant 256 : index
    %99 = vector.load %arg15[%c0_51, %c256] : memref<8x384xbf16, #tpu.memory_space<vmem>>, vector<8x128xbf16>
    tpu.vector_store %arg15[%c0_51, %c256], %98 {strides = array<i32>} : memref<8x384xbf16, #tpu.memory_space<vmem>>, vector<8x128xbf16>,
    %100 = arith.truncf %76 : vector<8x128xf32> to vector<8x128xbf16>
    %c0_52 = arith.constant 0 : index
    %c0_53 = arith.constant 0 : index
    %101 = vector.load %arg16[%c0_52, %c0_53] : memref<8x384xbf16, #tpu.memory_space<vmem>>, vector<8x128xbf16>
    tpu.vector_store %arg16[%c0_52, %c0_53], %100 {strides = array<i32>} : memref<8x384xbf16, #tpu.memory_space<vmem>>, vector<8x128xbf16>,
    %102 = arith.truncf %87 : vector<8x128xf32> to vector<8x128xbf16>
    %c0_54 = arith.constant 0 : index
    %c128_55 = arith.constant 128 : index
    %103 = vector.load %arg16[%c0_54, %c128_55] : memref<8x384xbf16, #tpu.memory_space<vmem>>, vector<8x128xbf16>
    tpu.vector_store %arg16[%c0_54, %c128_55], %102 {strides = array<i32>} : memref<8x384xbf16, #tpu.memory_space<vmem>>, vector<8x128xbf16>,
    %104 = arith.truncf %93 : vector<8x128xf32> to vector<8x128xbf16>
    %c0_56 = arith.constant 0 : index
    %c256_57 = arith.constant 256 : index
    %105 = vector.load %arg16[%c0_56, %c256_57] : memref<8x384xbf16, #tpu.memory_space<vmem>>, vector<8x128xbf16>
    tpu.vector_store %arg16[%c0_56, %c256_57], %104 {strides = array<i32>} : memref<8x384xbf16, #tpu.memory_space<vmem>>, vector<8x128xbf16>,
    return
  }
  func.func @transform_0(%arg0: i32) -> (i32, i32) {
    %c0_i32 = arith.constant 0 : i32
    %c0_i32_0 = arith.constant 0 : i32
    return %arg0, %c0_i32 : i32, i32
  }
  func.func @transform_1(%arg0: i32) -> (i32, i32) {
    %c0_i32 = arith.constant 0 : i32
    %c0_i32_0 = arith.constant 0 : i32
    %c0_i32_1 = arith.constant 0 : i32
    return %c0_i32, %c0_i32_0 : i32, i32
  }
  func.func @transform_2(%arg0: i32) -> (i32, i32) {
    %c0_i32 = arith.constant 0 : i32
    %c0_i32_0 = arith.constant 0 : i32
    %c0_i32_1 = arith.constant 0 : i32
    return %c0_i32, %c0_i32_0 : i32, i32
  }
  func.func @transform_3(%arg0: i32) -> (i32, i32) {
    %c0_i32 = arith.constant 0 : i32
    %c0_i32_0 = arith.constant 0 : i32
    %c0_i32_1 = arith.constant 0 : i32
    return %c0_i32, %c0_i32_0 : i32, i32
  }
  func.func @transform_4(%arg0: i32) -> (i32, i32) {
    %c0_i32 = arith.constant 0 : i32
    %c0_i32_0 = arith.constant 0 : i32
    %c0_i32_1 = arith.constant 0 : i32
    return %c0_i32, %c0_i32_0 : i32, i32
  }
  func.func @transform_5(%arg0: i32) -> (i32, i32) {
    %c0_i32 = arith.constant 0 : i32
    %c0_i32_0 = arith.constant 0 : i32
    %c0_i32_1 = arith.constant 0 : i32
    return %c0_i32, %c0_i32_0 : i32, i32
  }
  func.func @transform_6(%arg0: i32) -> (i32, i32) {
    %c0_i32 = arith.constant 0 : i32
    %c0_i32_0 = arith.constant 0 : i32
    %c0_i32_1 = arith.constant 0 : i32
    return %c0_i32, %c0_i32_0 : i32, i32
  }
  func.func @transform_7(%arg0: i32) -> (i32, i32) {
    %c0_i32 = arith.constant 0 : i32
    %c0_i32_0 = arith.constant 0 : i32
    %c0_i32_1 = arith.constant 0 : i32
    return %c0_i32, %c0_i32_0 : i32, i32
  }
  func.func @transform_8(%arg0: i32) -> (i32, i32) {
    %c0_i32 = arith.constant 0 : i32
    %c0_i32_0 = arith.constant 0 : i32
    %c0_i32_1 = arith.constant 0 : i32
    return %c0_i32, %c0_i32_0 : i32, i32
  }
  func.func @transform_9(%arg0: i32) -> (i32, i32) {
    %c0_i32 = arith.constant 0 : i32
    %c0_i32_0 = arith.constant 0 : i32
    %c0_i32_1 = arith.constant 0 : i32
    return %c0_i32, %c0_i32_0 : i32, i32
  }
  func.func @transform_10(%arg0: i32) -> (i32, i32) {
    %c0_i32 = arith.constant 0 : i32
    %c0_i32_0 = arith.constant 0 : i32
    %c0_i32_1 = arith.constant 0 : i32
    return %c0_i32, %c0_i32_0 : i32, i32
  }
  func.func @transform_11(%arg0: i32) -> (i32, i32) {
    %c0_i32 = arith.constant 0 : i32
    %c0_i32_0 = arith.constant 0 : i32
    %c0_i32_1 = arith.constant 0 : i32
    return %c0_i32, %c0_i32_0 : i32, i32
  }
  func.func @transform_12(%arg0: i32) -> (i32, i32) {
    %c0_i32 = arith.constant 0 : i32
    %c0_i32_0 = arith.constant 0 : i32
    return %arg0, %c0_i32 : i32, i32
  }
  func.func @transform_13(%arg0: i32) -> (i32, i32) {
    %c0_i32 = arith.constant 0 : i32
    %c0_i32_0 = arith.constant 0 : i32
    return %arg0, %c0_i32 : i32, i32
  }
  func.func @transform_14(%arg0: i32) -> (i32, i32) {
    %c0_i32 = arith.constant 0 : i32
    %c0_i32_0 = arith.constant 0 : i32
    return %arg0, %c0_i32 : i32, i32
  }
  func.func @transform_15(%arg0: i32) -> (i32, i32) {
    %c0_i32 = arith.constant 0 : i32
    %c0_i32_0 = arith.constant 0 : i32
    return %arg0, %c0_i32 : i32, i32
  }
}

</mosaic_0001>

<llo_original>
// kernel: tpu_custom_call.1
$region0: #{tpu_custom_call.1}
  #allocation0 [shape = 'u32[]', space=smem, size = 0x4, offset = 0x4, fixed_abs, tag = 'smem constant byte address 0x4 - core index']
  #allocation1 [shape = 'u32[144,128]{1,0:T(1,128)}', space=vmem, size = 0x12000, scoped, tag = 'internal scratch']
  %s0 = inlined_call_operand.hbm [shape: bf16[16,64], index: 0, kind: input, shape index: {}]
  %s1 = inlined_call_operand.hbm [shape: bf16[64,1024], index: 1, kind: input, shape index: {}]
  %s2 = inlined_call_operand.hbm [shape: f32[1,1024], index: 2, kind: input, shape index: {}]
  %s3 = inlined_call_operand.hbm [shape: bf16[512,512], index: 3, kind: input, shape index: {}]
  %s4 = inlined_call_operand.hbm [shape: f32[1,512], index: 4, kind: input, shape index: {}]
  %s5 = inlined_call_operand.hbm [shape: bf16[512,128], index: 5, kind: input, shape index: {}]
  %s6 = inlined_call_operand.hbm [shape: f32[1,128], index: 6, kind: input, shape index: {}]
  %s7 = inlined_call_operand.hbm [shape: bf16[128,512], index: 7, kind: input, shape index: {}]
  %s8 = inlined_call_operand.hbm [shape: bf16[512,512], index: 8, kind: input, shape index: {}]
  %s9 = inlined_call_operand.hbm [shape: f32[1,512], index: 9, kind: input, shape index: {}]
  %s10 = inlined_call_operand.hbm [shape: bf16[512,256], index: 10, kind: input, shape index: {}]
  %s11 = inlined_call_operand.vmem [shape: f32[1,256], index: 11, kind: input, shape index: {}]
  %s12 = inlined_call_operand.vmem [shape: f32[16,128], index: 12, kind: input, shape index: {}]
  %s13 = inlined_call_operand.vmem [shape: f32[16,128], index: 13, kind: input, shape index: {}]
  %s14 = inlined_call_operand.hbm [shape: bf16[16,384], index: 14, kind: output, shape index: {0}]
  %s15 = inlined_call_operand.hbm [shape: bf16[16,384], index: 15, kind: output, shape index: {1}]
  %16 = xla_tuple %s14, %s15
  %s17 = sld [smem:[#allocation0]]
  $region141: #{tpu_custom_call.1} parent=0
    _
  %s19 = ssub.s32 1, %s17
  %s20 = scalar_select 0, %s19, %s17
  $region1: #{tpu_custom_call.1} parent=0
    #allocation2 [shape = 'u8[4096]{0}', space=vmem, size = 0x1000, scoped, tag = 'input window, operand 0']
    #allocation3 [shape = 's32[2]{0}', space=sflag, size = 0x8, scoped, tag = 'scoped memory for tpu_custom_call.1']
    #allocation4 [shape = 's32[2]{0}', space=sflag, size = 0x8, scoped, tag = 'scoped memory for tpu_custom_call.1']
    #allocation5 [shape = 'u8[131072]{0}', space=vmem, size = 0x20000, scoped, tag = 'input window, operand 1, single buffered']
    #allocation6 [shape = 's32[1]{0}', space=sflag, size = 0x4, scoped, tag = 'scoped memory for tpu_custom_call.1']
    #allocation7 [shape = 'u8[4096]{0}', space=vmem, size = 0x1000, scoped, tag = 'input window, operand 2, single buffered']
    #allocation8 [shape = 'u8[524288]{0}', space=vmem, size = 0x80000, scoped, tag = 'input window, operand 3, single buffered']
    #allocation9 [shape = 's32[1]{0}', space=sflag, size = 0x4, scoped, tag = 'scoped memory for tpu_custom_call.1']
    #allocation10 [shape = 'u8[2048]{0}', space=vmem, size = 0x800, scoped, tag = 'input window, operand 4, single buffered']
    #allocation11 [shape = 'u8[131072]{0}', space=vmem, size = 0x20000, scoped, tag = 'input window, operand 5, single buffered']
    #allocation12 [shape = 's32[1]{0}', space=sflag, size = 0x4, scoped, tag = 'scoped memory for tpu_custom_call.1']
    #allocation13 [shape = 'u8[512]{0}', space=vmem, size = 0x400, scoped, tag = 'input window, operand 6, single buffered']
    #allocation14 [shape = 'u8[131072]{0}', space=vmem, size = 0x20000, scoped, tag = 'input window, operand 7, single buffered']
    #allocation15 [shape = 's32[1]{0}', space=sflag, size = 0x4, scoped, tag = 'scoped memory for tpu_custom_call.1']
    #allocation16 [shape = 'u8[524288]{0}', space=vmem, size = 0x80000, scoped, tag = 'input window, operand 8, single buffered']
    #allocation17 [shape = 'u8[2048]{0}', space=vmem, size = 0x800, scoped, tag = 'input window, operand 9, single buffered']
    #allocation18 [shape = 's32[1]{0}', space=sflag, size = 0x4, scoped, tag = 'scoped memory for tpu_custom_call.1']
    #allocation19 [shape = 'u8[262144]{0}', space=vmem, size = 0x40000, scoped, tag = 'input window, operand 10, single buffered']
    #allocation20 [shape = 'u8[12288]{0}', space=vmem, size = 0x3000, scoped, tag = 'output window, operand 0']
    #allocation21 [shape = 'u8[12288]{0}', space=vmem, size = 0x3000, scoped, tag = 'output window, operand 1']
    #allocation22 [shape = 's32[2]{0}', space=sflag, size = 0x8, scoped, tag = 'scoped memory for tpu_custom_call.1']
    %21 = vsyncpa [#allocation3], 0
    %s22 = scalar_lea.sflag [#allocation3], 1
    %23 = vsyncpa %s22, 0
    %24 = vsyncpa [#allocation6], 0
    %25 = vsyncpa [#allocation9], 0
    %26 = vsyncpa [#allocation12], 0
    %27 = vsyncpa [#allocation15], 0
    %28 = vsyncpa [#allocation18], 0
    %29 = vsyncpa [#allocation4], 0
    %s30 = scalar_lea.sflag [#allocation4], 1
    %31 = vsyncpa %s30, 0
    %32 = vsyncpa [#allocation22], 0
    %s33 = scalar_lea.sflag [#allocation22], 1
    %34 = vsyncpa %s33, 0
    loop: start=0, step=1, limit=4
    $region2: #{tpu_custom_call.1} parent=1 // loop_pre_header
      _
    $region3: #{tpu_custom_call.1} parent=1 // loop_header
      %s36 = sphi 0, %s40
      %p37 = scmp.ge.s32.totalorder %s36, 4
      %s46 = sphi 0, %s48
      %s49 = sphi 0, %s46
      %s50 = sphi 0, %s49
      %s66 = sphi 0, %s50
      %s70 = sphi 0, %s70
      %s72 = sphi 0, %s70
      %s73 = sphi 0, %s72
      %s87 = sphi 0, %s73
      %s91 = sphi 0, %s91
      %s93 = sphi 0, %s91
      %s94 = sphi 0, %s93
      %s108 = sphi 0, %s94
      %s112 = sphi 0, %s112
      %s114 = sphi 0, %s112
      %s115 = sphi 0, %s114
      %s129 = sphi 0, %s115
      %s133 = sphi 0, %s133
      %s135 = sphi 0, %s133
      %s136 = sphi 0, %s135
      %s150 = sphi 0, %s136
      %s154 = sphi 0, %s154
      %s156 = sphi 0, %s154
      %s157 = sphi 0, %s156
      %s171 = sphi 0, %s157
      %s175 = sphi 0, %s175
      %s177 = sphi 0, %s175
      %s178 = sphi 0, %s177
      %s192 = sphi 0, %s178
      %s196 = sphi 0, %s196
      %s198 = sphi 0, %s196
      %s199 = sphi 0, %s198
      %s213 = sphi 0, %s199
      %s217 = sphi 0, %s217
      %s219 = sphi 0, %s217
      %s220 = sphi 0, %s219
      %s234 = sphi 0, %s220
      %s238 = sphi 0, %s238
      %s240 = sphi 0, %s238
      %s241 = sphi 0, %s240
      %s255 = sphi 0, %s241
      %s259 = sphi 0, %s259
      %s261 = sphi 0, %s259
      %s262 = sphi 0, %s261
      %s276 = sphi 0, %s262
      %s280 = sphi 0, %s280
      %s282 = sphi 0, %s280
      %s283 = sphi 0, %s282
      %s297 = sphi 0, %s283
      %s303 = sphi 0, %s305
      %s306 = sphi 0, %s303
      %s307 = sphi 0, %s306
      %s323 = sphi 0, %s307
      %s329 = sphi 0, %s331
      %s332 = sphi 0, %s329
      %s333 = sphi 0, %s332
      %s349 = sphi 0, %s333
      %s355 = sphi 0, %s357
      %s358 = sphi 0, %s355
      %s359 = sphi 0, %s358
      %s375 = sphi 0, %s359
      %s381 = sphi 0, %s383
      %s384 = sphi 0, %s381
      %s385 = sphi 0, %s384
      %s401 = sphi 0, %s385
    $region4: #{tpu_custom_call.1} parent=1 // loop_header_branch
      %39 = sbr.rel (%p37) target = $region8
    $region5: #{tpu_custom_call.1} parent=1 // loop_body
      %s41 = ssub.s32 %s36, 1
      %s42 = ssub.s32 %s36, 2
      %s43 = sadd.s32 %s36, 1
      %s44 = ssub.s32 %s36, %s43
      %p45 = scmp.eq.s32.totalorder %s44, 0
      %s47 = sadd.s32 %s46, 1
      %s48 = scalar_select %p45, %s46, %s47
      %p51 = pneg %p45
      %p52 = scmp.eq.s32.totalorder %s36, 1
      %p53 = por %p51, %p52
      %p54 = scmp.ne.s32.totalorder %s46, %s49
      %p55 = scmp.eq.s32.totalorder %s36, 0
      %p56 = por %p54, %p55
      %p57 = scmp.ne.s32.totalorder %s46, %s49
      %p58 = scmp.eq.s32.totalorder %s41, 1
      %p59 = por %p57, %p58
      %p60 = scmp.ne.s32.totalorder %s49, %s50
      %p61 = scmp.eq.s32.totalorder %s41, 0
      %p62 = por %p60, %p61
      %p63 = scmp.ne.s32.totalorder %s49, %s50
      %p64 = scmp.eq.s32.totalorder %s42, 1
      %p65 = por %p63, %p64
      %p67 = scmp.ne.s32.totalorder %s50, %s66
      %p68 = scmp.eq.s32.totalorder %s42, 0
      %p69 = por %p67, %p68
      %s71 = sadd.s32 %s70, 1
      %p74 = scmp.eq.s32.totalorder %s36, 1
      %p75 = scmp.ne.s32.totalorder %s70, %s72
      %p76 = scmp.eq.s32.totalorder %s36, 0
      %p77 = por %p75, %p76
      %p78 = scmp.ne.s32.totalorder %s70, %s72
      %p79 = scmp.eq.s32.totalorder %s41, 1
      %p80 = por %p78, %p79
      %p81 = scmp.ne.s32.totalorder %s72, %s73
      %p82 = scmp.eq.s32.totalorder %s41, 0
      %p83 = por %p81, %p82
      %p84 = scmp.ne.s32.totalorder %s72, %s73
      %p85 = scmp.eq.s32.totalorder %s42, 1
      %p86 = por %p84, %p85
      %p88 = scmp.ne.s32.totalorder %s73, %s87
      %p89 = scmp.eq.s32.totalorder %s42, 0
      %p90 = por %p88, %p89
      %s92 = sadd.s32 %s91, 1
      %p95 = scmp.eq.s32.totalorder %s36, 1
      %p96 = scmp.ne.s32.totalorder %s91, %s93
      %p97 = scmp.eq.s32.totalorder %s36, 0
      %p98 = por %p96, %p97
      %p99 = scmp.ne.s32.totalorder %s91, %s93
      %p100 = scmp.eq.s32.totalorder %s41, 1
      %p101 = por %p99, %p100
      %p102 = scmp.ne.s32.totalorder %s93, %s94
      %p103 = scmp.eq.s32.totalorder %s41, 0
      %p104 = por %p102, %p103
      %p105 = scmp.ne.s32.totalorder %s93, %s94
      %p106 = scmp.eq.s32.totalorder %s42, 1
      %p107 = por %p105, %p106
      %p109 = scmp.ne.s32.totalorder %s94, %s108
      %p110 = scmp.eq.s32.totalorder %s42, 0
      %p111 = por %p109, %p110
      %s113 = sadd.s32 %s112, 1
      %p116 = scmp.eq.s32.totalorder %s36, 1
      %p117 = scmp.ne.s32.totalorder %s112, %s114
      %p118 = scmp.eq.s32.totalorder %s36, 0
      %p119 = por %p117, %p118
      %p120 = scmp.ne.s32.totalorder %s112, %s114
      %p121 = scmp.eq.s32.totalorder %s41, 1
      %p122 = por %p120, %p121
      %p123 = scmp.ne.s32.totalorder %s114, %s115
      %p124 = scmp.eq.s32.totalorder %s41, 0
      %p125 = por %p123, %p124
      %p126 = scmp.ne.s32.totalorder %s114, %s115
      %p127 = scmp.eq.s32.totalorder %s42, 1
      %p128 = por %p126, %p127
      %p130 = scmp.ne.s32.totalorder %s115, %s129
      %p131 = scmp.eq.s32.totalorder %s42, 0
      %p132 = por %p130, %p131
      %s134 = sadd.s32 %s133, 1
      %p137 = scmp.eq.s32.totalorder %s36, 1
      %p138 = scmp.ne.s32.totalorder %s133, %s135
      %p139 = scmp.eq.s32.totalorder %s36, 0
      %p140 = por %p138, %p139
      %p141 = scmp.ne.s32.totalorder %s133, %s135
      %p142 = scmp.eq.s32.totalorder %s41, 1
      %p143 = por %p141, %p142
      %p144 = scmp.ne.s32.totalorder %s135, %s136
      %p145 = scmp.eq.s32.totalorder %s41, 0
      %p146 = por %p144, %p145
      %p147 = scmp.ne.s32.totalorder %s135, %s136
      %p148 = scmp.eq.s32.totalorder %s42, 1
      %p149 = por %p147, %p148
      %p151 = scmp.ne.s32.totalorder %s136, %s150
      %p152 = scmp.eq.s32.totalorder %s42, 0
      %p153 = por %p151, %p152
      %s155 = sadd.s32 %s154, 1
      %p158 = scmp.eq.s32.totalorder %s36, 1
      %p159 = scmp.ne.s32.totalorder %s154, %s156
      %p160 = scmp.eq.s32.totalorder %s36, 0
      %p161 = por %p159, %p160
      %p162 = scmp.ne.s32.totalorder %s154, %s156
      %p163 = scmp.eq.s32.totalorder %s41, 1
      %p164 = por %p162, %p163
      %p165 = scmp.ne.s32.totalorder %s156, %s157
      %p166 = scmp.eq.s32.totalorder %s41, 0
      %p167 = por %p165, %p166
      %p168 = scmp.ne.s32.totalorder %s156, %s157
      %p169 = scmp.eq.s32.totalorder %s42, 1
      %p170 = por %p168, %p169
      %p172 = scmp.ne.s32.totalorder %s157, %s171
      %p173 = scmp.eq.s32.totalorder %s42, 0
      %p174 = por %p172, %p173
      %s176 = sadd.s32 %s175, 1
      %p179 = scmp.eq.s32.totalorder %s36, 1
      %p180 = scmp.ne.s32.totalorder %s175, %s177
      %p181 = scmp.eq.s32.totalorder %s36, 0
      %p182 = por %p180, %p181
      %p183 = scmp.ne.s32.totalorder %s175, %s177
      %p184 = scmp.eq.s32.totalorder %s41, 1
      %p185 = por %p183, %p184
      %p186 = scmp.ne.s32.totalorder %s177, %s178
      %p187 = scmp.eq.s32.totalorder %s41, 0
      %p188 = por %p186, %p187
      %p189 = scmp.ne.s32.totalorder %s177, %s178
      %p190 = scmp.eq.s32.totalorder %s42, 1
      %p191 = por %p189, %p190
      %p193 = scmp.ne.s32.totalorder %s178, %s192
      %p194 = scmp.eq.s32.totalorder %s42, 0
      %p195 = por %p193, %p194
      %s197 = sadd.s32 %s196, 1
      %p200 = scmp.eq.s32.totalorder %s36, 1
      %p201 = scmp.ne.s32.totalorder %s196, %s198
      %p202 = scmp.eq.s32.totalorder %s36, 0
      %p203 = por %p201, %p202
      %p204 = scmp.ne.s32.totalorder %s196, %s198
      %p205 = scmp.eq.s32.totalorder %s41, 1
      %p206 = por %p204, %p205
      %p207 = scmp.ne.s32.totalorder %s198, %s199
      %p208 = scmp.eq.s32.totalorder %s41, 0
      %p209 = por %p207, %p208
      %p210 = scmp.ne.s32.totalorder %s198, %s199
      %p211 = scmp.eq.s32.totalorder %s42, 1
      %p212 = por %p210, %p211
      %p214 = scmp.ne.s32.totalorder %s199, %s213
      %p215 = scmp.eq.s32.totalorder %s42, 0
      %p216 = por %p214, %p215
      %s218 = sadd.s32 %s217, 1
      %p221 = scmp.eq.s32.totalorder %s36, 1
      %p222 = scmp.ne.s32.totalorder %s217, %s219
      %p223 = scmp.eq.s32.totalorder %s36, 0
      %p224 = por %p222, %p223
      %p225 = scmp.ne.s32.totalorder %s217, %s219
      %p226 = scmp.eq.s32.totalorder %s41, 1
      %p227 = por %p225, %p226
      %p228 = scmp.ne.s32.totalorder %s219, %s220
      %p229 = scmp.eq.s32.totalorder %s41, 0
      %p230 = por %p228, %p229
      %p231 = scmp.ne.s32.totalorder %s219, %s220
      %p232 = scmp.eq.s32.totalorder %s42, 1
      %p233 = por %p231, %p232
      %p235 = scmp.ne.s32.totalorder %s220, %s234
      %p236 = scmp.eq.s32.totalorder %s42, 0
      %p237 = por %p235, %p236
      %s239 = sadd.s32 %s238, 1
      %p242 = scmp.eq.s32.totalorder %s36, 1
      %p243 = scmp.ne.s32.totalorder %s238, %s240
      %p244 = scmp.eq.s32.totalorder %s36, 0
      %p245 = por %p243, %p244
      %p246 = scmp.ne.s32.totalorder %s238, %s240
      %p247 = scmp.eq.s32.totalorder %s41, 1
      %p248 = por %p246, %p247
      %p249 = scmp.ne.s32.totalorder %s240, %s241
      %p250 = scmp.eq.s32.totalorder %s41, 0
      %p251 = por %p249, %p250
      %p252 = scmp.ne.s32.totalorder %s240, %s241
      %p253 = scmp.eq.s32.totalorder %s42, 1
      %p254 = por %p252, %p253
      %p256 = scmp.ne.s32.totalorder %s241, %s255
      %p257 = scmp.eq.s32.totalorder %s42, 0
      %p258 = por %p256, %p257
      %s260 = sadd.s32 %s259, 1
      %p263 = scmp.eq.s32.totalorder %s36, 1
      %p264 = scmp.ne.s32.totalorder %s259, %s261
      %p265 = scmp.eq.s32.totalorder %s36, 0
      %p266 = por %p264, %p265
      %p267 = scmp.ne.s32.totalorder %s259, %s261
      %p268 = scmp.eq.s32.totalorder %s41, 1
      %p269 = por %p267, %p268
      %p270 = scmp.ne.s32.totalorder %s261, %s262
      %p271 = scmp.eq.s32.totalorder %s41, 0
      %p272 = por %p270, %p271
      %p273 = scmp.ne.s32.totalorder %s261, %s262
      %p274 = scmp.eq.s32.totalorder %s42, 1
      %p275 = por %p273, %p274
      %p277 = scmp.ne.s32.totalorder %s262, %s276
      %p278 = scmp.eq.s32.totalorder %s42, 0
      %p279 = por %p277, %p278
      %s281 = sadd.s32 %s280, 1
      %p284 = scmp.eq.s32.totalorder %s36, 1
      %p285 = scmp.ne.s32.totalorder %s280, %s282
      %p286 = scmp.eq.s32.totalorder %s36, 0
      %p287 = por %p285, %p286
      %p288 = scmp.ne.s32.totalorder %s280, %s282
      %p289 = scmp.eq.s32.totalorder %s41, 1
      %p290 = por %p288, %p289
      %p291 = scmp.ne.s32.totalorder %s282, %s283
      %p292 = scmp.eq.s32.totalorder %s41, 0
      %p293 = por %p291, %p292
      %p294 = scmp.ne.s32.totalorder %s282, %s283
      %p295 = scmp.eq.s32.totalorder %s42, 1
      %p296 = por %p294, %p295
      %p298 = scmp.ne.s32.totalorder %s283, %s297
      %p299 = scmp.eq.s32.totalorder %s42, 0
      %p300 = por %p298, %p299
      %s301 = ssub.s32 %s36, %s43
      %p302 = scmp.eq.s32.totalorder %s301, 0
      %s304 = sadd.s32 %s303, 1
      %s305 = scalar_select %p302, %s303, %s304
      %p308 = pneg %p302
      %p309 = scmp.eq.s32.totalorder %s36, 1
      %p310 = por %p308, %p309
      %p311 = scmp.ne.s32.totalorder %s303, %s306
      %p312 = scmp.eq.s32.totalorder %s36, 0
      %p313 = por %p311, %p312
      %p314 = scmp.ne.s32.totalorder %s303, %s306
      %p315 = scmp.eq.s32.totalorder %s41, 1
      %p316 = por %p314, %p315
      %p317 = scmp.ne.s32.totalorder %s306, %s307
      %p318 = scmp.eq.s32.totalorder %s41, 0
      %p319 = por %p317, %p318
      %p320 = scmp.ne.s32.totalorder %s306, %s307
      %p321 = scmp.eq.s32.totalorder %s42, 1
      %p322 = por %p320, %p321
      %p324 = scmp.ne.s32.totalorder %s307, %s323
      %p325 = scmp.eq.s32.totalorder %s42, 0
      %p326 = por %p324, %p325
      %s327 = ssub.s32 %s36, %s43
      %p328 = scmp.eq.s32.totalorder %s327, 0
      %s330 = sadd.s32 %s329, 1
      %s331 = scalar_select %p328, %s329, %s330
      %p334 = pneg %p328
      %p335 = scmp.eq.s32.totalorder %s36, 1
      %p336 = por %p334, %p335
      %p337 = scmp.ne.s32.totalorder %s329, %s332
      %p338 = scmp.eq.s32.totalorder %s36, 0
      %p339 = por %p337, %p338
      %p340 = scmp.ne.s32.totalorder %s329, %s332
      %p341 = scmp.eq.s32.totalorder %s41, 1
      %p342 = por %p340, %p341
      %p343 = scmp.ne.s32.totalorder %s332, %s333
      %p344 = scmp.eq.s32.totalorder %s41, 0
      %p345 = por %p343, %p344
      %p346 = scmp.ne.s32.totalorder %s332, %s333
      %p347 = scmp.eq.s32.totalorder %s42, 1
      %p348 = por %p346, %p347
      %p350 = scmp.ne.s32.totalorder %s333, %s349
      %p351 = scmp.eq.s32.totalorder %s42, 0
      %p352 = por %p350, %p351
      %s353 = ssub.s32 %s36, %s43
      %p354 = scmp.eq.s32.totalorder %s353, 0
      %s356 = sadd.s32 %s355, 1
      %s357 = scalar_select %p354, %s355, %s356
      %p360 = pneg %p354
      %p361 = scmp.eq.s32.totalorder %s36, 1
      %p362 = por %p360, %p361
      %p363 = scmp.ne.s32.totalorder %s355, %s358
      %p364 = scmp.eq.s32.totalorder %s36, 0
      %p365 = por %p363, %p364
      %p366 = scmp.ne.s32.totalorder %s355, %s358
      %p367 = scmp.eq.s32.totalorder %s41, 1
      %p368 = por %p366, %p367
      %p369 = scmp.ne.s32.totalorder %s358, %s359
      %p370 = scmp.eq.s32.totalorder %s41, 0
      %p371 = por %p369, %p370
      %p372 = scmp.ne.s32.totalorder %s358, %s359
      %p373 = scmp.eq.s32.totalorder %s42, 1
      %p374 = por %p372, %p373
      %p376 = scmp.ne.s32.totalorder %s359, %s375
      %p377 = scmp.eq.s32.totalorder %s42, 0
      %p378 = por %p376, %p377
      %s379 = ssub.s32 %s36, %s43
      %p380 = scmp.eq.s32.totalorder %s379, 0
      %s382 = sadd.s32 %s381, 1
      %s383 = scalar_select %p380, %s381, %s382
      %p386 = pneg %p380
      %p387 = scmp.eq.s32.totalorder %s36, 1
      %p388 = por %p386, %p387
      %p389 = scmp.ne.s32.totalorder %s381, %s384
      %p390 = scmp.eq.s32.totalorder %s36, 0
      %p391 = por %p389, %p390
      %p392 = scmp.ne.s32.totalorder %s381, %s384
      %p393 = scmp.eq.s32.totalorder %s41, 1
      %p394 = por %p392, %p393
      %p395 = scmp.ne.s32.totalorder %s384, %s385
      %p396 = scmp.eq.s32.totalorder %s41, 0
      %p397 = por %p395, %p396
      %p398 = scmp.ne.s32.totalorder %s384, %s385
      %p399 = scmp.eq.s32.totalorder %s42, 1
      %p400 = por %p398, %p399
      %p402 = scmp.ne.s32.totalorder %s385, %s401
      %p403 = scmp.eq.s32.totalorder %s42, 0
      %p404 = por %p402, %p403
      %p405 = scmp.le.s32.totalorder 1, %s36
      %p406 = scmp.lt.s32.totalorder %s36, 3
      %p407 = pnand %p405, %p406
      %p408 = pneg %p407
      // Predicated region
      $region9: #{tpu_custom_call.1} parent=5 // pred_check
        _
      $region10: #{tpu_custom_call.1} parent=5 // pred_check_branch
        %410 = sbr.rel (%p407) target = $region12
      $region11: #{tpu_custom_call.1} parent=5 // pred_region
        %s411 = ssub.s32 %s36, 1
        // Predicated region
        $region13: #{tpu_custom_call.1} parent=11 // pred_check
          %p412 = pneg %p83
        $region14: #{tpu_custom_call.1} parent=11 // pred_check_branch
          %414 = sbr.rel (%p412) target = $region16
        $region15: #{tpu_custom_call.1} parent=11 // pred_region
          %s416 = ssub.s32 4096, 4096
          %417 = vsyncadd [#allocation6], %s416
          %s418 = sshll.u32 [#allocation5], 4
          %s419 = int_to_ptr.vmem [resolvable:$true] %s418
          %424 = dma.hbm_to_vmem [thread:$0]  %s1, 4096, %s419, [#allocation6], 512, 512, 32
        $region16: #{tpu_custom_call.1} parent=11 // pred_fallthru
          _
        // Predicated region
        $region17: #{tpu_custom_call.1} parent=11 // pred_check
          %p425 = pneg %p104
        $region18: #{tpu_custom_call.1} parent=11 // pred_check_branch
          %427 = sbr.rel (%p425) target = $region20
        $region19: #{tpu_custom_call.1} parent=11 // pred_region
          %s429 = ssub.s32 128, 128
          %430 = vsyncadd [#allocation6], %s429
          %s432 = sshll.u32 [#allocation7], 4
          %s433 = int_to_ptr.vmem [resolvable:$true] %s432
          %435 = dma.hbm_to_vmem [thread:$0]  %s2, 128, %s433, [#allocation6]
        $region20: #{tpu_custom_call.1} parent=11 // pred_fallthru
          _
        // Predicated region
        $region21: #{tpu_custom_call.1} parent=11 // pred_check
          %p436 = pneg %p125
        $region22: #{tpu_custom_call.1} parent=11 // pred_check_branch
          %438 = sbr.rel (%p436) target = $region24
        $region23: #{tpu_custom_call.1} parent=11 // pred_region
          %s440 = ssub.s32 16384, 16384
          %441 = vsyncadd [#allocation9], %s440
          %s442 = sshll.u32 [#allocation8], 4
          %s443 = int_to_ptr.vmem [resolvable:$true] %s442
          %448 = dma.hbm_to_vmem [thread:$0]  %s3, 16384, %s443, [#allocation9], 256, 256, 16
        $region24: #{tpu_custom_call.1} parent=11 // pred_fallthru
          _
        // Predicated region
        $region25: #{tpu_custom_call.1} parent=11 // pred_check
          %p449 = pneg %p146
        $region26: #{tpu_custom_call.1} parent=11 // pred_check_branch
          %451 = sbr.rel (%p449) target = $region28
        $region27: #{tpu_custom_call.1} parent=11 // pred_region
          %s453 = ssub.s32 64, 64
          %454 = vsyncadd [#allocation9], %s453
          %s456 = sshll.u32 [#allocation10], 4
          %s457 = int_to_ptr.vmem [resolvable:$true] %s456
          %459 = dma.hbm_to_vmem [thread:$0]  %s4, 64, %s457, [#allocation9]
        $region28: #{tpu_custom_call.1} parent=11 // pred_fallthru
          _
        // Predicated region
        $region29: #{tpu_custom_call.1} parent=11 // pred_check
          %p460 = pneg %p167
        $region30: #{tpu_custom_call.1} parent=11 // pred_check_branch
          %462 = sbr.rel (%p460) target = $region32
        $region31: #{tpu_custom_call.1} parent=11 // pred_region
          %s464 = ssub.s32 4096, 4096
          %465 = vsyncadd [#allocation12], %s464
          %s466 = sshll.u32 [#allocation11], 4
          %s467 = int_to_ptr.vmem [resolvable:$true] %s466
          %472 = dma.hbm_to_vmem [thread:$0]  %s5, 4096, %s467, [#allocation12], 64, 64, 4
        $region32: #{tpu_custom_call.1} parent=11 // pred_fallthru
          _
        // Predicated region
        $region33: #{tpu_custom_call.1} parent=11 // pred_check
          %p473 = pneg %p188
        $region34: #{tpu_custom_call.1} parent=11 // pred_check_branch
          %475 = sbr.rel (%p473) target = $region36
        $region35: #{tpu_custom_call.1} parent=11 // pred_region
          %s477 = ssub.s32 16, 16
          %478 = vsyncadd [#allocation12], %s477
          %s480 = sshll.u32 [#allocation13], 4
          %s481 = int_to_ptr.vmem [resolvable:$true] %s480
          %483 = dma.hbm_to_vmem [thread:$0]  %s6, 16, %s481, [#allocation12]
        $region36: #{tpu_custom_call.1} parent=11 // pred_fallthru
          _
        // Predicated region
        $region37: #{tpu_custom_call.1} parent=11 // pred_check
          %p484 = pneg %p209
        $region38: #{tpu_custom_call.1} parent=11 // pred_check_branch
          %486 = sbr.rel (%p484) target = $region40
        $region39: #{tpu_custom_call.1} parent=11 // pred_region
          %s488 = ssub.s32 4096, 4096
          %489 = vsyncadd [#allocation15], %s488
          %s490 = sshll.u32 [#allocation14], 4
          %s491 = int_to_ptr.vmem [resolvable:$true] %s490
          %496 = dma.hbm_to_vmem [thread:$0]  %s7, 4096, %s491, [#allocation15], 256, 256, 16
        $region40: #{tpu_custom_call.1} parent=11 // pred_fallthru
          _
        // Predicated region
        $region41: #{tpu_custom_call.1} parent=11 // pred_check
          %p497 = pneg %p230
        $region42: #{tpu_custom_call.1} parent=11 // pred_check_branch
          %499 = sbr.rel (%p497) target = $region44
        $region43: #{tpu_custom_call.1} parent=11 // pred_region
          %s501 = ssub.s32 16384, 16384
          %502 = vsyncadd [#allocation15], %s501
          %s503 = sshll.u32 [#allocation16], 4
          %s504 = int_to_ptr.vmem [resolvable:$true] %s503
          %509 = dma.hbm_to_vmem [thread:$0]  %s8, 16384, %s504, [#allocation15], 256, 256, 16
        $region44: #{tpu_custom_call.1} parent=11 // pred_fallthru
          _
        // Predicated region
        $region45: #{tpu_custom_call.1} parent=11 // pred_check
          %p510 = pneg %p251
        $region46: #{tpu_custom_call.1} parent=11 // pred_check_branch
          %512 = sbr.rel (%p510) target = $region48
        $region47: #{tpu_custom_call.1} parent=11 // pred_region
          %s514 = ssub.s32 64, 64
          %515 = vsyncadd [#allocation18], %s514
          %s517 = sshll.u32 [#allocation17], 4
          %s518 = int_to_ptr.vmem [resolvable:$true] %s517
          %520 = dma.hbm_to_vmem [thread:$0]  %s9, 64, %s518, [#allocation18]
        $region48: #{tpu_custom_call.1} parent=11 // pred_fallthru
          _
        // Predicated region
        $region49: #{tpu_custom_call.1} parent=11 // pred_check
          %p521 = pneg %p272
        $region50: #{tpu_custom_call.1} parent=11 // pred_check_branch
          %523 = sbr.rel (%p521) target = $region52
        $region51: #{tpu_custom_call.1} parent=11 // pred_region
          %s525 = ssub.s32 8192, 8192
          %526 = vsyncadd [#allocation18], %s525
          %s527 = sshll.u32 [#allocation19], 4
          %s528 = int_to_ptr.vmem [resolvable:$true] %s527
          %533 = dma.hbm_to_vmem [thread:$0]  %s10, 8192, %s528, [#allocation18], 128, 128, 8
        $region52: #{tpu_custom_call.1} parent=11 // pred_fallthru
          _
        // Predicated region
        $region53: #{tpu_custom_call.1} parent=11 // pred_check
          %p534 = pneg %p293
        $region54: #{tpu_custom_call.1} parent=11 // pred_check_branch
          %536 = sbr.rel (%p534) target = $region56
        $region55: #{tpu_custom_call.1} parent=11 // pred_region
          _
        $region56: #{tpu_custom_call.1} parent=11 // pred_fallthru
          _
      $region12: #{tpu_custom_call.1} parent=5 // pred_fallthru
        _
      %p537 = scmp.lt.s32.totalorder %s36, 2
      // Predicated region
      $region57: #{tpu_custom_call.1} parent=5 // pred_check
        %p538 = pneg %p537
      $region58: #{tpu_custom_call.1} parent=5 // pred_check_branch
        %540 = sbr.rel (%p538) target = $region60
      $region59: #{tpu_custom_call.1} parent=5 // pred_region
        // Predicated region
        $region61: #{tpu_custom_call.1} parent=59 // pred_check
          %p541 = pneg %p56
        $region62: #{tpu_custom_call.1} parent=59 // pred_check_branch
          %543 = sbr.rel (%p541) target = $region64
        $region63: #{tpu_custom_call.1} parent=59 // pred_region
          %s544 = sand.u32 %s46, 1
          %s545 = scalar_lea.sflag [#allocation3], %s544
          %s546 = sand.u32 %s46, 1
          %s547 = smul.addr %s546, 4
          %s548 = scalar_lea.vmem [#allocation2], %s547
          %s550 = ssub.s32 64, 64
          %551 = vsyncadd %s545, %s550
          %s552 = smul.addr %s36, 64
          %s553 = scalar_lea.hbm %s0, %s552
          %s555 = sshll.u32 %s548, 4
          %s556 = int_to_ptr.vmem [resolvable:$true] %s555
          %558 = dma.hbm_to_vmem [thread:$0]  %s553, 64, %s556, %s545
        $region64: #{tpu_custom_call.1} parent=59 // pred_fallthru
          _
        // Predicated region
        $region65: #{tpu_custom_call.1} parent=59 // pred_check
          %p559 = pneg %p313
        $region66: #{tpu_custom_call.1} parent=59 // pred_check_branch
          %561 = sbr.rel (%p559) target = $region68
        $region67: #{tpu_custom_call.1} parent=59 // pred_region
          %p562 = scmp.lt.s32.totalorder %s36, 1
          %s563 = scalar_select %p562, %s36, 1
          %s564 = smul.addr %s563, 8
          %s565 = scalar_lea.vmem %s12, %s564
        $region68: #{tpu_custom_call.1} parent=59 // pred_fallthru
          _
        // Predicated region
        $region69: #{tpu_custom_call.1} parent=59 // pred_check
          %p566 = pneg %p339
        $region70: #{tpu_custom_call.1} parent=59 // pred_check_branch
          %568 = sbr.rel (%p566) target = $region72
        $region71: #{tpu_custom_call.1} parent=59 // pred_region
          %p569 = scmp.lt.s32.totalorder %s36, 1
          %s570 = scalar_select %p569, %s36, 1
          %s571 = smul.addr %s570, 8
          %s572 = scalar_lea.vmem %s13, %s571
        $region72: #{tpu_custom_call.1} parent=59 // pred_fallthru
          _
      $region60: #{tpu_custom_call.1} parent=5 // pred_fallthru
        _
      %p573 = scmp.le.s32.totalorder 1, %s36
      %p574 = scmp.lt.s32.totalorder %s36, 3
      %p575 = pnand %p573, %p574
      %p576 = pneg %p575
      // Predicated region
      $region73: #{tpu_custom_call.1} parent=5 // pred_check
        _
      $region74: #{tpu_custom_call.1} parent=5 // pred_check_branch
        %578 = sbr.rel (%p575) target = $region76
      $region75: #{tpu_custom_call.1} parent=5 // pred_region
        %s579 = ssub.s32 %s36, 1
        %s580 = sand.u32 %s49, 1
        %s581 = scalar_lea.sflag [#allocation3], %s580
        %s582 = sand.u32 %s49, 1
        %s583 = smul.addr %s582, 4
        %s584 = scalar_lea.vmem [#allocation2], %s583
        // Predicated region
        $region77: #{tpu_custom_call.1} parent=75 // pred_check
          %p585 = pneg %p62
        $region78: #{tpu_custom_call.1} parent=75 // pred_check_branch
          %587 = sbr.rel (%p585) target = $region80
        $region79: #{tpu_custom_call.1} parent=75 // pred_region
          %588 = dma.done %s581, 64
        $region80: #{tpu_custom_call.1} parent=75 // pred_fallthru
          _
        // Predicated region
        $region81: #{tpu_custom_call.1} parent=75 // pred_check
          %p589 = pneg %p83
        $region82: #{tpu_custom_call.1} parent=75 // pred_check_branch
          %591 = sbr.rel (%p589) target = $region84
        $region83: #{tpu_custom_call.1} parent=75 // pred_region
          %592 = dma.done [#allocation6], 4096
        $region84: #{tpu_custom_call.1} parent=75 // pred_fallthru
          _
        // Predicated region
        $region85: #{tpu_custom_call.1} parent=75 // pred_check
          %p593 = pneg %p104
        $region86: #{tpu_custom_call.1} parent=75 // pred_check_branch
          %595 = sbr.rel (%p593) target = $region88
        $region87: #{tpu_custom_call.1} parent=75 // pred_region
          %596 = dma.done [#allocation6], 128
        $region88: #{tpu_custom_call.1} parent=75 // pred_fallthru
          _
        // Predicated region
        $region89: #{tpu_custom_call.1} parent=75 // pred_check
          %p597 = pneg %p125
        $region90: #{tpu_custom_call.1} parent=75 // pred_check_branch
          %599 = sbr.rel (%p597) target = $region92
        $region91: #{tpu_custom_call.1} parent=75 // pred_region
          %600 = dma.done [#allocation9], 16384
        $region92: #{tpu_custom_call.1} parent=75 // pred_fallthru
          _
        // Predicated region
        $region93: #{tpu_custom_call.1} parent=75 // pred_check
          %p601 = pneg %p146
        $region94: #{tpu_custom_call.1} parent=75 // pred_check_branch
          %603 = sbr.rel (%p601) target = $region96
        $region95: #{tpu_custom_call.1} parent=75 // pred_region
          %604 = dma.done [#allocation9], 64
        $region96: #{tpu_custom_call.1} parent=75 // pred_fallthru
          _
        // Predicated region
        $region97: #{tpu_custom_call.1} parent=75 // pred_check
          %p605 = pneg %p167
        $region98: #{tpu_custom_call.1} parent=75 // pred_check_branch
          %607 = sbr.rel (%p605) target = $region100
        $region99: #{tpu_custom_call.1} parent=75 // pred_region
          %608 = dma.done [#allocation12], 4096
        $region100: #{tpu_custom_call.1} parent=75 // pred_fallthru
          _
        // Predicated region
        $region101: #{tpu_custom_call.1} parent=75 // pred_check
          %p609 = pneg %p188
        $region102: #{tpu_custom_call.1} parent=75 // pred_check_branch
          %611 = sbr.rel (%p609) target = $region104
        $region103: #{tpu_custom_call.1} parent=75 // pred_region
          %612 = dma.done [#allocation12], 16
        $region104: #{tpu_custom_call.1} parent=75 // pred_fallthru
          _
        // Predicated region
        $region105: #{tpu_custom_call.1} parent=75 // pred_check
          %p613 = pneg %p209
        $region106: #{tpu_custom_call.1} parent=75 // pred_check_branch
          %615 = sbr.rel (%p613) target = $region108
        $region107: #{tpu_custom_call.1} parent=75 // pred_region
          %616 = dma.done [#allocation15], 4096
        $region108: #{tpu_custom_call.1} parent=75 // pred_fallthru
          _
        // Predicated region
        $region109: #{tpu_custom_call.1} parent=75 // pred_check
          %p617 = pneg %p230
        $region110: #{tpu_custom_call.1} parent=75 // pred_check_branch
          %619 = sbr.rel (%p617) target = $region112
        $region111: #{tpu_custom_call.1} parent=75 // pred_region
          %620 = dma.done [#allocation15], 16384
        $region112: #{tpu_custom_call.1} parent=75 // pred_fallthru
          _
        // Predicated region
        $region113: #{tpu_custom_call.1} parent=75 // pred_check
          %p621 = pneg %p251
        $region114: #{tpu_custom_call.1} parent=75 // pred_check_branch
          %623 = sbr.rel (%p621) target = $region116
        $region115: #{tpu_custom_call.1} parent=75 // pred_region
          %624 = dma.done [#allocation18], 64
        $region116: #{tpu_custom_call.1} parent=75 // pred_fallthru
          _
        // Predicated region
        $region117: #{tpu_custom_call.1} parent=75 // pred_check
          %p625 = pneg %p272
        $region118: #{tpu_custom_call.1} parent=75 // pred_check_branch
          %627 = sbr.rel (%p625) target = $region120
        $region119: #{tpu_custom_call.1} parent=75 // pred_region
          %628 = dma.done [#allocation18], 8192
        $region120: #{tpu_custom_call.1} parent=75 // pred_fallthru
          _
        %s629 = sand.u32 %s49, 1
        %s630 = scalar_lea.sflag [#allocation3], %s629
        %s631 = sand.u32 %s49, 1
        %s632 = smul.addr %s631, 4
        %s633 = scalar_lea.vmem [#allocation2], %s632
        %p634 = pneg %p62
        %p635 = pneg %p59
        %p636 = pneg %p83
        %p637 = pneg %p80
        %p638 = pneg %p104
        %p639 = pneg %p101
        %p640 = pneg %p125
        %p641 = pneg %p122
        %p642 = pneg %p146
        %p643 = pneg %p143
        %p644 = pneg %p167
        %p645 = pneg %p164
        %p646 = pneg %p188
        %p647 = pneg %p185
        %p648 = pneg %p209
        %p649 = pneg %p206
        %p650 = pneg %p230
        %p651 = pneg %p227
        %p652 = pneg %p251
        %p653 = pneg %p248
        %p654 = pneg %p272
        %p655 = pneg %p269
        %p656 = pneg %p293
        %p657 = pneg %p290
        %p658 = scmp.lt.s32.totalorder %s41, 1
        %s659 = scalar_select %p658, %s41, 1
        %s660 = smul.addr %s659, 8
        %s661 = scalar_lea.vmem %s12, %s660
        %p662 = pneg %p319
        %p663 = pneg %p316
        %p664 = scmp.lt.s32.totalorder %s41, 1
        %s665 = scalar_select %p664, %s41, 1
        %s666 = smul.addr %s665, 8
        %s667 = scalar_lea.vmem %s13, %s666
        %p668 = pneg %p345
        %p669 = pneg %p342
        %p670 = pneg %p371
        %p671 = pneg %p368
        %s672 = sand.u32 %s358, 1
        %s673 = scalar_lea.sflag [#allocation4], %s672
        %s674 = sand.u32 %s358, 1
        %s675 = smul.addr %s674, 12
        %s676 = scalar_lea.vmem [#allocation20], %s675
        %p677 = pneg %p397
        %p678 = pneg %p394
        %s679 = sand.u32 %s384, 1
        %s680 = scalar_lea.sflag [#allocation22], %s679
        %s681 = sand.u32 %s384, 1
        %s682 = smul.addr %s681, 12
        %s683 = scalar_lea.vmem [#allocation21], %s682
        %p684 = scmp.lt.s32.totalorder %s41, 1
        %s685 = scalar_select %p684, %s41, 1
        %s686 = smul.addr %s685, 8
        %s687 = scalar_lea.vmem %s12, %s686
        %p688 = scmp.lt.s32.totalorder %s41, 1
        %s689 = scalar_select %p688, %s41, 1
        %s690 = smul.addr %s689, 8
        %s691 = scalar_lea.vmem %s13, %s690
        %v693 = vld [vmem:[%s584] sm:$0xf]
        %v694 = vld [vmem:[#allocation5] sm:$0xff]
        %v695 = vld [vmem:[#allocation5 + $0x8] sm:$0xff]
        %v696 = vld [vmem:[#allocation5 + $0x10] sm:$0xff]
        %v697 = vld [vmem:[#allocation5 + $0x18] sm:$0xff]
        %v698 = vld [vmem:[#allocation5 + $0x20] sm:$0xff]
        %v699 = vld [vmem:[#allocation5 + $0x28] sm:$0xff]
        %v700 = vld [vmem:[#allocation5 + $0x30] sm:$0xff]
        %v701 = vld [vmem:[#allocation5 + $0x38] sm:$0xff]
        %v702 = vld [vmem:[#allocation5 + $0x40] sm:$0xff]
        %v703 = vld [vmem:[#allocation5 + $0x48] sm:$0xff]
        %v704 = vld [vmem:[#allocation5 + $0x50] sm:$0xff]
        %v705 = vld [vmem:[#allocation5 + $0x58] sm:$0xff]
        %v706 = vld [vmem:[#allocation5 + $0x60] sm:$0xff]
        %v707 = vld [vmem:[#allocation5 + $0x68] sm:$0xff]
        %v708 = vld [vmem:[#allocation5 + $0x70] sm:$0xff]
        %v709 = vld [vmem:[#allocation5 + $0x78] sm:$0xff]
        %v710 = vld [vmem:[#allocation5 + $0x80] sm:$0xff]
        %v711 = vld [vmem:[#allocation5 + $0x88] sm:$0xff]
        %v712 = vld [vmem:[#allocation5 + $0x90] sm:$0xff]
        %v713 = vld [vmem:[#allocation5 + $0x98] sm:$0xff]
        %v714 = vld [vmem:[#allocation5 + $0xa0] sm:$0xff]
        %v715 = vld [vmem:[#allocation5 + $0xa8] sm:$0xff]
        %v716 = vld [vmem:[#allocation5 + $0xb0] sm:$0xff]
        %v717 = vld [vmem:[#allocation5 + $0xb8] sm:$0xff]
        %v718 = vld [vmem:[#allocation5 + $0xc0] sm:$0xff]
        %v719 = vld [vmem:[#allocation5 + $0xc8] sm:$0xff]
        %v720 = vld [vmem:[#allocation5 + $0xd0] sm:$0xff]
        %v721 = vld [vmem:[#allocation5 + $0xd8] sm:$0xff]
        %v722 = vld [vmem:[#allocation5 + $0xe0] sm:$0xff]
        %v723 = vld [vmem:[#allocation5 + $0xe8] sm:$0xff]
        %v724 = vld [vmem:[#allocation5 + $0xf0] sm:$0xff]
        %v725 = vld [vmem:[#allocation5 + $0xf8] sm:$0xff]
        %v726 = vld [vmem:[#allocation7] sm:$0xff]
        %v728 = vlaneseq
        %v729 = vshrl.u32 %v728, 7
        %v730 = vsub.s32 0, %v729
        %v731 = vrot.slane %v726, %v730
        %v732 = vlaneseq
        %v733 = vshrl.u32 %v732, 7
        %v734 = vsub.s32 1, %v733
        %v735 = vrot.slane %v726, %v734
        %v736 = vlaneseq
        %v737 = vshrl.u32 %v736, 7
        %v738 = vsub.s32 2, %v737
        %v739 = vrot.slane %v726, %v738
        %v740 = vlaneseq
        %v741 = vshrl.u32 %v740, 7
        %v742 = vsub.s32 3, %v741
        %v743 = vrot.slane %v726, %v742
        %v744 = vlaneseq
        %v745 = vshrl.u32 %v744, 7
        %v746 = vsub.s32 4, %v745
        %v747 = vrot.slane %v726, %v746
        %v748 = vlaneseq
        %v749 = vshrl.u32 %v748, 7
        %v750 = vsub.s32 5, %v749
        %v751 = vrot.slane %v726, %v750
        %v752 = vlaneseq
        %v753 = vshrl.u32 %v752, 7
        %v754 = vsub.s32 6, %v753
        %v755 = vrot.slane %v726, %v754
        %v756 = vlaneseq
        %v757 = vshrl.u32 %v756, 7
        %v758 = vsub.s32 7, %v757
        %v759 = vrot.slane %v726, %v758
        %v800 = vunpack.c.l.b16 %v694
        %v801 = vunpack.c.h.b16 %v694
        %v802 = vunpack.c.l.b16 %v695
        %v803 = vunpack.c.h.b16 %v695
        %v804 = vunpack.c.l.b16 %v696
        %v805 = vunpack.c.h.b16 %v696
        %v806 = vunpack.c.l.b16 %v697
        %v807 = vunpack.c.h.b16 %v697
        %v808 = vunpack.c.l.b16 %v698
        %v809 = vunpack.c.h.b16 %v698
        %v810 = vunpack.c.l.b16 %v699
        %v811 = vunpack.c.h.b16 %v699
        %v812 = vunpack.c.l.b16 %v700
        %v813 = vunpack.c.h.b16 %v700
        %v814 = vunpack.c.l.b16 %v701
        %v815 = vunpack.c.h.b16 %v701
        %v816 = vunpack.c.l.b16 %v702
        %v817 = vunpack.c.h.b16 %v702
        %v818 = vunpack.c.l.b16 %v703
        %v819 = vunpack.c.h.b16 %v703
        %v820 = vunpack.c.l.b16 %v704
        %v821 = vunpack.c.h.b16 %v704
        %v822 = vunpack.c.l.b16 %v705
        %v823 = vunpack.c.h.b16 %v705
        %v824 = vunpack.c.l.b16 %v706
        %v825 = vunpack.c.h.b16 %v706
        %v826 = vunpack.c.l.b16 %v707
        %v827 = vunpack.c.h.b16 %v707
        %v828 = vunpack.c.l.b16 %v708
        %v829 = vunpack.c.h.b16 %v708
        %v830 = vunpack.c.l.b16 %v709
        %v831 = vunpack.c.h.b16 %v709
        %v832 = vunpack.c.l.b16 %v710
        %v833 = vunpack.c.h.b16 %v710
        %v834 = vunpack.c.l.b16 %v711
        %v835 = vunpack.c.h.b16 %v711
        %v836 = vunpack.c.l.b16 %v712
        %v837 = vunpack.c.h.b16 %v712
        %v838 = vunpack.c.l.b16 %v713
        %v839 = vunpack.c.h.b16 %v713
        %v840 = vunpack.c.l.b16 %v714
        %v841 = vunpack.c.h.b16 %v714
        %v842 = vunpack.c.l.b16 %v715
        %v843 = vunpack.c.h.b16 %v715
        %v844 = vunpack.c.l.b16 %v716
        %v845 = vunpack.c.h.b16 %v716
        %v846 = vunpack.c.l.b16 %v717
        %v847 = vunpack.c.h.b16 %v717
        %v848 = vunpack.c.l.b16 %v718
        %v849 = vunpack.c.h.b16 %v718
        %v850 = vunpack.c.l.b16 %v719
        %v851 = vunpack.c.h.b16 %v719
        %v852 = vunpack.c.l.b16 %v720
        %v853 = vunpack.c.h.b16 %v720
        %v854 = vunpack.c.l.b16 %v721
        %v855 = vunpack.c.h.b16 %v721
        %v856 = vunpack.c.l.b16 %v722
        %v857 = vunpack.c.h.b16 %v722
        %v858 = vunpack.c.l.b16 %v723
        %v859 = vunpack.c.h.b16 %v723
        %v860 = vunpack.c.l.b16 %v724
        %v861 = vunpack.c.h.b16 %v724
        %v862 = vunpack.c.l.b16 %v725
        %v863 = vunpack.c.h.b16 %v725
        %v864 = vpack.c.b16 %v808, %v800
        %v865 = vpack.c.b16 %v809, %v801
        %v866 = vpack.c.b16 %v810, %v802
        %v867 = vpack.c.b16 %v811, %v803
        %v868 = vpack.c.b16 %v812, %v804
        %v869 = vpack.c.b16 %v813, %v805
        %v870 = vpack.c.b16 %v814, %v806
        %v871 = vpack.c.b16 %v815, %v807
        %v872 = vpack.c.b16 %v824, %v816
        %v873 = vpack.c.b16 %v825, %v817
        %v874 = vpack.c.b16 %v826, %v818
        %v875 = vpack.c.b16 %v827, %v819
        %v876 = vpack.c.b16 %v828, %v820
        %v877 = vpack.c.b16 %v829, %v821
        %v878 = vpack.c.b16 %v830, %v822
        %v879 = vpack.c.b16 %v831, %v823
        %v880 = vpack.c.b16 %v840, %v832
        %v881 = vpack.c.b16 %v841, %v833
        %v882 = vpack.c.b16 %v842, %v834
        %v883 = vpack.c.b16 %v843, %v835
        %v884 = vpack.c.b16 %v844, %v836
        %v885 = vpack.c.b16 %v845, %v837
        %v886 = vpack.c.b16 %v846, %v838
        %v887 = vpack.c.b16 %v847, %v839
        %v888 = vpack.c.b16 %v856, %v848
        %v889 = vpack.c.b16 %v857, %v849
        %v890 = vpack.c.b16 %v858, %v850
        %v891 = vpack.c.b16 %v859, %v851
        %v892 = vpack.c.b16 %v860, %v852
        %v893 = vpack.c.b16 %v861, %v853
        %v894 = vpack.c.b16 %v862, %v854
        %v895 = vpack.c.b16 %v863, %v855
        %vm928 = vcmask 523264
        %v930 = vsel %vm928, %v693, 0
        %932 = vmatprep.subr.bf16.mxu0 %v865
        %933 = vmatpush1.bf16.msra.mxu0 %v864
        %934 = vmatprep.subr.bf16.mxu0 %v873
        %935 = vmatpush1.bf16.msra.mxu0 %v872
        %936 = vmatprep.subr.bf16.mxu0 %v881
        %937 = vmatpush1.bf16.msra.mxu0 %v880
        %938 = vmatprep.subr.bf16.mxu0 %v889
        %939 = vmatpush1.bf16.msra.mxu0 %v888
        %940 = vmatprep.subr.bf16.mxu0 0
        %941 = vmatpush1.bf16.msra.mxu0 0
        %942 = vmatprep.subr.bf16.mxu0 0
        %943 = vmatpush1.bf16.msra.mxu0 0
        %944 = vmatprep.subr.bf16.mxu0 0
        %945 = vmatpush1.bf16.msra.mxu0 0
        %946 = vmatprep.subr.bf16.mxu0 0
        %947 = vmatpush1.bf16.msra.mxu0 0
        %948 = vmatprep.subr.bf16.mxu0 0
        %949 = vmatpush1.bf16.msra.mxu0 0
        %950 = vmatprep.subr.bf16.mxu0 0
        %951 = vmatpush1.bf16.msra.mxu0 0
        %952 = vmatprep.subr.bf16.mxu0 0
        %953 = vmatpush1.bf16.msra.mxu0 0
        %954 = vmatprep.subr.bf16.mxu0 0
        %955 = vmatpush1.bf16.msra.mxu0 0
        %956 = vmatprep.subr.bf16.mxu0 0
        %957 = vmatpush1.bf16.msra.mxu0 0
        %958 = vmatprep.subr.bf16.mxu0 0
        %959 = vmatpush1.bf16.msra.mxu0 0
        %960 = vmatprep.subr.bf16.mxu0 0
        %961 = vmatpush1.bf16.msra.mxu0 0
        %962 = vmatprep.subr.bf16.mxu0 0
        %963 = vmatpush1.bf16.msra.mxu0 0
        %964 = vmatprep.mubr.bf16.mxu0 0
        %965 = vmatmul.mubr.bf16.gmra.mrb[0].mxu0 %v930
        %v966 = vpop.f32.mrb[0].mxu0
        %v967 = vadd.f32 %v731, %v966
        %v968 = vpop.f32.mrb[0].mxu0
        %v969 = vadd.f32 %v735, %v968
        %v970 = vpop.f32.mrb[0].mxu0
        %v971 = vpop.f32.mrb[0].mxu0
        %972 = vdwg.mxu0
        %973 = vmatprep.subr.bf16.mxu0 %v867
        %974 = vmatpush1.bf16.msra.mxu0 %v866
        %975 = vmatprep.subr.bf16.mxu0 %v875
        %976 = vmatpush1.bf16.msra.mxu0 %v874
        %977 = vmatprep.subr.bf16.mxu0 %v883
        %978 = vmatpush1.bf16.msra.mxu0 %v882
        %979 = vmatprep.subr.bf16.mxu0 %v891
        %980 = vmatpush1.bf16.msra.mxu0 %v890
        %981 = vmatprep.subr.bf16.mxu0 0
        %982 = vmatpush1.bf16.msra.mxu0 0
        %983 = vmatprep.subr.bf16.mxu0 0
        %984 = vmatpush1.bf16.msra.mxu0 0
        %985 = vmatprep.subr.bf16.mxu0 0
        %986 = vmatpush1.bf16.msra.mxu0 0
        %987 = vmatprep.subr.bf16.mxu0 0
        %988 = vmatpush1.bf16.msra.mxu0 0
        %989 = vmatprep.subr.bf16.mxu0 0
        %990 = vmatpush1.bf16.msra.mxu0 0
        %991 = vmatprep.subr.bf16.mxu0 0
        %992 = vmatpush1.bf16.msra.mxu0 0
        %993 = vmatprep.subr.bf16.mxu0 0
        %994 = vmatpush1.bf16.msra.mxu0 0
        %995 = vmatprep.subr.bf16.mxu0 0
        %996 = vmatpush1.bf16.msra.mxu0 0
        %997 = vmatprep.subr.bf16.mxu0 0
        %998 = vmatpush1.bf16.msra.mxu0 0
        %999 = vmatprep.subr.bf16.mxu0 0
        %1000 = vmatpush1.bf16.msra.mxu0 0
        %1001 = vmatprep.subr.bf16.mxu0 0
        %1002 = vmatpush1.bf16.msra.mxu0 0
        %1003 = vmatprep.subr.bf16.mxu0 0
        %1004 = vmatpush1.bf16.msra.mxu0 0
        %1005 = vmatprep.mubr.bf16.mxu0 0
        %1006 = vmatmul.mubr.bf16.gmra.mrb[0].mxu0 %v930
        %v1007 = vpop.f32.mrb[0].mxu0
        %v1008 = vadd.f32 %v739, %v1007
        %v1009 = vpop.f32.mrb[0].mxu0
        %v1010 = vadd.f32 %v743, %v1009
        %v1011 = vpop.f32.mrb[0].mxu0
        %v1012 = vpop.f32.mrb[0].mxu0
        %1013 = vdwg.mxu0
        %1014 = vmatprep.subr.bf16.mxu0 %v869
        %1015 = vmatpush1.bf16.msra.mxu0 %v868
        %1016 = vmatprep.subr.bf16.mxu0 %v877
        %1017 = vmatpush1.bf16.msra.mxu0 %v876
        %1018 = vmatprep.subr.bf16.mxu0 %v885
        %1019 = vmatpush1.bf16.msra.mxu0 %v884
        %1020 = vmatprep.subr.bf16.mxu0 %v893
        %1021 = vmatpush1.bf16.msra.mxu0 %v892
        %1022 = vmatprep.subr.bf16.mxu0 0
        %1023 = vmatpush1.bf16.msra.mxu0 0
        %1024 = vmatprep.subr.bf16.mxu0 0
        %1025 = vmatpush1.bf16.msra.mxu0 0
        %1026 = vmatprep.subr.bf16.mxu0 0
        %1027 = vmatpush1.bf16.msra.mxu0 0
        %1028 = vmatprep.subr.bf16.mxu0 0
        %1029 = vmatpush1.bf16.msra.mxu0 0
        %1030 = vmatprep.subr.bf16.mxu0 0
        %1031 = vmatpush1.bf16.msra.mxu0 0
        %1032 = vmatprep.subr.bf16.mxu0 0
        %1033 = vmatpush1.bf16.msra.mxu0 0
        %1034 = vmatprep.subr.bf16.mxu0 0
        %1035 = vmatpush1.bf16.msra.mxu0 0
        %1036 = vmatprep.subr.bf16.mxu0 0
        %1037 = vmatpush1.bf16.msra.mxu0 0
        %1038 = vmatprep.subr.bf16.mxu0 0
        %1039 = vmatpush1.bf16.msra.mxu0 0
        %1040 = vmatprep.subr.bf16.mxu0 0
        %1041 = vmatpush1.bf16.msra.mxu0 0
        %1042 = vmatprep.subr.bf16.mxu0 0
        %1043 = vmatpush1.bf16.msra.mxu0 0
        %1044 = vmatprep.subr.bf16.mxu0 0
        %1045 = vmatpush1.bf16.msra.mxu0 0
        %1046 = vmatprep.mubr.bf16.mxu0 0
        %1047 = vmatmul.mubr.bf16.gmra.mrb[0].mxu0 %v930
        %v1048 = vpop.f32.mrb[0].mxu0
        %v1049 = vadd.f32 %v747, %v1048
        %v1050 = vpop.f32.mrb[0].mxu0
        %v1051 = vadd.f32 %v751, %v1050
        %v1052 = vpop.f32.mrb[0].mxu0
        %v1053 = vpop.f32.mrb[0].mxu0
        %1054 = vdwg.mxu0
        %1055 = vmatprep.subr.bf16.mxu0 %v871
        %1056 = vmatpush1.bf16.msra.mxu0 %v870
        %1057 = vmatprep.subr.bf16.mxu0 %v879
        %1058 = vmatpush1.bf16.msra.mxu0 %v878
        %1059 = vmatprep.subr.bf16.mxu0 %v887
        %1060 = vmatpush1.bf16.msra.mxu0 %v886
        %1061 = vmatprep.subr.bf16.mxu0 %v895
        %1062 = vmatpush1.bf16.msra.mxu0 %v894
        %1063 = vmatprep.subr.bf16.mxu0 0
        %1064 = vmatpush1.bf16.msra.mxu0 0
        %1065 = vmatprep.subr.bf16.mxu0 0
        %1066 = vmatpush1.bf16.msra.mxu0 0
        %1067 = vmatprep.subr.bf16.mxu0 0
        %1068 = vmatpush1.bf16.msra.mxu0 0
        %1069 = vmatprep.subr.bf16.mxu0 0
        %1070 = vmatpush1.bf16.msra.mxu0 0
        %1071 = vmatprep.subr.bf16.mxu0 0
        %1072 = vmatpush1.bf16.msra.mxu0 0
        %1073 = vmatprep.subr.bf16.mxu0 0
        %1074 = vmatpush1.bf16.msra.mxu0 0
        %1075 = vmatprep.subr.bf16.mxu0 0
        %1076 = vmatpush1.bf16.msra.mxu0 0
        %1077 = vmatprep.subr.bf16.mxu0 0
        %1078 = vmatpush1.bf16.msra.mxu0 0
        %1079 = vmatprep.subr.bf16.mxu0 0
        %1080 = vmatpush1.bf16.msra.mxu0 0
        %1081 = vmatprep.subr.bf16.mxu0 0
        %1082 = vmatpush1.bf16.msra.mxu0 0
        %1083 = vmatprep.subr.bf16.mxu0 0
        %1084 = vmatpush1.bf16.msra.mxu0 0
        %1085 = vmatprep.subr.bf16.mxu0 0
        %1086 = vmatpush1.bf16.msra.mxu0 0
        %1087 = vmatprep.mubr.bf16.mxu0 0
        %1088 = vmatmul.mubr.bf16.gmra.mrb[0].mxu0 %v930
        %v1089 = vpop.f32.mrb[0].mxu0
        %v1090 = vadd.f32 %v755, %v1089
        %v1091 = vpop.f32.mrb[0].mxu0
        %v1092 = vadd.f32 %v759, %v1091
        %v1093 = vpop.f32.mrb[0].mxu0
        %v1094 = vpop.f32.mrb[0].mxu0
        %1095 = vdwg.mxu0
        %v1096 = vmax.f32 %v967, 0.0
        %v1097 = vmax.f32 %v969, 0.0
        %v1098 = vmax.f32 %v1008, 0.0
        %v1099 = vmax.f32 %v1010, 0.0
        %v1100 = vpack.c.bf16 %v1096, %v1096
        %v1101 = vpack.c.bf16 %v1097, %v1097
        %v1102 = vpack.c.bf16 %v1098, %v1098
        %v1103 = vpack.c.bf16 %v1099, %v1099
        %v1104 = vld [vmem:[#allocation8] sm:$0xff]
        %v1105 = vld [vmem:[#allocation8 + $0x8] sm:$0xff]
        %v1106 = vld [vmem:[#allocation8 + $0x10] sm:$0xff]
        %v1107 = vld [vmem:[#allocation8 + $0x18] sm:$0xff]
        %v1108 = vld [vmem:[#allocation8 + $0x20] sm:$0xff]
        %v1109 = vld [vmem:[#allocation8 + $0x28] sm:$0xff]
        %v1110 = vld [vmem:[#allocation8 + $0x30] sm:$0xff]
        %v1111 = vld [vmem:[#allocation8 + $0x38] sm:$0xff]
        %v1112 = vld [vmem:[#allocation8 + $0x40] sm:$0xff]
        %v1113 = vld [vmem:[#allocation8 + $0x48] sm:$0xff]
        %v1114 = vld [vmem:[#allocation8 + $0x50] sm:$0xff]
        %v1115 = vld [vmem:[#allocation8 + $0x58] sm:$0xff]
        %v1116 = vld [vmem:[#allocation8 + $0x60] sm:$0xff]
        %v1117 = vld [vmem:[#allocation8 + $0x68] sm:$0xff]
        %v1118 = vld [vmem:[#allocation8 + $0x70] sm:$0xff]
        %v1119 = vld [vmem:[#allocation8 + $0x78] sm:$0xff]
        %v1120 = vld [vmem:[#allocation8 + $0x80] sm:$0xff]
        %v1121 = vld [vmem:[#allocation8 + $0x88] sm:$0xff]
        %v1122 = vld [vmem:[#allocation8 + $0x90] sm:$0xff]
        %v1123 = vld [vmem:[#allocation8 + $0x98] sm:$0xff]
        %v1124 = vld [vmem:[#allocation8 + $0xa0] sm:$0xff]
        %v1125 = vld [vmem:[#allocation8 + $0xa8] sm:$0xff]
        %v1126 = vld [vmem:[#allocation8 + $0xb0] sm:$0xff]
        %v1127 = vld [vmem:[#allocation8 + $0xb8] sm:$0xff]
        %v1128 = vld [vmem:[#allocation8 + $0xc0] sm:$0xff]
        %v1129 = vld [vmem:[#allocation8 + $0xc8] sm:$0xff]
        %v1130 = vld [vmem:[#allocation8 + $0xd0] sm:$0xff]
        %v1131 = vld [vmem:[#allocation8 + $0xd8] sm:$0xff]
        %v1132 = vld [vmem:[#allocation8 + $0xe0] sm:$0xff]
        %v1133 = vld [vmem:[#allocation8 + $0xe8] sm:$0xff]
        %v1134 = vld [vmem:[#allocation8 + $0xf0] sm:$0xff]
        %v1135 = vld [vmem:[#allocation8 + $0xf8] sm:$0xff]
        %v1136 = vld [vmem:[#allocation8 + $0x100] sm:$0xff]
        %v1137 = vld [vmem:[#allocation8 + $0x108] sm:$0xff]
        %v1138 = vld [vmem:[#allocation8 + $0x110] sm:$0xff]
        %v1139 = vld [vmem:[#allocation8 + $0x118] sm:$0xff]
        %v1140 = vld [vmem:[#allocation8 + $0x120] sm:$0xff]
        %v1141 = vld [vmem:[#allocation8 + $0x128] sm:$0xff]
        %v1142 = vld [vmem:[#allocation8 + $0x130] sm:$0xff]
        %v1143 = vld [vmem:[#allocation8 + $0x138] sm:$0xff]
        %v1144 = vld [vmem:[#allocation8 + $0x140] sm:$0xff]
        %v1145 = vld [vmem:[#allocation8 + $0x148] sm:$0xff]
        %v1146 = vld [vmem:[#allocation8 + $0x150] sm:$0xff]
        %v1147 = vld [vmem:[#allocation8 + $0x158] sm:$0xff]
        %v1148 = vld [vmem:[#allocation8 + $0x160] sm:$0xff]
        %v1149 = vld [vmem:[#allocation8 + $0x168] sm:$0xff]
        %v1150 = vld [vmem:[#allocation8 + $0x170] sm:$0xff]
        %v1151 = vld [vmem:[#allocation8 + $0x178] sm:$0xff]
        %v1152 = vld [vmem:[#allocation8 + $0x180] sm:$0xff]
        %v1153 = vld [vmem:[#allocation8 + $0x188] sm:$0xff]
        %v1154 = vld [vmem:[#allocation8 + $0x190] sm:$0xff]
        %v1155 = vld [vmem:[#allocation8 + $0x198] sm:$0xff]
        %v1156 = vld [vmem:[#allocation8 + $0x1a0] sm:$0xff]
        %v1157 = vld [vmem:[#allocation8 + $0x1a8] sm:$0xff]
        %v1158 = vld [vmem:[#allocation8 + $0x1b0] sm:$0xff]
        %v1159 = vld [vmem:[#allocation8 + $0x1b8] sm:$0xff]
        %v1160 = vld [vmem:[#allocation8 + $0x1c0] sm:$0xff]
        %v1161 = vld [vmem:[#allocation8 + $0x1c8] sm:$0xff]
        %v1162 = vld [vmem:[#allocation8 + $0x1d0] sm:$0xff]
        %v1163 = vld [vmem:[#allocation8 + $0x1d8] sm:$0xff]
        %v1164 = vld [vmem:[#allocation8 + $0x1e0] sm:$0xff]
        %v1165 = vld [vmem:[#allocation8 + $0x1e8] sm:$0xff]
        %v1166 = vld [vmem:[#allocation8 + $0x1f0] sm:$0xff]
        %v1167 = vld [vmem:[#allocation8 + $0x1f8] sm:$0xff]
        %v1168 = vld [vmem:[#allocation8 + $0x200] sm:$0xff]
        %v1169 = vld [vmem:[#allocation8 + $0x208] sm:$0xff]
        %v1170 = vld [vmem:[#allocation8 + $0x210] sm:$0xff]
        %v1171 = vld [vmem:[#allocation8 + $0x218] sm:$0xff]
        %v1172 = vld [vmem:[#allocation8 + $0x220] sm:$0xff]
        %v1173 = vld [vmem:[#allocation8 + $0x228] sm:$0xff]
        %v1174 = vld [vmem:[#allocation8 + $0x230] sm:$0xff]
        %v1175 = vld [vmem:[#allocation8 + $0x238] sm:$0xff]
        %v1176 = vld [vmem:[#allocation8 + $0x240] sm:$0xff]
        %v1177 = vld [vmem:[#allocation8 + $0x248] sm:$0xff]
        %v1178 = vld [vmem:[#allocation8 + $0x250] sm:$0xff]
        %v1179 = vld [vmem:[#allocation8 + $0x258] sm:$0xff]
        %v1180 = vld [vmem:[#allocation8 + $0x260] sm:$0xff]
        %v1181 = vld [vmem:[#allocation8 + $0x268] sm:$0xff]
        %v1182 = vld [vmem:[#allocation8 + $0x270] sm:$0xff]
        %v1183 = vld [vmem:[#allocation8 + $0x278] sm:$0xff]
        %v1184 = vld [vmem:[#allocation8 + $0x280] sm:$0xff]
        %v1185 = vld [vmem:[#allocation8 + $0x288] sm:$0xff]
        %v1186 = vld [vmem:[#allocation8 + $0x290] sm:$0xff]
        %v1187 = vld [vmem:[#allocation8 + $0x298] sm:$0xff]
        %v1188 = vld [vmem:[#allocation8 + $0x2a0] sm:$0xff]
        %v1189 = vld [vmem:[#allocation8 + $0x2a8] sm:$0xff]
        %v1190 = vld [vmem:[#allocation8 + $0x2b0] sm:$0xff]
        %v1191 = vld [vmem:[#allocation8 + $0x2b8] sm:$0xff]
        %v1192 = vld [vmem:[#allocation8 + $0x2c0] sm:$0xff]
        %v1193 = vld [vmem:[#allocation8 + $0x2c8] sm:$0xff]
        %v1194 = vld [vmem:[#allocation8 + $0x2d0] sm:$0xff]
        %v1195 = vld [vmem:[#allocation8 + $0x2d8] sm:$0xff]
        %v1196 = vld [vmem:[#allocation8 + $0x2e0] sm:$0xff]
        %v1197 = vld [vmem:[#allocation8 + $0x2e8] sm:$0xff]
        %v1198 = vld [vmem:[#allocation8 + $0x2f0] sm:$0xff]
        %v1199 = vld [vmem:[#allocation8 + $0x2f8] sm:$0xff]
        %v1200 = vld [vmem:[#allocation8 + $0x300] sm:$0xff]
        %v1201 = vld [vmem:[#allocation8 + $0x308] sm:$0xff]
        %v1202 = vld [vmem:[#allocation8 + $0x310] sm:$0xff]
        %v1203 = vld [vmem:[#allocation8 + $0x318] sm:$0xff]
        %v1204 = vld [vmem:[#allocation8 + $0x320] sm:$0xff]
        %v1205 = vld [vmem:[#allocation8 + $0x328] sm:$0xff]
        %v1206 = vld [vmem:[#allocation8 + $0x330] sm:$0xff]
        %v1207 = vld [vmem:[#allocation8 + $0x338] sm:$0xff]
        %v1208 = vld [vmem:[#allocation8 + $0x340] sm:$0xff]
        %v1209 = vld [vmem:[#allocation8 + $0x348] sm:$0xff]
        %v1210 = vld [vmem:[#allocation8 + $0x350] sm:$0xff]
        %v1211 = vld [vmem:[#allocation8 + $0x358] sm:$0xff]
        %v1212 = vld [vmem:[#allocation8 + $0x360] sm:$0xff]
        %v1213 = vld [vmem:[#allocation8 + $0x368] sm:$0xff]
        %v1214 = vld [vmem:[#allocation8 + $0x370] sm:$0xff]
        %v1215 = vld [vmem:[#allocation8 + $0x378] sm:$0xff]
        %v1216 = vld [vmem:[#allocation8 + $0x380] sm:$0xff]
        %v1217 = vld [vmem:[#allocation8 + $0x388] sm:$0xff]
        %v1218 = vld [vmem:[#allocation8 + $0x390] sm:$0xff]
        %v1219 = vld [vmem:[#allocation8 + $0x398] sm:$0xff]
        %v1220 = vld [vmem:[#allocation8 + $0x3a0] sm:$0xff]
        %v1221 = vld [vmem:[#allocation8 + $0x3a8] sm:$0xff]
        %v1222 = vld [vmem:[#allocation8 + $0x3b0] sm:$0xff]
        %v1223 = vld [vmem:[#allocation8 + $0x3b8] sm:$0xff]
        %v1224 = vld [vmem:[#allocation8 + $0x3c0] sm:$0xff]
        %v1225 = vld [vmem:[#allocation8 + $0x3c8] sm:$0xff]
        %v1226 = vld [vmem:[#allocation8 + $0x3d0] sm:$0xff]
        %v1227 = vld [vmem:[#allocation8 + $0x3d8] sm:$0xff]
        %v1228 = vld [vmem:[#allocation8 + $0x3e0] sm:$0xff]
        %v1229 = vld [vmem:[#allocation8 + $0x3e8] sm:$0xff]
        %v1230 = vld [vmem:[#allocation8 + $0x3f0] sm:$0xff]
        %v1231 = vld [vmem:[#allocation8 + $0x3f8] sm:$0xff]
        %v1232 = vld [vmem:[#allocation10] sm:$0xf]
        %v1234 = vlaneseq
        %v1235 = vshrl.u32 %v1234, 7
        %v1236 = vsub.s32 0, %v1235
        %v1237 = vrot.slane %v1232, %v1236
        %v1238 = vlaneseq
        %v1239 = vshrl.u32 %v1238, 7
        %v1240 = vsub.s32 1, %v1239
        %v1241 = vrot.slane %v1232, %v1240
        %v1242 = vlaneseq
        %v1243 = vshrl.u32 %v1242, 7
        %v1244 = vsub.s32 2, %v1243
        %v1245 = vrot.slane %v1232, %v1244
        %v1246 = vlaneseq
        %v1247 = vshrl.u32 %v1246, 7
        %v1248 = vsub.s32 3, %v1247
        %v1249 = vrot.slane %v1232, %v1248
        %v1382 = vunpack.c.l.b16 %v1104
        %v1383 = vunpack.c.h.b16 %v1104
        %v1384 = vunpack.c.l.b16 %v1105
        %v1385 = vunpack.c.h.b16 %v1105
        %v1386 = vunpack.c.l.b16 %v1106
        %v1387 = vunpack.c.h.b16 %v1106
        %v1388 = vunpack.c.l.b16 %v1107
        %v1389 = vunpack.c.h.b16 %v1107
        %v1390 = vunpack.c.l.b16 %v1108
        %v1391 = vunpack.c.h.b16 %v1108
        %v1392 = vunpack.c.l.b16 %v1109
        %v1393 = vunpack.c.h.b16 %v1109
        %v1394 = vunpack.c.l.b16 %v1110
        %v1395 = vunpack.c.h.b16 %v1110
        %v1396 = vunpack.c.l.b16 %v1111
        %v1397 = vunpack.c.h.b16 %v1111
        %v1398 = vunpack.c.l.b16 %v1112
        %v1399 = vunpack.c.h.b16 %v1112
        %v1400 = vunpack.c.l.b16 %v1113
        %v1401 = vunpack.c.h.b16 %v1113
        %v1402 = vunpack.c.l.b16 %v1114
        %v1403 = vunpack.c.h.b16 %v1114
        %v1404 = vunpack.c.l.b16 %v1115
        %v1405 = vunpack.c.h.b16 %v1115
        %v1406 = vunpack.c.l.b16 %v1116
        %v1407 = vunpack.c.h.b16 %v1116
        %v1408 = vunpack.c.l.b16 %v1117
        %v1409 = vunpack.c.h.b16 %v1117
        %v1410 = vunpack.c.l.b16 %v1118
        %v1411 = vunpack.c.h.b16 %v1118
        %v1412 = vunpack.c.l.b16 %v1119
        %v1413 = vunpack.c.h.b16 %v1119
        %v1414 = vunpack.c.l.b16 %v1120
        %v1415 = vunpack.c.h.b16 %v1120
        %v1416 = vunpack.c.l.b16 %v1121
        %v1417 = vunpack.c.h.b16 %v1121
        %v1418 = vunpack.c.l.b16 %v1122
        %v1419 = vunpack.c.h.b16 %v1122
        %v1420 = vunpack.c.l.b16 %v1123
        %v1421 = vunpack.c.h.b16 %v1123
        %v1422 = vunpack.c.l.b16 %v1124
        %v1423 = vunpack.c.h.b16 %v1124
        %v1424 = vunpack.c.l.b16 %v1125
        %v1425 = vunpack.c.h.b16 %v1125
        %v1426 = vunpack.c.l.b16 %v1126
        %v1427 = vunpack.c.h.b16 %v1126
        %v1428 = vunpack.c.l.b16 %v1127
        %v1429 = vunpack.c.h.b16 %v1127
        %v1430 = vunpack.c.l.b16 %v1128
        %v1431 = vunpack.c.h.b16 %v1128
        %v1432 = vunpack.c.l.b16 %v1129
        %v1433 = vunpack.c.h.b16 %v1129
        %v1434 = vunpack.c.l.b16 %v1130
        %v1435 = vunpack.c.h.b16 %v1130
        %v1436 = vunpack.c.l.b16 %v1131
        %v1437 = vunpack.c.h.b16 %v1131
        %v1438 = vunpack.c.l.b16 %v1132
        %v1439 = vunpack.c.h.b16 %v1132
        %v1440 = vunpack.c.l.b16 %v1133
        %v1441 = vunpack.c.h.b16 %v1133
        %v1442 = vunpack.c.l.b16 %v1134
        %v1443 = vunpack.c.h.b16 %v1134
        %v1444 = vunpack.c.l.b16 %v1135
        %v1445 = vunpack.c.h.b16 %v1135
        %v1446 = vunpack.c.l.b16 %v1136
        %v1447 = vunpack.c.h.b16 %v1136
        %v1448 = vunpack.c.l.b16 %v1137
        %v1449 = vunpack.c.h.b16 %v1137
        %v1450 = vunpack.c.l.b16 %v1138
        %v1451 = vunpack.c.h.b16 %v1138
        %v1452 = vunpack.c.l.b16 %v1139
        %v1453 = vunpack.c.h.b16 %v1139
        %v1454 = vunpack.c.l.b16 %v1140
        %v1455 = vunpack.c.h.b16 %v1140
        %v1456 = vunpack.c.l.b16 %v1141
        %v1457 = vunpack.c.h.b16 %v1141
        %v1458 = vunpack.c.l.b16 %v1142
        %v1459 = vunpack.c.h.b16 %v1142
        %v1460 = vunpack.c.l.b16 %v1143
        %v1461 = vunpack.c.h.b16 %v1143
        %v1462 = vunpack.c.l.b16 %v1144
        %v1463 = vunpack.c.h.b16 %v1144
        %v1464 = vunpack.c.l.b16 %v1145
        %v1465 = vunpack.c.h.b16 %v1145
        %v1466 = vunpack.c.l.b16 %v1146
        %v1467 = vunpack.c.h.b16 %v1146
        %v1468 = vunpack.c.l.b16 %v1147
        %v1469 = vunpack.c.h.b16 %v1147
        %v1470 = vunpack.c.l.b16 %v1148
        %v1471 = vunpack.c.h.b16 %v1148
        %v1472 = vunpack.c.l.b16 %v1149
        %v1473 = vunpack.c.h.b16 %v1149
        %v1474 = vunpack.c.l.b16 %v1150
        %v1475 = vunpack.c.h.b16 %v1150
        %v1476 = vunpack.c.l.b16 %v1151
        %v1477 = vunpack.c.h.b16 %v1151
        %v1478 = vunpack.c.l.b16 %v1152
        %v1479 = vunpack.c.h.b16 %v1152
        %v1480 = vunpack.c.l.b16 %v1153
        %v1481 = vunpack.c.h.b16 %v1153
        %v1482 = vunpack.c.l.b16 %v1154
        %v1483 = vunpack.c.h.b16 %v1154
        %v1484 = vunpack.c.l.b16 %v1155
        %v1485 = vunpack.c.h.b16 %v1155
        %v1486 = vunpack.c.l.b16 %v1156
        %v1487 = vunpack.c.h.b16 %v1156
        %v1488 = vunpack.c.l.b16 %v1157
        %v1489 = vunpack.c.h.b16 %v1157
        %v1490 = vunpack.c.l.b16 %v1158
        %v1491 = vunpack.c.h.b16 %v1158
        %v1492 = vunpack.c.l.b16 %v1159
        %v1493 = vunpack.c.h.b16 %v1159
        %v1494 = vunpack.c.l.b16 %v1160
        %v1495 = vunpack.c.h.b16 %v1160
        %v1496 = vunpack.c.l.b16 %v1161
        %v1497 = vunpack.c.h.b16 %v1161
        %v1498 = vunpack.c.l.b16 %v1162
        %v1499 = vunpack.c.h.b16 %v1162
        %v1500 = vunpack.c.l.b16 %v1163
        %v1501 = vunpack.c.h.b16 %v1163
        %v1502 = vunpack.c.l.b16 %v1164
        %v1503 = vunpack.c.h.b16 %v1164
        %v1504 = vunpack.c.l.b16 %v1165
        %v1505 = vunpack.c.h.b16 %v1165
        %v1506 = vunpack.c.l.b16 %v1166
        %v1507 = vunpack.c.h.b16 %v1166
        %v1508 = vunpack.c.l.b16 %v1167
        %v1509 = vunpack.c.h.b16 %v1167
        %v1510 = vunpack.c.l.b16 %v1168
        %v1511 = vunpack.c.h.b16 %v1168
        %v1512 = vunpack.c.l.b16 %v1169
        %v1513 = vunpack.c.h.b16 %v1169
        %v1514 = vunpack.c.l.b16 %v1170
        %v1515 = vunpack.c.h.b16 %v1170
        %v1516 = vunpack.c.l.b16 %v1171
        %v1517 = vunpack.c.h.b16 %v1171
        %v1518 = vunpack.c.l.b16 %v1172
        %v1519 = vunpack.c.h.b16 %v1172
        %v1520 = vunpack.c.l.b16 %v1173
        %v1521 = vunpack.c.h.b16 %v1173
        %v1522 = vunpack.c.l.b16 %v1174
        %v1523 = vunpack.c.h.b16 %v1174
        %v1524 = vunpack.c.l.b16 %v1175
        %v1525 = vunpack.c.h.b16 %v1175
        %v1526 = vunpack.c.l.b16 %v1176
        %v1527 = vunpack.c.h.b16 %v1176
        %v1528 = vunpack.c.l.b16 %v1177
        %v1529 = vunpack.c.h.b16 %v1177
        %v1530 = vunpack.c.l.b16 %v1178
        %v1531 = vunpack.c.h.b16 %v1178
        %v1532 = vunpack.c.l.b16 %v1179
        %v1533 = vunpack.c.h.b16 %v1179
        %v1534 = vunpack.c.l.b16 %v1180
        %v1535 = vunpack.c.h.b16 %v1180
        %v1536 = vunpack.c.l.b16 %v1181
        %v1537 = vunpack.c.h.b16 %v1181
        %v1538 = vunpack.c.l.b16 %v1182
        %v1539 = vunpack.c.h.b16 %v1182
        %v1540 = vunpack.c.l.b16 %v1183
        %v1541 = vunpack.c.h.b16 %v1183
        %v1542 = vunpack.c.l.b16 %v1184
        %v1543 = vunpack.c.h.b16 %v1184
        %v1544 = vunpack.c.l.b16 %v1185
        %v1545 = vunpack.c.h.b16 %v1185
        %v1546 = vunpack.c.l.b16 %v1186
        %v1547 = vunpack.c.h.b16 %v1186
        %v1548 = vunpack.c.l.b16 %v1187
        %v1549 = vunpack.c.h.b16 %v1187
        %v1550 = vunpack.c.l.b16 %v1188
        %v1551 = vunpack.c.h.b16 %v1188
        %v1552 = vunpack.c.l.b16 %v1189
        %v1553 = vunpack.c.h.b16 %v1189
        %v1554 = vunpack.c.l.b16 %v1190
        %v1555 = vunpack.c.h.b16 %v1190
        %v1556 = vunpack.c.l.b16 %v1191
        %v1557 = vunpack.c.h.b16 %v1191
        %v1558 = vunpack.c.l.b16 %v1192
        %v1559 = vunpack.c.h.b16 %v1192
        %v1560 = vunpack.c.l.b16 %v1193
        %v1561 = vunpack.c.h.b16 %v1193
        %v1562 = vunpack.c.l.b16 %v1194
        %v1563 = vunpack.c.h.b16 %v1194
        %v1564 = vunpack.c.l.b16 %v1195
        %v1565 = vunpack.c.h.b16 %v1195
        %v1566 = vunpack.c.l.b16 %v1196
        %v1567 = vunpack.c.h.b16 %v1196
        %v1568 = vunpack.c.l.b16 %v1197
        %v1569 = vunpack.c.h.b16 %v1197
        %v1570 = vunpack.c.l.b16 %v1198
        %v1571 = vunpack.c.h.b16 %v1198
        %v1572 = vunpack.c.l.b16 %v1199
        %v1573 = vunpack.c.h.b16 %v1199
        %v1574 = vunpack.c.l.b16 %v1200
        %v1575 = vunpack.c.h.b16 %v1200
        %v1576 = vunpack.c.l.b16 %v1201
        %v1577 = vunpack.c.h.b16 %v1201
        %v1578 = vunpack.c.l.b16 %v1202
        %v1579 = vunpack.c.h.b16 %v1202
        %v1580 = vunpack.c.l.b16 %v1203
        %v1581 = vunpack.c.h.b16 %v1203
        %v1582 = vunpack.c.l.b16 %v1204
        %v1583 = vunpack.c.h.b16 %v1204
        %v1584 = vunpack.c.l.b16 %v1205
        %v1585 = vunpack.c.h.b16 %v1205
        %v1586 = vunpack.c.l.b16 %v1206
        %v1587 = vunpack.c.h.b16 %v1206
        %v1588 = vunpack.c.l.b16 %v1207
        %v1589 = vunpack.c.h.b16 %v1207
        %v1590 = vunpack.c.l.b16 %v1208
        %v1591 = vunpack.c.h.b16 %v1208
        %v1592 = vunpack.c.l.b16 %v1209
        %v1593 = vunpack.c.h.b16 %v1209
        %v1594 = vunpack.c.l.b16 %v1210
        %v1595 = vunpack.c.h.b16 %v1210
        %v1596 = vunpack.c.l.b16 %v1211
        %v1597 = vunpack.c.h.b16 %v1211
        %v1598 = vunpack.c.l.b16 %v1212
        %v1599 = vunpack.c.h.b16 %v1212
        %v1600 = vunpack.c.l.b16 %v1213
        %v1601 = vunpack.c.h.b16 %v1213
        %v1602 = vunpack.c.l.b16 %v1214
        %v1603 = vunpack.c.h.b16 %v1214
        %v1604 = vunpack.c.l.b16 %v1215
        %v1605 = vunpack.c.h.b16 %v1215
        %v1606 = vunpack.c.l.b16 %v1216
        %v1607 = vunpack.c.h.b16 %v1216
        %v1608 = vunpack.c.l.b16 %v1217
        %v1609 = vunpack.c.h.b16 %v1217
        %v1610 = vunpack.c.l.b16 %v1218
        %v1611 = vunpack.c.h.b16 %v1218
        %v1612 = vunpack.c.l.b16 %v1219
        %v1613 = vunpack.c.h.b16 %v1219
        %v1614 = vunpack.c.l.b16 %v1220
        %v1615 = vunpack.c.h.b16 %v1220
        %v1616 = vunpack.c.l.b16 %v1221
        %v1617 = vunpack.c.h.b16 %v1221
        %v1618 = vunpack.c.l.b16 %v1222
        %v1619 = vunpack.c.h.b16 %v1222
        %v1620 = vunpack.c.l.b16 %v1223
        %v1621 = vunpack.c.h.b16 %v1223
        %v1622 = vunpack.c.l.b16 %v1224
        %v1623 = vunpack.c.h.b16 %v1224
        %v1624 = vunpack.c.l.b16 %v1225
        %v1625 = vunpack.c.h.b16 %v1225
        %v1626 = vunpack.c.l.b16 %v1226
        %v1627 = vunpack.c.h.b16 %v1226
        %v1628 = vunpack.c.l.b16 %v1227
        %v1629 = vunpack.c.h.b16 %v1227
        %v1630 = vunpack.c.l.b16 %v1228
        %v1631 = vunpack.c.h.b16 %v1228
        %v1632 = vunpack.c.l.b16 %v1229
        %v1633 = vunpack.c.h.b16 %v1229
        %v1634 = vunpack.c.l.b16 %v1230
        %v1635 = vunpack.c.h.b16 %v1230
        %v1636 = vunpack.c.l.b16 %v1231
        %v1637 = vunpack.c.h.b16 %v1231
        %v1638 = vpack.c.b16 %v1386, %v1382
        %v1639 = vpack.c.b16 %v1387, %v1383
        %v1640 = vpack.c.b16 %v1388, %v1384
        %v1641 = vpack.c.b16 %v1389, %v1385
        %v1642 = vpack.c.b16 %v1394, %v1390
        %v1643 = vpack.c.b16 %v1395, %v1391
        %v1644 = vpack.c.b16 %v1396, %v1392
        %v1645 = vpack.c.b16 %v1397, %v1393
        %v1646 = vpack.c.b16 %v1402, %v1398
        %v1647 = vpack.c.b16 %v1403, %v1399
        %v1648 = vpack.c.b16 %v1404, %v1400
        %v1649 = vpack.c.b16 %v1405, %v1401
        %v1650 = vpack.c.b16 %v1410, %v1406
        %v1651 = vpack.c.b16 %v1411, %v1407
        %v1652 = vpack.c.b16 %v1412, %v1408
        %v1653 = vpack.c.b16 %v1413, %v1409
        %v1654 = vpack.c.b16 %v1418, %v1414
        %v1655 = vpack.c.b16 %v1419, %v1415
        %v1656 = vpack.c.b16 %v1420, %v1416
        %v1657 = vpack.c.b16 %v1421, %v1417
        %v1658 = vpack.c.b16 %v1426, %v1422
        %v1659 = vpack.c.b16 %v1427, %v1423
        %v1660 = vpack.c.b16 %v1428, %v1424
        %v1661 = vpack.c.b16 %v1429, %v1425
        %v1662 = vpack.c.b16 %v1434, %v1430
        %v1663 = vpack.c.b16 %v1435, %v1431
        %v1664 = vpack.c.b16 %v1436, %v1432
        %v1665 = vpack.c.b16 %v1437, %v1433
        %v1666 = vpack.c.b16 %v1442, %v1438
        %v1667 = vpack.c.b16 %v1443, %v1439
        %v1668 = vpack.c.b16 %v1444, %v1440
        %v1669 = vpack.c.b16 %v1445, %v1441
        %v1670 = vpack.c.b16 %v1450, %v1446
        %v1671 = vpack.c.b16 %v1451, %v1447
        %v1672 = vpack.c.b16 %v1452, %v1448
        %v1673 = vpack.c.b16 %v1453, %v1449
        %v1674 = vpack.c.b16 %v1458, %v1454
        %v1675 = vpack.c.b16 %v1459, %v1455
        %v1676 = vpack.c.b16 %v1460, %v1456
        %v1677 = vpack.c.b16 %v1461, %v1457
        %v1678 = vpack.c.b16 %v1466, %v1462
        %v1679 = vpack.c.b16 %v1467, %v1463
        %v1680 = vpack.c.b16 %v1468, %v1464
        %v1681 = vpack.c.b16 %v1469, %v1465
        %v1682 = vpack.c.b16 %v1474, %v1470
        %v1683 = vpack.c.b16 %v1475, %v1471
        %v1684 = vpack.c.b16 %v1476, %v1472
        %v1685 = vpack.c.b16 %v1477, %v1473
        %v1686 = vpack.c.b16 %v1482, %v1478
        %v1687 = vpack.c.b16 %v1483, %v1479
        %v1688 = vpack.c.b16 %v1484, %v1480
        %v1689 = vpack.c.b16 %v1485, %v1481
        %v1690 = vpack.c.b16 %v1490, %v1486
        %v1691 = vpack.c.b16 %v1491, %v1487
        %v1692 = vpack.c.b16 %v1492, %v1488
        %v1693 = vpack.c.b16 %v1493, %v1489
        %v1694 = vpack.c.b16 %v1498, %v1494
        %v1695 = vpack.c.b16 %v1499, %v1495
        %v1696 = vpack.c.b16 %v1500, %v1496
        %v1697 = vpack.c.b16 %v1501, %v1497
        %v1698 = vpack.c.b16 %v1506, %v1502
        %v1699 = vpack.c.b16 %v1507, %v1503
        %v1700 = vpack.c.b16 %v1508, %v1504
        %v1701 = vpack.c.b16 %v1509, %v1505
        %v1702 = vpack.c.b16 %v1514, %v1510
        %v1703 = vpack.c.b16 %v1515, %v1511
        %v1704 = vpack.c.b16 %v1516, %v1512
        %v1705 = vpack.c.b16 %v1517, %v1513
        %v1706 = vpack.c.b16 %v1522, %v1518
        %v1707 = vpack.c.b16 %v1523, %v1519
        %v1708 = vpack.c.b16 %v1524, %v1520
        %v1709 = vpack.c.b16 %v1525, %v1521
        %v1710 = vpack.c.b16 %v1530, %v1526
        %v1711 = vpack.c.b16 %v1531, %v1527
        %v1712 = vpack.c.b16 %v1532, %v1528
        %v1713 = vpack.c.b16 %v1533, %v1529
        %v1714 = vpack.c.b16 %v1538, %v1534
        %v1715 = vpack.c.b16 %v1539, %v1535
        %v1716 = vpack.c.b16 %v1540, %v1536
        %v1717 = vpack.c.b16 %v1541, %v1537
        %v1718 = vpack.c.b16 %v1546, %v1542
        %v1719 = vpack.c.b16 %v1547, %v1543
        %v1720 = vpack.c.b16 %v1548, %v1544
        %v1721 = vpack.c.b16 %v1549, %v1545
        %v1722 = vpack.c.b16 %v1554, %v1550
        %v1723 = vpack.c.b16 %v1555, %v1551
        %v1724 = vpack.c.b16 %v1556, %v1552
        %v1725 = vpack.c.b16 %v1557, %v1553
        %v1726 = vpack.c.b16 %v1562, %v1558
        %v1727 = vpack.c.b16 %v1563, %v1559
        %v1728 = vpack.c.b16 %v1564, %v1560
        %v1729 = vpack.c.b16 %v1565, %v1561
        %v1730 = vpack.c.b16 %v1570, %v1566
        %v1731 = vpack.c.b16 %v1571, %v1567
        %v1732 = vpack.c.b16 %v1572, %v1568
        %v1733 = vpack.c.b16 %v1573, %v1569
        %v1734 = vpack.c.b16 %v1578, %v1574
        %v1735 = vpack.c.b16 %v1579, %v1575
        %v1736 = vpack.c.b16 %v1580, %v1576
        %v1737 = vpack.c.b16 %v1581, %v1577
        %v1738 = vpack.c.b16 %v1586, %v1582
        %v1739 = vpack.c.b16 %v1587, %v1583
        %v1740 = vpack.c.b16 %v1588, %v1584
        %v1741 = vpack.c.b16 %v1589, %v1585
        %v1742 = vpack.c.b16 %v1594, %v1590
        %v1743 = vpack.c.b16 %v1595, %v1591
        %v1744 = vpack.c.b16 %v1596, %v1592
        %v1745 = vpack.c.b16 %v1597, %v1593
        %v1746 = vpack.c.b16 %v1602, %v1598
        %v1747 = vpack.c.b16 %v1603, %v1599
        %v1748 = vpack.c.b16 %v1604, %v1600
        %v1749 = vpack.c.b16 %v1605, %v1601
        %v1750 = vpack.c.b16 %v1610, %v1606
        %v1751 = vpack.c.b16 %v1611, %v1607
        %v1752 = vpack.c.b16 %v1612, %v1608
        %v1753 = vpack.c.b16 %v1613, %v1609
        %v1754 = vpack.c.b16 %v1618, %v1614
        %v1755 = vpack.c.b16 %v1619, %v1615
        %v1756 = vpack.c.b16 %v1620, %v1616
        %v1757 = vpack.c.b16 %v1621, %v1617
        %v1758 = vpack.c.b16 %v1626, %v1622
        %v1759 = vpack.c.b16 %v1627, %v1623
        %v1760 = vpack.c.b16 %v1628, %v1624
        %v1761 = vpack.c.b16 %v1629, %v1625
        %v1762 = vpack.c.b16 %v1634, %v1630
        %v1763 = vpack.c.b16 %v1635, %v1631
        %v1764 = vpack.c.b16 %v1636, %v1632
        %v1765 = vpack.c.b16 %v1637, %v1633
        %1894 = vmatprep.subr.bf16.mxu0 %v1639
        %1895 = vmatpush1.bf16.msra.mxu0 %v1638
        %1896 = vmatprep.subr.bf16.mxu0 %v1643
        %1897 = vmatpush1.bf16.msra.mxu0 %v1642
        %1898 = vmatprep.subr.bf16.mxu0 %v1647
        %1899 = vmatpush1.bf16.msra.mxu0 %v1646
        %1900 = vmatprep.subr.bf16.mxu0 %v1651
        %1901 = vmatpush1.bf16.msra.mxu0 %v1650
        %1902 = vmatprep.subr.bf16.mxu0 %v1655
        %1903 = vmatpush1.bf16.msra.mxu0 %v1654
        %1904 = vmatprep.subr.bf16.mxu0 %v1659
        %1905 = vmatpush1.bf16.msra.mxu0 %v1658
        %1906 = vmatprep.subr.bf16.mxu0 %v1663
        %1907 = vmatpush1.bf16.msra.mxu0 %v1662
        %1908 = vmatprep.subr.bf16.mxu0 %v1667
        %1909 = vmatpush1.bf16.msra.mxu0 %v1666
        %1910 = vmatprep.subr.bf16.mxu0 %v1671
        %1911 = vmatpush1.bf16.msra.mxu0 %v1670
        %1912 = vmatprep.subr.bf16.mxu0 %v1675
        %1913 = vmatpush1.bf16.msra.mxu0 %v1674
        %1914 = vmatprep.subr.bf16.mxu0 %v1679
        %1915 = vmatpush1.bf16.msra.mxu0 %v1678
        %1916 = vmatprep.subr.bf16.mxu0 %v1683
        %1917 = vmatpush1.bf16.msra.mxu0 %v1682
        %1918 = vmatprep.subr.bf16.mxu0 %v1687
        %1919 = vmatpush1.bf16.msra.mxu0 %v1686
        %1920 = vmatprep.subr.bf16.mxu0 %v1691
        %1921 = vmatpush1.bf16.msra.mxu0 %v1690
        %1922 = vmatprep.subr.bf16.mxu0 %v1695
        %1923 = vmatpush1.bf16.msra.mxu0 %v1694
        %1924 = vmatprep.subr.bf16.mxu0 %v1699
        %1925 = vmatpush1.bf16.msra.mxu0 %v1698
        %1926 = vmatprep.mubr.bf16.mxu0 %v1101
        %1927 = vmatmul.mubr.bf16.gmra.mrb[0].mxu0 %v1100
        %v1928 = vpop.f32.mrb[0].mxu0
        %v1929 = vadd.f32 %v1237, %v1928
        %v1930 = vpop.f32.mrb[0].mxu0
        %v1931 = vadd.f32 %v1241, %v1930
        %v1932 = vpop.f32.mrb[0].mxu0
        %v1933 = vpop.f32.mrb[0].mxu0
        %1934 = vdwg.mxu0
        %1935 = vmatprep.subr.bf16.mxu0 %v1703
        %1936 = vmatpush1.bf16.msra.mxu0 %v1702
        %1937 = vmatprep.subr.bf16.mxu0 %v1707
        %1938 = vmatpush1.bf16.msra.mxu0 %v1706
        %1939 = vmatprep.subr.bf16.mxu0 %v1711
        %1940 = vmatpush1.bf16.msra.mxu0 %v1710
        %1941 = vmatprep.subr.bf16.mxu0 %v1715
        %1942 = vmatpush1.bf16.msra.mxu0 %v1714
        %1943 = vmatprep.subr.bf16.mxu0 %v1719
        %1944 = vmatpush1.bf16.msra.mxu0 %v1718
        %1945 = vmatprep.subr.bf16.mxu0 %v1723
        %1946 = vmatpush1.bf16.msra.mxu0 %v1722
        %1947 = vmatprep.subr.bf16.mxu0 %v1727
        %1948 = vmatpush1.bf16.msra.mxu0 %v1726
        %1949 = vmatprep.subr.bf16.mxu0 %v1731
        %1950 = vmatpush1.bf16.msra.mxu0 %v1730
        %1951 = vmatprep.subr.bf16.mxu0 %v1735
        %1952 = vmatpush1.bf16.msra.mxu0 %v1734
        %1953 = vmatprep.subr.bf16.mxu0 %v1739
        %1954 = vmatpush1.bf16.msra.mxu0 %v1738
        %1955 = vmatprep.subr.bf16.mxu0 %v1743
        %1956 = vmatpush1.bf16.msra.mxu0 %v1742
        %1957 = vmatprep.subr.bf16.mxu0 %v1747
        %1958 = vmatpush1.bf16.msra.mxu0 %v1746
        %1959 = vmatprep.subr.bf16.mxu0 %v1751
        %1960 = vmatpush1.bf16.msra.mxu0 %v1750
        %1961 = vmatprep.subr.bf16.mxu0 %v1755
        %1962 = vmatpush1.bf16.msra.mxu0 %v1754
        %1963 = vmatprep.subr.bf16.mxu0 %v1759
        %1964 = vmatpush1.bf16.msra.mxu0 %v1758
        %1965 = vmatprep.subr.bf16.mxu0 %v1763
        %1966 = vmatpush1.bf16.msra.mxu0 %v1762
        %1967 = vmatprep.mubr.bf16.mxu0 %v1103
        %1968 = vmatmul.mubr.bf16.gmra.mrb[0].mxu0 %v1102
        %v1969 = vpop.f32.mrb[0].mxu0
        %v1970 = vadd.f32 %v1929, %v1969
        %v1971 = vpop.f32.mrb[0].mxu0
        %v1972 = vadd.f32 %v1931, %v1971
        %v1973 = vpop.f32.mrb[0].mxu0
        %v1974 = vpop.f32.mrb[0].mxu0
        %1975 = vdwg.mxu0
        %1976 = vmatprep.subr.bf16.mxu0 %v1641
        %1977 = vmatpush1.bf16.msra.mxu0 %v1640
        %1978 = vmatprep.subr.bf16.mxu0 %v1645
        %1979 = vmatpush1.bf16.msra.mxu0 %v1644
        %1980 = vmatprep.subr.bf16.mxu0 %v1649
        %1981 = vmatpush1.bf16.msra.mxu0 %v1648
        %1982 = vmatprep.subr.bf16.mxu0 %v1653
        %1983 = vmatpush1.bf16.msra.mxu0 %v1652
        %1984 = vmatprep.subr.bf16.mxu0 %v1657
        %1985 = vmatpush1.bf16.msra.mxu0 %v1656
        %1986 = vmatprep.subr.bf16.mxu0 %v1661
        %1987 = vmatpush1.bf16.msra.mxu0 %v1660
        %1988 = vmatprep.subr.bf16.mxu0 %v1665
        %1989 = vmatpush1.bf16.msra.mxu0 %v1664
        %1990 = vmatprep.subr.bf16.mxu0 %v1669
        %1991 = vmatpush1.bf16.msra.mxu0 %v1668
        %1992 = vmatprep.subr.bf16.mxu0 %v1673
        %1993 = vmatpush1.bf16.msra.mxu0 %v1672
        %1994 = vmatprep.subr.bf16.mxu0 %v1677
        %1995 = vmatpush1.bf16.msra.mxu0 %v1676
        %1996 = vmatprep.subr.bf16.mxu0 %v1681
        %1997 = vmatpush1.bf16.msra.mxu0 %v1680
        %1998 = vmatprep.subr.bf16.mxu0 %v1685
        %1999 = vmatpush1.bf16.msra.mxu0 %v1684
        %2000 = vmatprep.subr.bf16.mxu0 %v1689
        %2001 = vmatpush1.bf16.msra.mxu0 %v1688
        %2002 = vmatprep.subr.bf16.mxu0 %v1693
        %2003 = vmatpush1.bf16.msra.mxu0 %v1692
        %2004 = vmatprep.subr.bf16.mxu0 %v1697
        %2005 = vmatpush1.bf16.msra.mxu0 %v1696
        %2006 = vmatprep.subr.bf16.mxu0 %v1701
        %2007 = vmatpush1.bf16.msra.mxu0 %v1700
        %2008 = vmatprep.mubr.bf16.mxu0 %v1101
        %2009 = vmatmul.mubr.bf16.gmra.mrb[0].mxu0 %v1100
        %v2010 = vpop.f32.mrb[0].mxu0
        %v2011 = vadd.f32 %v1245, %v2010
        %v2012 = vpop.f32.mrb[0].mxu0
        %v2013 = vadd.f32 %v1249, %v2012
        %v2014 = vpop.f32.mrb[0].mxu0
        %v2015 = vpop.f32.mrb[0].mxu0
        %2016 = vdwg.mxu0
        %2017 = vmatprep.subr.bf16.mxu0 %v1705
        %2018 = vmatpush1.bf16.msra.mxu0 %v1704
        %2019 = vmatprep.subr.bf16.mxu0 %v1709
        %2020 = vmatpush1.bf16.msra.mxu0 %v1708
        %2021 = vmatprep.subr.bf16.mxu0 %v1713
        %2022 = vmatpush1.bf16.msra.mxu0 %v1712
        %2023 = vmatprep.subr.bf16.mxu0 %v1717
        %2024 = vmatpush1.bf16.msra.mxu0 %v1716
        %2025 = vmatprep.subr.bf16.mxu0 %v1721
        %2026 = vmatpush1.bf16.msra.mxu0 %v1720
        %2027 = vmatprep.subr.bf16.mxu0 %v1725
        %2028 = vmatpush1.bf16.msra.mxu0 %v1724
        %2029 = vmatprep.subr.bf16.mxu0 %v1729
        %2030 = vmatpush1.bf16.msra.mxu0 %v1728
        %2031 = vmatprep.subr.bf16.mxu0 %v1733
        %2032 = vmatpush1.bf16.msra.mxu0 %v1732
        %2033 = vmatprep.subr.bf16.mxu0 %v1737
        %2034 = vmatpush1.bf16.msra.mxu0 %v1736
        %2035 = vmatprep.subr.bf16.mxu0 %v1741
        %2036 = vmatpush1.bf16.msra.mxu0 %v1740
        %2037 = vmatprep.subr.bf16.mxu0 %v1745
        %2038 = vmatpush1.bf16.msra.mxu0 %v1744
        %2039 = vmatprep.subr.bf16.mxu0 %v1749
        %2040 = vmatpush1.bf16.msra.mxu0 %v1748
        %2041 = vmatprep.subr.bf16.mxu0 %v1753
        %2042 = vmatpush1.bf16.msra.mxu0 %v1752
        %2043 = vmatprep.subr.bf16.mxu0 %v1757
        %2044 = vmatpush1.bf16.msra.mxu0 %v1756
        %2045 = vmatprep.subr.bf16.mxu0 %v1761
        %2046 = vmatpush1.bf16.msra.mxu0 %v1760
        %2047 = vmatprep.subr.bf16.mxu0 %v1765
        %2048 = vmatpush1.bf16.msra.mxu0 %v1764
        %2049 = vmatprep.mubr.bf16.mxu0 %v1103
        %2050 = vmatmul.mubr.bf16.gmra.mrb[0].mxu0 %v1102
        %v2051 = vpop.f32.mrb[0].mxu0
        %v2052 = vadd.f32 %v2011, %v2051
        %v2053 = vpop.f32.mrb[0].mxu0
        %v2054 = vadd.f32 %v2013, %v2053
        %v2055 = vpop.f32.mrb[0].mxu0
        %v2056 = vpop.f32.mrb[0].mxu0
        %2057 = vdwg.mxu0
        %v2058 = vmax.f32 %v1970, 0.0
        %v2059 = vmax.f32 %v1972, 0.0
        %v2060 = vmax.f32 %v2052, 0.0
        %v2061 = vmax.f32 %v2054, 0.0
        %v2062 = vpack.c.bf16 %v2058, %v2058
        %v2063 = vpack.c.bf16 %v2059, %v2059
        %v2064 = vpack.c.bf16 %v2060, %v2060
        %v2065 = vpack.c.bf16 %v2061, %v2061
        %v2066 = vld [vmem:[#allocation11] sm:$0xf]
        %v2067 = vld [vmem:[#allocation11 + $0x4] sm:$0xf]
        %v2068 = vld [vmem:[#allocation11 + $0x8] sm:$0xf]
        %v2069 = vld [vmem:[#allocation11 + $0xc] sm:$0xf]
        %v2070 = vld [vmem:[#allocation11 + $0x10] sm:$0xf]
        %v2071 = vld [vmem:[#allocation11 + $0x14] sm:$0xf]
        %v2072 = vld [vmem:[#allocation11 + $0x18] sm:$0xf]
        %v2073 = vld [vmem:[#allocation11 + $0x1c] sm:$0xf]
        %v2074 = vld [vmem:[#allocation11 + $0x20] sm:$0xf]
        %v2075 = vld [vmem:[#allocation11 + $0x24] sm:$0xf]
        %v2076 = vld [vmem:[#allocation11 + $0x28] sm:$0xf]
        %v2077 = vld [vmem:[#allocation11 + $0x2c] sm:$0xf]
        %v2078 = vld [vmem:[#allocation11 + $0x30] sm:$0xf]
        %v2079 = vld [vmem:[#allocation11 + $0x34] sm:$0xf]
        %v2080 = vld [vmem:[#allocation11 + $0x38] sm:$0xf]
        %v2081 = vld [vmem:[#allocation11 + $0x3c] sm:$0xf]
        %v2082 = vld [vmem:[#allocation11 + $0x40] sm:$0xf]
        %v2083 = vld [vmem:[#allocation11 + $0x44] sm:$0xf]
        %v2084 = vld [vmem:[#allocation11 + $0x48] sm:$0xf]
        %v2085 = vld [vmem:[#allocation11 + $0x4c] sm:$0xf]
        %v2086 = vld [vmem:[#allocation11 + $0x50] sm:$0xf]
        %v2087 = vld [vmem:[#allocation11 + $0x54] sm:$0xf]
        %v2088 = vld [vmem:[#allocation11 + $0x58] sm:$0xf]
        %v2089 = vld [vmem:[#allocation11 + $0x5c] sm:$0xf]
        %v2090 = vld [vmem:[#allocation11 + $0x60] sm:$0xf]
        %v2091 = vld [vmem:[#allocation11 + $0x64] sm:$0xf]
        %v2092 = vld [vmem:[#allocation11 + $0x68] sm:$0xf]
        %v2093 = vld [vmem:[#allocation11 + $0x6c] sm:$0xf]
        %v2094 = vld [vmem:[#allocation11 + $0x70] sm:$0xf]
        %v2095 = vld [vmem:[#allocation11 + $0x74] sm:$0xf]
        %v2096 = vld [vmem:[#allocation11 + $0x78] sm:$0xf]
        %v2097 = vld [vmem:[#allocation11 + $0x7c] sm:$0xf]
        %v2098 = vld [vmem:[#allocation11 + $0x80] sm:$0xf]
        %v2099 = vld [vmem:[#allocation11 + $0x84] sm:$0xf]
        %v2100 = vld [vmem:[#allocation11 + $0x88] sm:$0xf]
        %v2101 = vld [vmem:[#allocation11 + $0x8c] sm:$0xf]
        %v2102 = vld [vmem:[#allocation11 + $0x90] sm:$0xf]
        %v2103 = vld [vmem:[#allocation11 + $0x94] sm:$0xf]
        %v2104 = vld [vmem:[#allocation11 + $0x98] sm:$0xf]
        %v2105 = vld [vmem:[#allocation11 + $0x9c] sm:$0xf]
        %v2106 = vld [vmem:[#allocation11 + $0xa0] sm:$0xf]
        %v2107 = vld [vmem:[#allocation11 + $0xa4] sm:$0xf]
        %v2108 = vld [vmem:[#allocation11 + $0xa8] sm:$0xf]
        %v2109 = vld [vmem:[#allocation11 + $0xac] sm:$0xf]
        %v2110 = vld [vmem:[#allocation11 + $0xb0] sm:$0xf]
        %v2111 = vld [vmem:[#allocation11 + $0xb4] sm:$0xf]
        %v2112 = vld [vmem:[#allocation11 + $0xb8] sm:$0xf]
        %v2113 = vld [vmem:[#allocation11 + $0xbc] sm:$0xf]
        %v2114 = vld [vmem:[#allocation11 + $0xc0] sm:$0xf]
        %v2115 = vld [vmem:[#allocation11 + $0xc4] sm:$0xf]
        %v2116 = vld [vmem:[#allocation11 + $0xc8] sm:$0xf]
        %v2117 = vld [vmem:[#allocation11 + $0xcc] sm:$0xf]
        %v2118 = vld [vmem:[#allocation11 + $0xd0] sm:$0xf]
        %v2119 = vld [vmem:[#allocation11 + $0xd4] sm:$0xf]
        %v2120 = vld [vmem:[#allocation11 + $0xd8] sm:$0xf]
        %v2121 = vld [vmem:[#allocation11 + $0xdc] sm:$0xf]
        %v2122 = vld [vmem:[#allocation11 + $0xe0] sm:$0xf]
        %v2123 = vld [vmem:[#allocation11 + $0xe4] sm:$0xf]
        %v2124 = vld [vmem:[#allocation11 + $0xe8] sm:$0xf]
        %v2125 = vld [vmem:[#allocation11 + $0xec] sm:$0xf]
        %v2126 = vld [vmem:[#allocation11 + $0xf0] sm:$0xf]
        %v2127 = vld [vmem:[#allocation11 + $0xf4] sm:$0xf]
        %v2128 = vld [vmem:[#allocation11 + $0xf8] sm:$0xf]
        %v2129 = vld [vmem:[#allocation11 + $0xfc] sm:$0xf]
        %v2130 = vld [vmem:[#allocation13] sm:$0x1]
        %v2132 = vlaneseq
        %v2133 = vshrl.u32 %v2132, 7
        %v2134 = vsub.s32 0, %v2133
        %v2135 = vrot.slane %v2130, %v2134
        %v2201 = vunpack.c.l.b16 %v2066
        %v2202 = vunpack.c.l.b16 %v2067
        %v2203 = vunpack.c.l.b16 %v2068
        %v2204 = vunpack.c.l.b16 %v2069
        %v2205 = vunpack.c.l.b16 %v2070
        %v2206 = vunpack.c.l.b16 %v2071
        %v2207 = vunpack.c.l.b16 %v2072
        %v2208 = vunpack.c.l.b16 %v2073
        %v2209 = vunpack.c.l.b16 %v2074
        %v2210 = vunpack.c.l.b16 %v2075
        %v2211 = vunpack.c.l.b16 %v2076
        %v2212 = vunpack.c.l.b16 %v2077
        %v2213 = vunpack.c.l.b16 %v2078
        %v2214 = vunpack.c.l.b16 %v2079
        %v2215 = vunpack.c.l.b16 %v2080
        %v2216 = vunpack.c.l.b16 %v2081
        %v2217 = vunpack.c.l.b16 %v2082
        %v2218 = vunpack.c.l.b16 %v2083
        %v2219 = vunpack.c.l.b16 %v2084
        %v2220 = vunpack.c.l.b16 %v2085
        %v2221 = vunpack.c.l.b16 %v2086
        %v2222 = vunpack.c.l.b16 %v2087
        %v2223 = vunpack.c.l.b16 %v2088
        %v2224 = vunpack.c.l.b16 %v2089
        %v2225 = vunpack.c.l.b16 %v2090
        %v2226 = vunpack.c.l.b16 %v2091
        %v2227 = vunpack.c.l.b16 %v2092
        %v2228 = vunpack.c.l.b16 %v2093
        %v2229 = vunpack.c.l.b16 %v2094
        %v2230 = vunpack.c.l.b16 %v2095
        %v2231 = vunpack.c.l.b16 %v2096
        %v2232 = vunpack.c.l.b16 %v2097
        %v2233 = vunpack.c.l.b16 %v2098
        %v2234 = vunpack.c.l.b16 %v2099
        %v2235 = vunpack.c.l.b16 %v2100
        %v2236 = vunpack.c.l.b16 %v2101
        %v2237 = vunpack.c.l.b16 %v2102
        %v2238 = vunpack.c.l.b16 %v2103
        %v2239 = vunpack.c.l.b16 %v2104
        %v2240 = vunpack.c.l.b16 %v2105
        %v2241 = vunpack.c.l.b16 %v2106
        %v2242 = vunpack.c.l.b16 %v2107
        %v2243 = vunpack.c.l.b16 %v2108
        %v2244 = vunpack.c.l.b16 %v2109
        %v2245 = vunpack.c.l.b16 %v2110
        %v2246 = vunpack.c.l.b16 %v2111
        %v2247 = vunpack.c.l.b16 %v2112
        %v2248 = vunpack.c.l.b16 %v2113
        %v2249 = vunpack.c.l.b16 %v2114
        %v2250 = vunpack.c.l.b16 %v2115
        %v2251 = vunpack.c.l.b16 %v2116
        %v2252 = vunpack.c.l.b16 %v2117
        %v2253 = vunpack.c.l.b16 %v2118
        %v2254 = vunpack.c.l.b16 %v2119
        %v2255 = vunpack.c.l.b16 %v2120
        %v2256 = vunpack.c.l.b16 %v2121
        %v2257 = vunpack.c.l.b16 %v2122
        %v2258 = vunpack.c.l.b16 %v2123
        %v2259 = vunpack.c.l.b16 %v2124
        %v2260 = vunpack.c.l.b16 %v2125
        %v2261 = vunpack.c.l.b16 %v2126
        %v2262 = vunpack.c.l.b16 %v2127
        %v2263 = vunpack.c.l.b16 %v2128
        %v2264 = vunpack.c.l.b16 %v2129
        %v2265 = vpack.c.b16 %v2202, %v2201
        %v2266 = vpack.c.b16 %v2204, %v2203
        %v2267 = vpack.c.b16 %v2206, %v2205
        %v2268 = vpack.c.b16 %v2208, %v2207
        %v2269 = vpack.c.b16 %v2210, %v2209
        %v2270 = vpack.c.b16 %v2212, %v2211
        %v2271 = vpack.c.b16 %v2214, %v2213
        %v2272 = vpack.c.b16 %v2216, %v2215
        %v2273 = vpack.c.b16 %v2218, %v2217
        %v2274 = vpack.c.b16 %v2220, %v2219
        %v2275 = vpack.c.b16 %v2222, %v2221
        %v2276 = vpack.c.b16 %v2224, %v2223
        %v2277 = vpack.c.b16 %v2226, %v2225
        %v2278 = vpack.c.b16 %v2228, %v2227
        %v2279 = vpack.c.b16 %v2230, %v2229
        %v2280 = vpack.c.b16 %v2232, %v2231
        %v2281 = vpack.c.b16 %v2234, %v2233
        %v2282 = vpack.c.b16 %v2236, %v2235
        %v2283 = vpack.c.b16 %v2238, %v2237
        %v2284 = vpack.c.b16 %v2240, %v2239
        %v2285 = vpack.c.b16 %v2242, %v2241
        %v2286 = vpack.c.b16 %v2244, %v2243
        %v2287 = vpack.c.b16 %v2246, %v2245
        %v2288 = vpack.c.b16 %v2248, %v2247
        %v2289 = vpack.c.b16 %v2250, %v2249
        %v2290 = vpack.c.b16 %v2252, %v2251
        %v2291 = vpack.c.b16 %v2254, %v2253
        %v2292 = vpack.c.b16 %v2256, %v2255
        %v2293 = vpack.c.b16 %v2258, %v2257
        %v2294 = vpack.c.b16 %v2260, %v2259
        %v2295 = vpack.c.b16 %v2262, %v2261
        %v2296 = vpack.c.b16 %v2264, %v2263
        %2329 = vmatprep.subr.bf16.mxu0 0
        %2330 = vmatpush1.bf16.msra.mxu0 %v2265
        %2331 = vmatprep.subr.bf16.mxu0 0
        %2332 = vmatpush1.bf16.msra.mxu0 %v2266
        %2333 = vmatprep.subr.bf16.mxu0 0
        %2334 = vmatpush1.bf16.msra.mxu0 %v2267
        %2335 = vmatprep.subr.bf16.mxu0 0
        %2336 = vmatpush1.bf16.msra.mxu0 %v2268
        %2337 = vmatprep.subr.bf16.mxu0 0
        %2338 = vmatpush1.bf16.msra.mxu0 %v2269
        %2339 = vmatprep.subr.bf16.mxu0 0
        %2340 = vmatpush1.bf16.msra.mxu0 %v2270
        %2341 = vmatprep.subr.bf16.mxu0 0
        %2342 = vmatpush1.bf16.msra.mxu0 %v2271
        %2343 = vmatprep.subr.bf16.mxu0 0
        %2344 = vmatpush1.bf16.msra.mxu0 %v2272
        %2345 = vmatprep.subr.bf16.mxu0 0
        %2346 = vmatpush1.bf16.msra.mxu0 %v2273
        %2347 = vmatprep.subr.bf16.mxu0 0
        %2348 = vmatpush1.bf16.msra.mxu0 %v2274
        %2349 = vmatprep.subr.bf16.mxu0 0
        %2350 = vmatpush1.bf16.msra.mxu0 %v2275
        %2351 = vmatprep.subr.bf16.mxu0 0
        %2352 = vmatpush1.bf16.msra.mxu0 %v2276
        %2353 = vmatprep.subr.bf16.mxu0 0
        %2354 = vmatpush1.bf16.msra.mxu0 %v2277
        %2355 = vmatprep.subr.bf16.mxu0 0
        %2356 = vmatpush1.bf16.msra.mxu0 %v2278
        %2357 = vmatprep.subr.bf16.mxu0 0
        %2358 = vmatpush1.bf16.msra.mxu0 %v2279
        %2359 = vmatprep.subr.bf16.mxu0 0
        %2360 = vmatpush1.bf16.msra.mxu0 %v2280
        %2361 = vmatprep.mubr.bf16.mxu0 %v2063
        %2362 = vmatmul.mubr.bf16.gmra.mrb[0].mxu0 %v2062
        %v2363 = vpop.f32.mrb[0].mxu0
        %v2364 = vadd.f32 %v2135, %v2363
        %v2365 = vpop.f32.mrb[0].mxu0
        %v2366 = vpop.f32.mrb[0].mxu0
        %v2367 = vpop.f32.mrb[0].mxu0
        %2368 = vdwg.mxu0
        %2369 = vmatprep.subr.bf16.mxu0 0
        %2370 = vmatpush1.bf16.msra.mxu0 %v2281
        %2371 = vmatprep.subr.bf16.mxu0 0
        %2372 = vmatpush1.bf16.msra.mxu0 %v2282
        %2373 = vmatprep.subr.bf16.mxu0 0
        %2374 = vmatpush1.bf16.msra.mxu0 %v2283
        %2375 = vmatprep.subr.bf16.mxu0 0
        %2376 = vmatpush1.bf16.msra.mxu0 %v2284
        %2377 = vmatprep.subr.bf16.mxu0 0
        %2378 = vmatpush1.bf16.msra.mxu0 %v2285
        %2379 = vmatprep.subr.bf16.mxu0 0
        %2380 = vmatpush1.bf16.msra.mxu0 %v2286
        %2381 = vmatprep.subr.bf16.mxu0 0
        %2382 = vmatpush1.bf16.msra.mxu0 %v2287
        %2383 = vmatprep.subr.bf16.mxu0 0
        %2384 = vmatpush1.bf16.msra.mxu0 %v2288
        %2385 = vmatprep.subr.bf16.mxu0 0
        %2386 = vmatpush1.bf16.msra.mxu0 %v2289
        %2387 = vmatprep.subr.bf16.mxu0 0
        %2388 = vmatpush1.bf16.msra.mxu0 %v2290
        %2389 = vmatprep.subr.bf16.mxu0 0
        %2390 = vmatpush1.bf16.msra.mxu0 %v2291
        %2391 = vmatprep.subr.bf16.mxu0 0
        %2392 = vmatpush1.bf16.msra.mxu0 %v2292
        %2393 = vmatprep.subr.bf16.mxu0 0
        %2394 = vmatpush1.bf16.msra.mxu0 %v2293
        %2395 = vmatprep.subr.bf16.mxu0 0
        %2396 = vmatpush1.bf16.msra.mxu0 %v2294
        %2397 = vmatprep.subr.bf16.mxu0 0
        %2398 = vmatpush1.bf16.msra.mxu0 %v2295
        %2399 = vmatprep.subr.bf16.mxu0 0
        %2400 = vmatpush1.bf16.msra.mxu0 %v2296
        %2401 = vmatprep.mubr.bf16.mxu0 %v2065
        %2402 = vmatmul.mubr.bf16.gmra.mrb[0].mxu0 %v2064
        %v2403 = vpop.f32.mrb[0].mxu0
        %v2404 = vadd.f32 %v2364, %v2403
        %v2405 = vpop.f32.mrb[0].mxu0
        %v2406 = vpop.f32.mrb[0].mxu0
        %v2407 = vpop.f32.mrb[0].mxu0
        %2408 = vdwg.mxu0
        %2409 = vmax.xlane.f32.xlu0 %v2404
        %v2410 = vpop.xlane.xlu0 %2409
        %v2411 = vsub.f32 %v2404, %v2410
        %v2412 = vmul.f32 %v2411, 1.442695
        %v2413 = vpow.pop %v2412
        %2414 = vadd.xlane.f32.xlu0 %v2413
        %v2415 = vpop.xlane.xlu0 %2414
        %v2416 = vrcp.pop %v2415
        %v2417 = vmul.f32 %v2413, %v2416
        %v2418 = vld [vmem:[%s687] sm:$0xff]
        %v2419 = vadd.f32 %v2418, 1e-20
        %v2420 = vlog2.pop %v2419
        %v2421 = vmul.f32 %v2420, 0.6931472
        %v2422 = vsub.f32 0.0, %v2421
        %v2423 = vadd.f32 %v2422, 1e-20
        %v2424 = vlog2.pop %v2423
        %v2425 = vmul.f32 %v2424, 0.6931472
        %v2426 = vsub.f32 0.0, %v2425
        %v2427 = vadd.f32 %v2404, %v2426
        %2428 = vmax.xlane.f32.xlu0 %v2427
        %v2429 = vpop.xlane.xlu0 %2428
        %v2430 = vsub.f32 %v2427, %v2429
        %v2431 = vmul.f32 %v2430, 1.442695
        %v2432 = vpow.pop %v2431
        %2433 = vadd.xlane.f32.xlu0 %v2432
        %v2434 = vpop.xlane.xlu0 %2433
        %v2435 = vrcp.pop %v2434
        %v2436 = vmul.f32 %v2432, %v2435
        %v2437 = vpack.c.bf16 %v2436, %v2436
        %v2438 = vld [vmem:[#allocation14] sm:$0xff]
        %v2439 = vld [vmem:[#allocation14 + $0x8] sm:$0xff]
        %v2440 = vld [vmem:[#allocation14 + $0x10] sm:$0xff]
        %v2441 = vld [vmem:[#allocation14 + $0x18] sm:$0xff]
        %v2442 = vld [vmem:[#allocation14 + $0x20] sm:$0xff]
        %v2443 = vld [vmem:[#allocation14 + $0x28] sm:$0xff]
        %v2444 = vld [vmem:[#allocation14 + $0x30] sm:$0xff]
        %v2445 = vld [vmem:[#allocation14 + $0x38] sm:$0xff]
        %v2446 = vld [vmem:[#allocation14 + $0x40] sm:$0xff]
        %v2447 = vld [vmem:[#allocation14 + $0x48] sm:$0xff]
        %v2448 = vld [vmem:[#allocation14 + $0x50] sm:$0xff]
        %v2449 = vld [vmem:[#allocation14 + $0x58] sm:$0xff]
        %v2450 = vld [vmem:[#allocation14 + $0x60] sm:$0xff]
        %v2451 = vld [vmem:[#allocation14 + $0x68] sm:$0xff]
        %v2452 = vld [vmem:[#allocation14 + $0x70] sm:$0xff]
        %v2453 = vld [vmem:[#allocation14 + $0x78] sm:$0xff]
        %v2454 = vld [vmem:[#allocation14 + $0x80] sm:$0xff]
        %v2455 = vld [vmem:[#allocation14 + $0x88] sm:$0xff]
        %v2456 = vld [vmem:[#allocation14 + $0x90] sm:$0xff]
        %v2457 = vld [vmem:[#allocation14 + $0x98] sm:$0xff]
        %v2458 = vld [vmem:[#allocation14 + $0xa0] sm:$0xff]
        %v2459 = vld [vmem:[#allocation14 + $0xa8] sm:$0xff]
        %v2460 = vld [vmem:[#allocation14 + $0xb0] sm:$0xff]
        %v2461 = vld [vmem:[#allocation14 + $0xb8] sm:$0xff]
        %v2462 = vld [vmem:[#allocation14 + $0xc0] sm:$0xff]
        %v2463 = vld [vmem:[#allocation14 + $0xc8] sm:$0xff]
        %v2464 = vld [vmem:[#allocation14 + $0xd0] sm:$0xff]
        %v2465 = vld [vmem:[#allocation14 + $0xd8] sm:$0xff]
        %v2466 = vld [vmem:[#allocation14 + $0xe0] sm:$0xff]
        %v2467 = vld [vmem:[#allocation14 + $0xe8] sm:$0xff]
        %v2468 = vld [vmem:[#allocation14 + $0xf0] sm:$0xff]
        %v2469 = vld [vmem:[#allocation14 + $0xf8] sm:$0xff]
        %v2502 = vunpack.c.l.b16 %v2438
        %v2503 = vunpack.c.h.b16 %v2438
        %v2504 = vunpack.c.l.b16 %v2439
        %v2505 = vunpack.c.h.b16 %v2439
        %v2506 = vunpack.c.l.b16 %v2440
        %v2507 = vunpack.c.h.b16 %v2440
        %v2508 = vunpack.c.l.b16 %v2441
        %v2509 = vunpack.c.h.b16 %v2441
        %v2510 = vunpack.c.l.b16 %v2442
        %v2511 = vunpack.c.h.b16 %v2442
        %v2512 = vunpack.c.l.b16 %v2443
        %v2513 = vunpack.c.h.b16 %v2443
        %v2514 = vunpack.c.l.b16 %v2444
        %v2515 = vunpack.c.h.b16 %v2444
        %v2516 = vunpack.c.l.b16 %v2445
        %v2517 = vunpack.c.h.b16 %v2445
        %v2518 = vunpack.c.l.b16 %v2446
        %v2519 = vunpack.c.h.b16 %v2446
        %v2520 = vunpack.c.l.b16 %v2447
        %v2521 = vunpack.c.h.b16 %v2447
        %v2522 = vunpack.c.l.b16 %v2448
        %v2523 = vunpack.c.h.b16 %v2448
        %v2524 = vunpack.c.l.b16 %v2449
        %v2525 = vunpack.c.h.b16 %v2449
        %v2526 = vunpack.c.l.b16 %v2450
        %v2527 = vunpack.c.h.b16 %v2450
        %v2528 = vunpack.c.l.b16 %v2451
        %v2529 = vunpack.c.h.b16 %v2451
        %v2530 = vunpack.c.l.b16 %v2452
        %v2531 = vunpack.c.h.b16 %v2452
        %v2532 = vunpack.c.l.b16 %v2453
        %v2533 = vunpack.c.h.b16 %v2453
        %v2534 = vunpack.c.l.b16 %v2454
        %v2535 = vunpack.c.h.b16 %v2454
        %v2536 = vunpack.c.l.b16 %v2455
        %v2537 = vunpack.c.h.b16 %v2455
        %v2538 = vunpack.c.l.b16 %v2456
        %v2539 = vunpack.c.h.b16 %v2456
        %v2540 = vunpack.c.l.b16 %v2457
        %v2541 = vunpack.c.h.b16 %v2457
        %v2542 = vunpack.c.l.b16 %v2458
        %v2543 = vunpack.c.h.b16 %v2458
        %v2544 = vunpack.c.l.b16 %v2459
        %v2545 = vunpack.c.h.b16 %v2459
        %v2546 = vunpack.c.l.b16 %v2460
        %v2547 = vunpack.c.h.b16 %v2460
        %v2548 = vunpack.c.l.b16 %v2461
        %v2549 = vunpack.c.h.b16 %v2461
        %v2550 = vunpack.c.l.b16 %v2462
        %v2551 = vunpack.c.h.b16 %v2462
        %v2552 = vunpack.c.l.b16 %v2463
        %v2553 = vunpack.c.h.b16 %v2463
        %v2554 = vunpack.c.l.b16 %v2464
        %v2555 = vunpack.c.h.b16 %v2464
        %v2556 = vunpack.c.l.b16 %v2465
        %v2557 = vunpack.c.h.b16 %v2465
        %v2558 = vunpack.c.l.b16 %v2466
        %v2559 = vunpack.c.h.b16 %v2466
        %v2560 = vunpack.c.l.b16 %v2467
        %v2561 = vunpack.c.h.b16 %v2467
        %v2562 = vunpack.c.l.b16 %v2468
        %v2563 = vunpack.c.h.b16 %v2468
        %v2564 = vunpack.c.l.b16 %v2469
        %v2565 = vunpack.c.h.b16 %v2469
        %v2566 = vpack.c.b16 %v2506, %v2502
        %v2567 = vpack.c.b16 %v2507, %v2503
        %v2568 = vpack.c.b16 %v2508, %v2504
        %v2569 = vpack.c.b16 %v2509, %v2505
        %v2570 = vpack.c.b16 %v2514, %v2510
        %v2571 = vpack.c.b16 %v2515, %v2511
        %v2572 = vpack.c.b16 %v2516, %v2512
        %v2573 = vpack.c.b16 %v2517, %v2513
        %v2574 = vpack.c.b16 %v2522, %v2518
        %v2575 = vpack.c.b16 %v2523, %v2519
        %v2576 = vpack.c.b16 %v2524, %v2520
        %v2577 = vpack.c.b16 %v2525, %v2521
        %v2578 = vpack.c.b16 %v2530, %v2526
        %v2579 = vpack.c.b16 %v2531, %v2527
        %v2580 = vpack.c.b16 %v2532, %v2528
        %v2581 = vpack.c.b16 %v2533, %v2529
        %v2582 = vpack.c.b16 %v2538, %v2534
        %v2583 = vpack.c.b16 %v2539, %v2535
        %v2584 = vpack.c.b16 %v2540, %v2536
        %v2585 = vpack.c.b16 %v2541, %v2537
        %v2586 = vpack.c.b16 %v2546, %v2542
        %v2587 = vpack.c.b16 %v2547, %v2543
        %v2588 = vpack.c.b16 %v2548, %v2544
        %v2589 = vpack.c.b16 %v2549, %v2545
        %v2590 = vpack.c.b16 %v2554, %v2550
        %v2591 = vpack.c.b16 %v2555, %v2551
        %v2592 = vpack.c.b16 %v2556, %v2552
        %v2593 = vpack.c.b16 %v2557, %v2553
        %v2594 = vpack.c.b16 %v2562, %v2558
        %v2595 = vpack.c.b16 %v2563, %v2559
        %v2596 = vpack.c.b16 %v2564, %v2560
        %v2597 = vpack.c.b16 %v2565, %v2561
        %2630 = vmatprep.subr.bf16.mxu0 %v2567
        %2631 = vmatpush1.bf16.msra.mxu0 %v2566
        %2632 = vmatprep.subr.bf16.mxu0 %v2571
        %2633 = vmatpush1.bf16.msra.mxu0 %v2570
        %2634 = vmatprep.subr.bf16.mxu0 %v2575
        %2635 = vmatpush1.bf16.msra.mxu0 %v2574
        %2636 = vmatprep.subr.bf16.mxu0 %v2579
        %2637 = vmatpush1.bf16.msra.mxu0 %v2578
        %2638 = vmatprep.subr.bf16.mxu0 %v2583
        %2639 = vmatpush1.bf16.msra.mxu0 %v2582
        %2640 = vmatprep.subr.bf16.mxu0 %v2587
        %2641 = vmatpush1.bf16.msra.mxu0 %v2586
        %2642 = vmatprep.subr.bf16.mxu0 %v2591
        %2643 = vmatpush1.bf16.msra.mxu0 %v2590
        %2644 = vmatprep.subr.bf16.mxu0 %v2595
        %2645 = vmatpush1.bf16.msra.mxu0 %v2594
        %2646 = vmatprep.subr.bf16.mxu0 0
        %2647 = vmatpush1.bf16.msra.mxu0 0
        %2648 = vmatprep.subr.bf16.mxu0 0
        %2649 = vmatpush1.bf16.msra.mxu0 0
        %2650 = vmatprep.subr.bf16.mxu0 0
        %2651 = vmatpush1.bf16.msra.mxu0 0
        %2652 = vmatprep.subr.bf16.mxu0 0
        %2653 = vmatpush1.bf16.msra.mxu0 0
        %2654 = vmatprep.subr.bf16.mxu0 0
        %2655 = vmatpush1.bf16.msra.mxu0 0
        %2656 = vmatprep.subr.bf16.mxu0 0
        %2657 = vmatpush1.bf16.msra.mxu0 0
        %2658 = vmatprep.subr.bf16.mxu0 0
        %2659 = vmatpush1.bf16.msra.mxu0 0
        %2660 = vmatprep.subr.bf16.mxu0 0
        %2661 = vmatpush1.bf16.msra.mxu0 0
        %2662 = vmatprep.mubr.bf16.mxu0 0
        %2663 = vmatmul.mubr.bf16.gmra.mrb[0].mxu0 %v2437
        %v2664 = vpop.f32.mrb[0].mxu0
        %v2665 = vadd.f32 0.0, %v2664
        %v2666 = vpop.f32.mrb[0].mxu0
        %v2667 = vadd.f32 0.0, %v2666
        %v2668 = vpop.f32.mrb[0].mxu0
        %v2669 = vpop.f32.mrb[0].mxu0
        %2670 = vdwg.mxu0
        %2671 = vmatprep.subr.bf16.mxu0 %v2569
        %2672 = vmatpush1.bf16.msra.mxu0 %v2568
        %2673 = vmatprep.subr.bf16.mxu0 %v2573
        %2674 = vmatpush1.bf16.msra.mxu0 %v2572
        %2675 = vmatprep.subr.bf16.mxu0 %v2577
        %2676 = vmatpush1.bf16.msra.mxu0 %v2576
        %2677 = vmatprep.subr.bf16.mxu0 %v2581
        %2678 = vmatpush1.bf16.msra.mxu0 %v2580
        %2679 = vmatprep.subr.bf16.mxu0 %v2585
        %2680 = vmatpush1.bf16.msra.mxu0 %v2584
        %2681 = vmatprep.subr.bf16.mxu0 %v2589
        %2682 = vmatpush1.bf16.msra.mxu0 %v2588
        %2683 = vmatprep.subr.bf16.mxu0 %v2593
        %2684 = vmatpush1.bf16.msra.mxu0 %v2592
        %2685 = vmatprep.subr.bf16.mxu0 %v2597
        %2686 = vmatpush1.bf16.msra.mxu0 %v2596
        %2687 = vmatprep.subr.bf16.mxu0 0
        %2688 = vmatpush1.bf16.msra.mxu0 0
        %2689 = vmatprep.subr.bf16.mxu0 0
        %2690 = vmatpush1.bf16.msra.mxu0 0
        %2691 = vmatprep.subr.bf16.mxu0 0
        %2692 = vmatpush1.bf16.msra.mxu0 0
        %2693 = vmatprep.subr.bf16.mxu0 0
        %2694 = vmatpush1.bf16.msra.mxu0 0
        %2695 = vmatprep.subr.bf16.mxu0 0
        %2696 = vmatpush1.bf16.msra.mxu0 0
        %2697 = vmatprep.subr.bf16.mxu0 0
        %2698 = vmatpush1.bf16.msra.mxu0 0
        %2699 = vmatprep.subr.bf16.mxu0 0
        %2700 = vmatpush1.bf16.msra.mxu0 0
        %2701 = vmatprep.subr.bf16.mxu0 0
        %2702 = vmatpush1.bf16.msra.mxu0 0
        %2703 = vmatprep.mubr.bf16.mxu0 0
        %2704 = vmatmul.mubr.bf16.gmra.mrb[0].mxu0 %v2437
        %v2705 = vpop.f32.mrb[0].mxu0
        %v2706 = vadd.f32 0.0, %v2705
        %v2707 = vpop.f32.mrb[0].mxu0
        %v2708 = vadd.f32 0.0, %v2707
        %v2709 = vpop.f32.mrb[0].mxu0
        %v2710 = vpop.f32.mrb[0].mxu0
        %2711 = vdwg.mxu0
        %v2712 = vadd.f32 %v1049, %v2665
        %v2713 = vadd.f32 %v1051, %v2667
        %v2714 = vadd.f32 %v1090, %v2706
        %v2715 = vadd.f32 %v1092, %v2708
        %v2716 = vmax.f32 %v2712, 0.0
        %v2717 = vmax.f32 %v2713, 0.0
        %v2718 = vmax.f32 %v2714, 0.0
        %v2719 = vmax.f32 %v2715, 0.0
        %v2720 = vpack.c.bf16 %v2716, %v2716
        %v2721 = vpack.c.bf16 %v2717, %v2717
        %v2722 = vpack.c.bf16 %v2718, %v2718
        %v2723 = vpack.c.bf16 %v2719, %v2719
        %v2724 = vld [vmem:[#allocation16] sm:$0xff]
        %v2725 = vld [vmem:[#allocation16 + $0x8] sm:$0xff]
        %v2726 = vld [vmem:[#allocation16 + $0x10] sm:$0xff]
        %v2727 = vld [vmem:[#allocation16 + $0x18] sm:$0xff]
        %v2728 = vld [vmem:[#allocation16 + $0x20] sm:$0xff]
        %v2729 = vld [vmem:[#allocation16 + $0x28] sm:$0xff]
        %v2730 = vld [vmem:[#allocation16 + $0x30] sm:$0xff]
        %v2731 = vld [vmem:[#allocation16 + $0x38] sm:$0xff]
        %v2732 = vld [vmem:[#allocation16 + $0x40] sm:$0xff]
        %v2733 = vld [vmem:[#allocation16 + $0x48] sm:$0xff]
        %v2734 = vld [vmem:[#allocation16 + $0x50] sm:$0xff]
        %v2735 = vld [vmem:[#allocation16 + $0x58] sm:$0xff]
        %v2736 = vld [vmem:[#allocation16 + $0x60] sm:$0xff]
        %v2737 = vld [vmem:[#allocation16 + $0x68] sm:$0xff]
        %v2738 = vld [vmem:[#allocation16 + $0x70] sm:$0xff]
        %v2739 = vld [vmem:[#allocation16 + $0x78] sm:$0xff]
        %v2740 = vld [vmem:[#allocation16 + $0x80] sm:$0xff]
        %v2741 = vld [vmem:[#allocation16 + $0x88] sm:$0xff]
        %v2742 = vld [vmem:[#allocation16 + $0x90] sm:$0xff]
        %v2743 = vld [vmem:[#allocation16 + $0x98] sm:$0xff]
        %v2744 = vld [vmem:[#allocation16 + $0xa0] sm:$0xff]
        %v2745 = vld [vmem:[#allocation16 + $0xa8] sm:$0xff]
        %v2746 = vld [vmem:[#allocation16 + $0xb0] sm:$0xff]
        %v2747 = vld [vmem:[#allocation16 + $0xb8] sm:$0xff]
        %v2748 = vld [vmem:[#allocation16 + $0xc0] sm:$0xff]
        %v2749 = vld [vmem:[#allocation16 + $0xc8] sm:$0xff]
        %v2750 = vld [vmem:[#allocation16 + $0xd0] sm:$0xff]
        %v2751 = vld [vmem:[#allocation16 + $0xd8] sm:$0xff]
        %v2752 = vld [vmem:[#allocation16 + $0xe0] sm:$0xff]
        %v2753 = vld [vmem:[#allocation16 + $0xe8] sm:$0xff]
        %v2754 = vld [vmem:[#allocation16 + $0xf0] sm:$0xff]
        %v2755 = vld [vmem:[#allocation16 + $0xf8] sm:$0xff]
        %v2756 = vld [vmem:[#allocation16 + $0x100] sm:$0xff]
        %v2757 = vld [vmem:[#allocation16 + $0x108] sm:$0xff]
        %v2758 = vld [vmem:[#allocation16 + $0x110] sm:$0xff]
        %v2759 = vld [vmem:[#allocation16 + $0x118] sm:$0xff]
        %v2760 = vld [vmem:[#allocation16 + $0x120] sm:$0xff]
        %v2761 = vld [vmem:[#allocation16 + $0x128] sm:$0xff]
        %v2762 = vld [vmem:[#allocation16 + $0x130] sm:$0xff]
        %v2763 = vld [vmem:[#allocation16 + $0x138] sm:$0xff]
        %v2764 = vld [vmem:[#allocation16 + $0x140] sm:$0xff]
        %v2765 = vld [vmem:[#allocation16 + $0x148] sm:$0xff]
        %v2766 = vld [vmem:[#allocation16 + $0x150] sm:$0xff]
        %v2767 = vld [vmem:[#allocation16 + $0x158] sm:$0xff]
        %v2768 = vld [vmem:[#allocation16 + $0x160] sm:$0xff]
        %v2769 = vld [vmem:[#allocation16 + $0x168] sm:$0xff]
        %v2770 = vld [vmem:[#allocation16 + $0x170] sm:$0xff]
        %v2771 = vld [vmem:[#allocation16 + $0x178] sm:$0xff]
        %v2772 = vld [vmem:[#allocation16 + $0x180] sm:$0xff]
        %v2773 = vld [vmem:[#allocation16 + $0x188] sm:$0xff]
        %v2774 = vld [vmem:[#allocation16 + $0x190] sm:$0xff]
        %v2775 = vld [vmem:[#allocation16 + $0x198] sm:$0xff]
        %v2776 = vld [vmem:[#allocation16 + $0x1a0] sm:$0xff]
        %v2777 = vld [vmem:[#allocation16 + $0x1a8] sm:$0xff]
        %v2778 = vld [vmem:[#allocation16 + $0x1b0] sm:$0xff]
        %v2779 = vld [vmem:[#allocation16 + $0x1b8] sm:$0xff]
        %v2780 = vld [vmem:[#allocation16 + $0x1c0] sm:$0xff]
        %v2781 = vld [vmem:[#allocation16 + $0x1c8] sm:$0xff]
        %v2782 = vld [vmem:[#allocation16 + $0x1d0] sm:$0xff]
        %v2783 = vld [vmem:[#allocation16 + $0x1d8] sm:$0xff]
        %v2784 = vld [vmem:[#allocation16 + $0x1e0] sm:$0xff]
        %v2785 = vld [vmem:[#allocation16 + $0x1e8] sm:$0xff]
        %v2786 = vld [vmem:[#allocation16 + $0x1f0] sm:$0xff]
        %v2787 = vld [vmem:[#allocation16 + $0x1f8] sm:$0xff]
        %v2788 = vld [vmem:[#allocation16 + $0x200] sm:$0xff]
        %v2789 = vld [vmem:[#allocation16 + $0x208] sm:$0xff]
        %v2790 = vld [vmem:[#allocation16 + $0x210] sm:$0xff]
        %v2791 = vld [vmem:[#allocation16 + $0x218] sm:$0xff]
        %v2792 = vld [vmem:[#allocation16 + $0x220] sm:$0xff]
        %v2793 = vld [vmem:[#allocation16 + $0x228] sm:$0xff]
        %v2794 = vld [vmem:[#allocation16 + $0x230] sm:$0xff]
        %v2795 = vld [vmem:[#allocation16 + $0x238] sm:$0xff]
        %v2796 = vld [vmem:[#allocation16 + $0x240] sm:$0xff]
        %v2797 = vld [vmem:[#allocation16 + $0x248] sm:$0xff]
        %v2798 = vld [vmem:[#allocation16 + $0x250] sm:$0xff]
        %v2799 = vld [vmem:[#allocation16 + $0x258] sm:$0xff]
        %v2800 = vld [vmem:[#allocation16 + $0x260] sm:$0xff]
        %v2801 = vld [vmem:[#allocation16 + $0x268] sm:$0xff]
        %v2802 = vld [vmem:[#allocation16 + $0x270] sm:$0xff]
        %v2803 = vld [vmem:[#allocation16 + $0x278] sm:$0xff]
        %v2804 = vld [vmem:[#allocation16 + $0x280] sm:$0xff]
        %v2805 = vld [vmem:[#allocation16 + $0x288] sm:$0xff]
        %v2806 = vld [vmem:[#allocation16 + $0x290] sm:$0xff]
        %v2807 = vld [vmem:[#allocation16 + $0x298] sm:$0xff]
        %v2808 = vld [vmem:[#allocation16 + $0x2a0] sm:$0xff]
        %v2809 = vld [vmem:[#allocation16 + $0x2a8] sm:$0xff]
        %v2810 = vld [vmem:[#allocation16 + $0x2b0] sm:$0xff]
        %v2811 = vld [vmem:[#allocation16 + $0x2b8] sm:$0xff]
        %v2812 = vld [vmem:[#allocation16 + $0x2c0] sm:$0xff]
        %v2813 = vld [vmem:[#allocation16 + $0x2c8] sm:$0xff]
        %v2814 = vld [vmem:[#allocation16 + $0x2d0] sm:$0xff]
        %v2815 = vld [vmem:[#allocation16 + $0x2d8] sm:$0xff]
        %v2816 = vld [vmem:[#allocation16 + $0x2e0] sm:$0xff]
        %v2817 = vld [vmem:[#allocation16 + $0x2e8] sm:$0xff]
        %v2818 = vld [vmem:[#allocation16 + $0x2f0] sm:$0xff]
        %v2819 = vld [vmem:[#allocation16 + $0x2f8] sm:$0xff]
        %v2820 = vld [vmem:[#allocation16 + $0x300] sm:$0xff]
        %v2821 = vld [vmem:[#allocation16 + $0x308] sm:$0xff]
        %v2822 = vld [vmem:[#allocation16 + $0x310] sm:$0xff]
        %v2823 = vld [vmem:[#allocation16 + $0x318] sm:$0xff]
        %v2824 = vld [vmem:[#allocation16 + $0x320] sm:$0xff]
        %v2825 = vld [vmem:[#allocation16 + $0x328] sm:$0xff]
        %v2826 = vld [vmem:[#allocation16 + $0x330] sm:$0xff]
        %v2827 = vld [vmem:[#allocation16 + $0x338] sm:$0xff]
        %v2828 = vld [vmem:[#allocation16 + $0x340] sm:$0xff]
        %v2829 = vld [vmem:[#allocation16 + $0x348] sm:$0xff]
        %v2830 = vld [vmem:[#allocation16 + $0x350] sm:$0xff]
        %v2831 = vld [vmem:[#allocation16 + $0x358] sm:$0xff]
        %v2832 = vld [vmem:[#allocation16 + $0x360] sm:$0xff]
        %v2833 = vld [vmem:[#allocation16 + $0x368] sm:$0xff]
        %v2834 = vld [vmem:[#allocation16 + $0x370] sm:$0xff]
        %v2835 = vld [vmem:[#allocation16 + $0x378] sm:$0xff]
        %v2836 = vld [vmem:[#allocation16 + $0x380] sm:$0xff]
        %v2837 = vld [vmem:[#allocation16 + $0x388] sm:$0xff]
        %v2838 = vld [vmem:[#allocation16 + $0x390] sm:$0xff]
        %v2839 = vld [vmem:[#allocation16 + $0x398] sm:$0xff]
        %v2840 = vld [vmem:[#allocation16 + $0x3a0] sm:$0xff]
        %v2841 = vld [vmem:[#allocation16 + $0x3a8] sm:$0xff]
        %v2842 = vld [vmem:[#allocation16 + $0x3b0] sm:$0xff]
        %v2843 = vld [vmem:[#allocation16 + $0x3b8] sm:$0xff]
        %v2844 = vld [vmem:[#allocation16 + $0x3c0] sm:$0xff]
        %v2845 = vld [vmem:[#allocation16 + $0x3c8] sm:$0xff]
        %v2846 = vld [vmem:[#allocation16 + $0x3d0] sm:$0xff]
        %v2847 = vld [vmem:[#allocation16 + $0x3d8] sm:$0xff]
        %v2848 = vld [vmem:[#allocation16 + $0x3e0] sm:$0xff]
        %v2849 = vld [vmem:[#allocation16 + $0x3e8] sm:$0xff]
        %v2850 = vld [vmem:[#allocation16 + $0x3f0] sm:$0xff]
        %v2851 = vld [vmem:[#allocation16 + $0x3f8] sm:$0xff]
        %v2852 = vld [vmem:[#allocation17] sm:$0xf]
        %v2854 = vlaneseq
        %v2855 = vshrl.u32 %v2854, 7
        %v2856 = vsub.s32 0, %v2855
        %v2857 = vrot.slane %v2852, %v2856
        %v2858 = vlaneseq
        %v2859 = vshrl.u32 %v2858, 7
        %v2860 = vsub.s32 1, %v2859
        %v2861 = vrot.slane %v2852, %v2860
        %v2862 = vlaneseq
        %v2863 = vshrl.u32 %v2862, 7
        %v2864 = vsub.s32 2, %v2863
        %v2865 = vrot.slane %v2852, %v2864
        %v2866 = vlaneseq
        %v2867 = vshrl.u32 %v2866, 7
        %v2868 = vsub.s32 3, %v2867
        %v2869 = vrot.slane %v2852, %v2868
        %v3002 = vunpack.c.l.b16 %v2724
        %v3003 = vunpack.c.h.b16 %v2724
        %v3004 = vunpack.c.l.b16 %v2725
        %v3005 = vunpack.c.h.b16 %v2725
        %v3006 = vunpack.c.l.b16 %v2726
        %v3007 = vunpack.c.h.b16 %v2726
        %v3008 = vunpack.c.l.b16 %v2727
        %v3009 = vunpack.c.h.b16 %v2727
        %v3010 = vunpack.c.l.b16 %v2728
        %v3011 = vunpack.c.h.b16 %v2728
        %v3012 = vunpack.c.l.b16 %v2729
        %v3013 = vunpack.c.h.b16 %v2729
        %v3014 = vunpack.c.l.b16 %v2730
        %v3015 = vunpack.c.h.b16 %v2730
        %v3016 = vunpack.c.l.b16 %v2731
        %v3017 = vunpack.c.h.b16 %v2731
        %v3018 = vunpack.c.l.b16 %v2732
        %v3019 = vunpack.c.h.b16 %v2732
        %v3020 = vunpack.c.l.b16 %v2733
        %v3021 = vunpack.c.h.b16 %v2733
        %v3022 = vunpack.c.l.b16 %v2734
        %v3023 = vunpack.c.h.b16 %v2734
        %v3024 = vunpack.c.l.b16 %v2735
        %v3025 = vunpack.c.h.b16 %v2735
        %v3026 = vunpack.c.l.b16 %v2736
        %v3027 = vunpack.c.h.b16 %v2736
        %v3028 = vunpack.c.l.b16 %v2737
        %v3029 = vunpack.c.h.b16 %v2737
        %v3030 = vunpack.c.l.b16 %v2738
        %v3031 = vunpack.c.h.b16 %v2738
        %v3032 = vunpack.c.l.b16 %v2739
        %v3033 = vunpack.c.h.b16 %v2739
        %v3034 = vunpack.c.l.b16 %v2740
        %v3035 = vunpack.c.h.b16 %v2740
        %v3036 = vunpack.c.l.b16 %v2741
        %v3037 = vunpack.c.h.b16 %v2741
        %v3038 = vunpack.c.l.b16 %v2742
        %v3039 = vunpack.c.h.b16 %v2742
        %v3040 = vunpack.c.l.b16 %v2743
        %v3041 = vunpack.c.h.b16 %v2743
        %v3042 = vunpack.c.l.b16 %v2744
        %v3043 = vunpack.c.h.b16 %v2744
        %v3044 = vunpack.c.l.b16 %v2745
        %v3045 = vunpack.c.h.b16 %v2745
        %v3046 = vunpack.c.l.b16 %v2746
        %v3047 = vunpack.c.h.b16 %v2746
        %v3048 = vunpack.c.l.b16 %v2747
        %v3049 = vunpack.c.h.b16 %v2747
        %v3050 = vunpack.c.l.b16 %v2748
        %v3051 = vunpack.c.h.b16 %v2748
        %v3052 = vunpack.c.l.b16 %v2749
        %v3053 = vunpack.c.h.b16 %v2749
        %v3054 = vunpack.c.l.b16 %v2750
        %v3055 = vunpack.c.h.b16 %v2750
        %v3056 = vunpack.c.l.b16 %v2751
        %v3057 = vunpack.c.h.b16 %v2751
        %v3058 = vunpack.c.l.b16 %v2752
        %v3059 = vunpack.c.h.b16 %v2752
        %v3060 = vunpack.c.l.b16 %v2753
        %v3061 = vunpack.c.h.b16 %v2753
        %v3062 = vunpack.c.l.b16 %v2754
        %v3063 = vunpack.c.h.b16 %v2754
        %v3064 = vunpack.c.l.b16 %v2755
        %v3065 = vunpack.c.h.b16 %v2755
        %v3066 = vunpack.c.l.b16 %v2756
        %v3067 = vunpack.c.h.b16 %v2756
        %v3068 = vunpack.c.l.b16 %v2757
        %v3069 = vunpack.c.h.b16 %v2757
        %v3070 = vunpack.c.l.b16 %v2758
        %v3071 = vunpack.c.h.b16 %v2758
        %v3072 = vunpack.c.l.b16 %v2759
        %v3073 = vunpack.c.h.b16 %v2759
        %v3074 = vunpack.c.l.b16 %v2760
        %v3075 = vunpack.c.h.b16 %v2760
        %v3076 = vunpack.c.l.b16 %v2761
        %v3077 = vunpack.c.h.b16 %v2761
        %v3078 = vunpack.c.l.b16 %v2762
        %v3079 = vunpack.c.h.b16 %v2762
        %v3080 = vunpack.c.l.b16 %v2763
        %v3081 = vunpack.c.h.b16 %v2763
        %v3082 = vunpack.c.l.b16 %v2764
        %v3083 = vunpack.c.h.b16 %v2764
        %v3084 = vunpack.c.l.b16 %v2765
        %v3085 = vunpack.c.h.b16 %v2765
        %v3086 = vunpack.c.l.b16 %v2766
        %v3087 = vunpack.c.h.b16 %v2766
        %v3088 = vunpack.c.l.b16 %v2767
        %v3089 = vunpack.c.h.b16 %v2767
        %v3090 = vunpack.c.l.b16 %v2768
        %v3091 = vunpack.c.h.b16 %v2768
        %v3092 = vunpack.c.l.b16 %v2769
        %v3093 = vunpack.c.h.b16 %v2769
        %v3094 = vunpack.c.l.b16 %v2770
        %v3095 = vunpack.c.h.b16 %v2770
        %v3096 = vunpack.c.l.b16 %v2771
        %v3097 = vunpack.c.h.b16 %v2771
        %v3098 = vunpack.c.l.b16 %v2772
        %v3099 = vunpack.c.h.b16 %v2772
        %v3100 = vunpack.c.l.b16 %v2773
        %v3101 = vunpack.c.h.b16 %v2773
        %v3102 = vunpack.c.l.b16 %v2774
        %v3103 = vunpack.c.h.b16 %v2774
        %v3104 = vunpack.c.l.b16 %v2775
        %v3105 = vunpack.c.h.b16 %v2775
        %v3106 = vunpack.c.l.b16 %v2776
        %v3107 = vunpack.c.h.b16 %v2776
        %v3108 = vunpack.c.l.b16 %v2777
        %v3109 = vunpack.c.h.b16 %v2777
        %v3110 = vunpack.c.l.b16 %v2778
        %v3111 = vunpack.c.h.b16 %v2778
        %v3112 = vunpack.c.l.b16 %v2779
        %v3113 = vunpack.c.h.b16 %v2779
        %v3114 = vunpack.c.l.b16 %v2780
        %v3115 = vunpack.c.h.b16 %v2780
        %v3116 = vunpack.c.l.b16 %v2781
        %v3117 = vunpack.c.h.b16 %v2781
        %v3118 = vunpack.c.l.b16 %v2782
        %v3119 = vunpack.c.h.b16 %v2782
        %v3120 = vunpack.c.l.b16 %v2783
        %v3121 = vunpack.c.h.b16 %v2783
        %v3122 = vunpack.c.l.b16 %v2784
        %v3123 = vunpack.c.h.b16 %v2784
        %v3124 = vunpack.c.l.b16 %v2785
        %v3125 = vunpack.c.h.b16 %v2785
        %v3126 = vunpack.c.l.b16 %v2786
        %v3127 = vunpack.c.h.b16 %v2786
        %v3128 = vunpack.c.l.b16 %v2787
        %v3129 = vunpack.c.h.b16 %v2787
        %v3130 = vunpack.c.l.b16 %v2788
        %v3131 = vunpack.c.h.b16 %v2788
        %v3132 = vunpack.c.l.b16 %v2789
        %v3133 = vunpack.c.h.b16 %v2789
        %v3134 = vunpack.c.l.b16 %v2790
        %v3135 = vunpack.c.h.b16 %v2790
        %v3136 = vunpack.c.l.b16 %v2791
        %v3137 = vunpack.c.h.b16 %v2791
        %v3138 = vunpack.c.l.b16 %v2792
        %v3139 = vunpack.c.h.b16 %v2792
        %v3140 = vunpack.c.l.b16 %v2793
        %v3141 = vunpack.c.h.b16 %v2793
        %v3142 = vunpack.c.l.b16 %v2794
        %v3143 = vunpack.c.h.b16 %v2794
        %v3144 = vunpack.c.l.b16 %v2795
        %v3145 = vunpack.c.h.b16 %v2795
        %v3146 = vunpack.c.l.b16 %v2796
        %v3147 = vunpack.c.h.b16 %v2796
        %v3148 = vunpack.c.l.b16 %v2797
        %v3149 = vunpack.c.h.b16 %v2797
        %v3150 = vunpack.c.l.b16 %v2798
        %v3151 = vunpack.c.h.b16 %v2798
        %v3152 = vunpack.c.l.b16 %v2799
        %v3153 = vunpack.c.h.b16 %v2799
        %v3154 = vunpack.c.l.b16 %v2800
        %v3155 = vunpack.c.h.b16 %v2800
        %v3156 = vunpack.c.l.b16 %v2801
        %v3157 = vunpack.c.h.b16 %v2801
        %v3158 = vunpack.c.l.b16 %v2802
        %v3159 = vunpack.c.h.b16 %v2802
        %v3160 = vunpack.c.l.b16 %v2803
        %v3161 = vunpack.c.h.b16 %v2803
        %v3162 = vunpack.c.l.b16 %v2804
        %v3163 = vunpack.c.h.b16 %v2804
        %v3164 = vunpack.c.l.b16 %v2805
        %v3165 = vunpack.c.h.b16 %v2805
        %v3166 = vunpack.c.l.b16 %v2806
        %v3167 = vunpack.c.h.b16 %v2806
        %v3168 = vunpack.c.l.b16 %v2807
        %v3169 = vunpack.c.h.b16 %v2807
        %v3170 = vunpack.c.l.b16 %v2808
        %v3171 = vunpack.c.h.b16 %v2808
        %v3172 = vunpack.c.l.b16 %v2809
        %v3173 = vunpack.c.h.b16 %v2809
        %v3174 = vunpack.c.l.b16 %v2810
        %v3175 = vunpack.c.h.b16 %v2810
        %v3176 = vunpack.c.l.b16 %v2811
        %v3177 = vunpack.c.h.b16 %v2811
        %v3178 = vunpack.c.l.b16 %v2812
        %v3179 = vunpack.c.h.b16 %v2812
        %v3180 = vunpack.c.l.b16 %v2813
        %v3181 = vunpack.c.h.b16 %v2813
        %v3182 = vunpack.c.l.b16 %v2814
        %v3183 = vunpack.c.h.b16 %v2814
        %v3184 = vunpack.c.l.b16 %v2815
        %v3185 = vunpack.c.h.b16 %v2815
        %v3186 = vunpack.c.l.b16 %v2816
        %v3187 = vunpack.c.h.b16 %v2816
        %v3188 = vunpack.c.l.b16 %v2817
        %v3189 = vunpack.c.h.b16 %v2817
        %v3190 = vunpack.c.l.b16 %v2818
        %v3191 = vunpack.c.h.b16 %v2818
        %v3192 = vunpack.c.l.b16 %v2819
        %v3193 = vunpack.c.h.b16 %v2819
        %v3194 = vunpack.c.l.b16 %v2820
        %v3195 = vunpack.c.h.b16 %v2820
        %v3196 = vunpack.c.l.b16 %v2821
        %v3197 = vunpack.c.h.b16 %v2821
        %v3198 = vunpack.c.l.b16 %v2822
        %v3199 = vunpack.c.h.b16 %v2822
        %v3200 = vunpack.c.l.b16 %v2823
        %v3201 = vunpack.c.h.b16 %v2823
        %v3202 = vunpack.c.l.b16 %v2824
        %v3203 = vunpack.c.h.b16 %v2824
        %v3204 = vunpack.c.l.b16 %v2825
        %v3205 = vunpack.c.h.b16 %v2825
        %v3206 = vunpack.c.l.b16 %v2826
        %v3207 = vunpack.c.h.b16 %v2826
        %v3208 = vunpack.c.l.b16 %v2827
        %v3209 = vunpack.c.h.b16 %v2827
        %v3210 = vunpack.c.l.b16 %v2828
        %v3211 = vunpack.c.h.b16 %v2828
        %v3212 = vunpack.c.l.b16 %v2829
        %v3213 = vunpack.c.h.b16 %v2829
        %v3214 = vunpack.c.l.b16 %v2830
        %v3215 = vunpack.c.h.b16 %v2830
        %v3216 = vunpack.c.l.b16 %v2831
        %v3217 = vunpack.c.h.b16 %v2831
        %v3218 = vunpack.c.l.b16 %v2832
        %v3219 = vunpack.c.h.b16 %v2832
        %v3220 = vunpack.c.l.b16 %v2833
        %v3221 = vunpack.c.h.b16 %v2833
        %v3222 = vunpack.c.l.b16 %v2834
        %v3223 = vunpack.c.h.b16 %v2834
        %v3224 = vunpack.c.l.b16 %v2835
        %v3225 = vunpack.c.h.b16 %v2835
        %v3226 = vunpack.c.l.b16 %v2836
        %v3227 = vunpack.c.h.b16 %v2836
        %v3228 = vunpack.c.l.b16 %v2837
        %v3229 = vunpack.c.h.b16 %v2837
        %v3230 = vunpack.c.l.b16 %v2838
        %v3231 = vunpack.c.h.b16 %v2838
        %v3232 = vunpack.c.l.b16 %v2839
        %v3233 = vunpack.c.h.b16 %v2839
        %v3234 = vunpack.c.l.b16 %v2840
        %v3235 = vunpack.c.h.b16 %v2840
        %v3236 = vunpack.c.l.b16 %v2841
        %v3237 = vunpack.c.h.b16 %v2841
        %v3238 = vunpack.c.l.b16 %v2842
        %v3239 = vunpack.c.h.b16 %v2842
        %v3240 = vunpack.c.l.b16 %v2843
        %v3241 = vunpack.c.h.b16 %v2843
        %v3242 = vunpack.c.l.b16 %v2844
        %v3243 = vunpack.c.h.b16 %v2844
        %v3244 = vunpack.c.l.b16 %v2845
        %v3245 = vunpack.c.h.b16 %v2845
        %v3246 = vunpack.c.l.b16 %v2846
        %v3247 = vunpack.c.h.b16 %v2846
        %v3248 = vunpack.c.l.b16 %v2847
        %v3249 = vunpack.c.h.b16 %v2847
        %v3250 = vunpack.c.l.b16 %v2848
        %v3251 = vunpack.c.h.b16 %v2848
        %v3252 = vunpack.c.l.b16 %v2849
        %v3253 = vunpack.c.h.b16 %v2849
        %v3254 = vunpack.c.l.b16 %v2850
        %v3255 = vunpack.c.h.b16 %v2850
        %v3256 = vunpack.c.l.b16 %v2851
        %v3257 = vunpack.c.h.b16 %v2851
        %v3258 = vpack.c.b16 %v3006, %v3002
        %v3259 = vpack.c.b16 %v3007, %v3003
        %v3260 = vpack.c.b16 %v3008, %v3004
        %v3261 = vpack.c.b16 %v3009, %v3005
        %v3262 = vpack.c.b16 %v3014, %v3010
        %v3263 = vpack.c.b16 %v3015, %v3011
        %v3264 = vpack.c.b16 %v3016, %v3012
        %v3265 = vpack.c.b16 %v3017, %v3013
        %v3266 = vpack.c.b16 %v3022, %v3018
        %v3267 = vpack.c.b16 %v3023, %v3019
        %v3268 = vpack.c.b16 %v3024, %v3020
        %v3269 = vpack.c.b16 %v3025, %v3021
        %v3270 = vpack.c.b16 %v3030, %v3026
        %v3271 = vpack.c.b16 %v3031, %v3027
        %v3272 = vpack.c.b16 %v3032, %v3028
        %v3273 = vpack.c.b16 %v3033, %v3029
        %v3274 = vpack.c.b16 %v3038, %v3034
        %v3275 = vpack.c.b16 %v3039, %v3035
        %v3276 = vpack.c.b16 %v3040, %v3036
        %v3277 = vpack.c.b16 %v3041, %v3037
        %v3278 = vpack.c.b16 %v3046, %v3042
        %v3279 = vpack.c.b16 %v3047, %v3043
        %v3280 = vpack.c.b16 %v3048, %v3044
        %v3281 = vpack.c.b16 %v3049, %v3045
        %v3282 = vpack.c.b16 %v3054, %v3050
        %v3283 = vpack.c.b16 %v3055, %v3051
        %v3284 = vpack.c.b16 %v3056, %v3052
        %v3285 = vpack.c.b16 %v3057, %v3053
        %v3286 = vpack.c.b16 %v3062, %v3058
        %v3287 = vpack.c.b16 %v3063, %v3059
        %v3288 = vpack.c.b16 %v3064, %v3060
        %v3289 = vpack.c.b16 %v3065, %v3061
        %v3290 = vpack.c.b16 %v3070, %v3066
        %v3291 = vpack.c.b16 %v3071, %v3067
        %v3292 = vpack.c.b16 %v3072, %v3068
        %v3293 = vpack.c.b16 %v3073, %v3069
        %v3294 = vpack.c.b16 %v3078, %v3074
        %v3295 = vpack.c.b16 %v3079, %v3075
        %v3296 = vpack.c.b16 %v3080, %v3076
        %v3297 = vpack.c.b16 %v3081, %v3077
        %v3298 = vpack.c.b16 %v3086, %v3082
        %v3299 = vpack.c.b16 %v3087, %v3083
        %v3300 = vpack.c.b16 %v3088, %v3084
        %v3301 = vpack.c.b16 %v3089, %v3085
        %v3302 = vpack.c.b16 %v3094, %v3090
        %v3303 = vpack.c.b16 %v3095, %v3091
        %v3304 = vpack.c.b16 %v3096, %v3092
        %v3305 = vpack.c.b16 %v3097, %v3093
        %v3306 = vpack.c.b16 %v3102, %v3098
        %v3307 = vpack.c.b16 %v3103, %v3099
        %v3308 = vpack.c.b16 %v3104, %v3100
        %v3309 = vpack.c.b16 %v3105, %v3101
        %v3310 = vpack.c.b16 %v3110, %v3106
        %v3311 = vpack.c.b16 %v3111, %v3107
        %v3312 = vpack.c.b16 %v3112, %v3108
        %v3313 = vpack.c.b16 %v3113, %v3109
        %v3314 = vpack.c.b16 %v3118, %v3114
        %v3315 = vpack.c.b16 %v3119, %v3115
        %v3316 = vpack.c.b16 %v3120, %v3116
        %v3317 = vpack.c.b16 %v3121, %v3117
        %v3318 = vpack.c.b16 %v3126, %v3122
        %v3319 = vpack.c.b16 %v3127, %v3123
        %v3320 = vpack.c.b16 %v3128, %v3124
        %v3321 = vpack.c.b16 %v3129, %v3125
        %v3322 = vpack.c.b16 %v3134, %v3130
        %v3323 = vpack.c.b16 %v3135, %v3131
        %v3324 = vpack.c.b16 %v3136, %v3132
        %v3325 = vpack.c.b16 %v3137, %v3133
        %v3326 = vpack.c.b16 %v3142, %v3138
        %v3327 = vpack.c.b16 %v3143, %v3139
        %v3328 = vpack.c.b16 %v3144, %v3140
        %v3329 = vpack.c.b16 %v3145, %v3141
        %v3330 = vpack.c.b16 %v3150, %v3146
        %v3331 = vpack.c.b16 %v3151, %v3147
        %v3332 = vpack.c.b16 %v3152, %v3148
        %v3333 = vpack.c.b16 %v3153, %v3149
        %v3334 = vpack.c.b16 %v3158, %v3154
        %v3335 = vpack.c.b16 %v3159, %v3155
        %v3336 = vpack.c.b16 %v3160, %v3156
        %v3337 = vpack.c.b16 %v3161, %v3157
        %v3338 = vpack.c.b16 %v3166, %v3162
        %v3339 = vpack.c.b16 %v3167, %v3163
        %v3340 = vpack.c.b16 %v3168, %v3164
        %v3341 = vpack.c.b16 %v3169, %v3165
        %v3342 = vpack.c.b16 %v3174, %v3170
        %v3343 = vpack.c.b16 %v3175, %v3171
        %v3344 = vpack.c.b16 %v3176, %v3172
        %v3345 = vpack.c.b16 %v3177, %v3173
        %v3346 = vpack.c.b16 %v3182, %v3178
        %v3347 = vpack.c.b16 %v3183, %v3179
        %v3348 = vpack.c.b16 %v3184, %v3180
        %v3349 = vpack.c.b16 %v3185, %v3181
        %v3350 = vpack.c.b16 %v3190, %v3186
        %v3351 = vpack.c.b16 %v3191, %v3187
        %v3352 = vpack.c.b16 %v3192, %v3188
        %v3353 = vpack.c.b16 %v3193, %v3189
        %v3354 = vpack.c.b16 %v3198, %v3194
        %v3355 = vpack.c.b16 %v3199, %v3195
        %v3356 = vpack.c.b16 %v3200, %v3196
        %v3357 = vpack.c.b16 %v3201, %v3197
        %v3358 = vpack.c.b16 %v3206, %v3202
        %v3359 = vpack.c.b16 %v3207, %v3203
        %v3360 = vpack.c.b16 %v3208, %v3204
        %v3361 = vpack.c.b16 %v3209, %v3205
        %v3362 = vpack.c.b16 %v3214, %v3210
        %v3363 = vpack.c.b16 %v3215, %v3211
        %v3364 = vpack.c.b16 %v3216, %v3212
        %v3365 = vpack.c.b16 %v3217, %v3213
        %v3366 = vpack.c.b16 %v3222, %v3218
        %v3367 = vpack.c.b16 %v3223, %v3219
        %v3368 = vpack.c.b16 %v3224, %v3220
        %v3369 = vpack.c.b16 %v3225, %v3221
        %v3370 = vpack.c.b16 %v3230, %v3226
        %v3371 = vpack.c.b16 %v3231, %v3227
        %v3372 = vpack.c.b16 %v3232, %v3228
        %v3373 = vpack.c.b16 %v3233, %v3229
        %v3374 = vpack.c.b16 %v3238, %v3234
        %v3375 = vpack.c.b16 %v3239, %v3235
        %v3376 = vpack.c.b16 %v3240, %v3236
        %v3377 = vpack.c.b16 %v3241, %v3237
        %v3378 = vpack.c.b16 %v3246, %v3242
        %v3379 = vpack.c.b16 %v3247, %v3243
        %v3380 = vpack.c.b16 %v3248, %v3244
        %v3381 = vpack.c.b16 %v3249, %v3245
        %v3382 = vpack.c.b16 %v3254, %v3250
        %v3383 = vpack.c.b16 %v3255, %v3251
        %v3384 = vpack.c.b16 %v3256, %v3252
        %v3385 = vpack.c.b16 %v3257, %v3253
        %3514 = vmatprep.subr.bf16.mxu0 %v3259
        %3515 = vmatpush1.bf16.msra.mxu0 %v3258
        %3516 = vmatprep.subr.bf16.mxu0 %v3263
        %3517 = vmatpush1.bf16.msra.mxu0 %v3262
        %3518 = vmatprep.subr.bf16.mxu0 %v3267
        %3519 = vmatpush1.bf16.msra.mxu0 %v3266
        %3520 = vmatprep.subr.bf16.mxu0 %v3271
        %3521 = vmatpush1.bf16.msra.mxu0 %v3270
        %3522 = vmatprep.subr.bf16.mxu0 %v3275
        %3523 = vmatpush1.bf16.msra.mxu0 %v3274
        %3524 = vmatprep.subr.bf16.mxu0 %v3279
        %3525 = vmatpush1.bf16.msra.mxu0 %v3278
        %3526 = vmatprep.subr.bf16.mxu0 %v3283
        %3527 = vmatpush1.bf16.msra.mxu0 %v3282
        %3528 = vmatprep.subr.bf16.mxu0 %v3287
        %3529 = vmatpush1.bf16.msra.mxu0 %v3286
        %3530 = vmatprep.subr.bf16.mxu0 %v3291
        %3531 = vmatpush1.bf16.msra.mxu0 %v3290
        %3532 = vmatprep.subr.bf16.mxu0 %v3295
        %3533 = vmatpush1.bf16.msra.mxu0 %v3294
        %3534 = vmatprep.subr.bf16.mxu0 %v3299
        %3535 = vmatpush1.bf16.msra.mxu0 %v3298
        %3536 = vmatprep.subr.bf16.mxu0 %v3303
        %3537 = vmatpush1.bf16.msra.mxu0 %v3302
        %3538 = vmatprep.subr.bf16.mxu0 %v3307
        %3539 = vmatpush1.bf16.msra.mxu0 %v3306
        %3540 = vmatprep.subr.bf16.mxu0 %v3311
        %3541 = vmatpush1.bf16.msra.mxu0 %v3310
        %3542 = vmatprep.subr.bf16.mxu0 %v3315
        %3543 = vmatpush1.bf16.msra.mxu0 %v3314
        %3544 = vmatprep.subr.bf16.mxu0 %v3319
        %3545 = vmatpush1.bf16.msra.mxu0 %v3318
        %3546 = vmatprep.mubr.bf16.mxu0 %v2721
        %3547 = vmatmul.mubr.bf16.gmra.mrb[0].mxu0 %v2720
        %v3548 = vpop.f32.mrb[0].mxu0
        %v3549 = vadd.f32 %v2857, %v3548
        %v3550 = vpop.f32.mrb[0].mxu0
        %v3551 = vadd.f32 %v2861, %v3550
        %v3552 = vpop.f32.mrb[0].mxu0
        %v3553 = vpop.f32.mrb[0].mxu0
        %3554 = vdwg.mxu0
        %3555 = vmatprep.subr.bf16.mxu0 %v3323
        %3556 = vmatpush1.bf16.msra.mxu0 %v3322
        %3557 = vmatprep.subr.bf16.mxu0 %v3327
        %3558 = vmatpush1.bf16.msra.mxu0 %v3326
        %3559 = vmatprep.subr.bf16.mxu0 %v3331
        %3560 = vmatpush1.bf16.msra.mxu0 %v3330
        %3561 = vmatprep.subr.bf16.mxu0 %v3335
        %3562 = vmatpush1.bf16.msra.mxu0 %v3334
        %3563 = vmatprep.subr.bf16.mxu0 %v3339
        %3564 = vmatpush1.bf16.msra.mxu0 %v3338
        %3565 = vmatprep.subr.bf16.mxu0 %v3343
        %3566 = vmatpush1.bf16.msra.mxu0 %v3342
        %3567 = vmatprep.subr.bf16.mxu0 %v3347
        %3568 = vmatpush1.bf16.msra.mxu0 %v3346
        %3569 = vmatprep.subr.bf16.mxu0 %v3351
        %3570 = vmatpush1.bf16.msra.mxu0 %v3350
        %3571 = vmatprep.subr.bf16.mxu0 %v3355
        %3572 = vmatpush1.bf16.msra.mxu0 %v3354
        %3573 = vmatprep.subr.bf16.mxu0 %v3359
        %3574 = vmatpush1.bf16.msra.mxu0 %v3358
        %3575 = vmatprep.subr.bf16.mxu0 %v3363
        %3576 = vmatpush1.bf16.msra.mxu0 %v3362
        %3577 = vmatprep.subr.bf16.mxu0 %v3367
        %3578 = vmatpush1.bf16.msra.mxu0 %v3366
        %3579 = vmatprep.subr.bf16.mxu0 %v3371
        %3580 = vmatpush1.bf16.msra.mxu0 %v3370
        %3581 = vmatprep.subr.bf16.mxu0 %v3375
        %3582 = vmatpush1.bf16.msra.mxu0 %v3374
        %3583 = vmatprep.subr.bf16.mxu0 %v3379
        %3584 = vmatpush1.bf16.msra.mxu0 %v3378
        %3585 = vmatprep.subr.bf16.mxu0 %v3383
        %3586 = vmatpush1.bf16.msra.mxu0 %v3382
        %3587 = vmatprep.mubr.bf16.mxu0 %v2723
        %3588 = vmatmul.mubr.bf16.gmra.mrb[0].mxu0 %v2722
        %v3589 = vpop.f32.mrb[0].mxu0
        %v3590 = vadd.f32 %v3549, %v3589
        %v3591 = vpop.f32.mrb[0].mxu0
        %v3592 = vadd.f32 %v3551, %v3591
        %v3593 = vpop.f32.mrb[0].mxu0
        %v3594 = vpop.f32.mrb[0].mxu0
        %3595 = vdwg.mxu0
        %3596 = vmatprep.subr.bf16.mxu0 %v3261
        %3597 = vmatpush1.bf16.msra.mxu0 %v3260
        %3598 = vmatprep.subr.bf16.mxu0 %v3265
        %3599 = vmatpush1.bf16.msra.mxu0 %v3264
        %3600 = vmatprep.subr.bf16.mxu0 %v3269
        %3601 = vmatpush1.bf16.msra.mxu0 %v3268
        %3602 = vmatprep.subr.bf16.mxu0 %v3273
        %3603 = vmatpush1.bf16.msra.mxu0 %v3272
        %3604 = vmatprep.subr.bf16.mxu0 %v3277
        %3605 = vmatpush1.bf16.msra.mxu0 %v3276
        %3606 = vmatprep.subr.bf16.mxu0 %v3281
        %3607 = vmatpush1.bf16.msra.mxu0 %v3280
        %3608 = vmatprep.subr.bf16.mxu0 %v3285
        %3609 = vmatpush1.bf16.msra.mxu0 %v3284
        %3610 = vmatprep.subr.bf16.mxu0 %v3289
        %3611 = vmatpush1.bf16.msra.mxu0 %v3288
        %3612 = vmatprep.subr.bf16.mxu0 %v3293
        %3613 = vmatpush1.bf16.msra.mxu0 %v3292
        %3614 = vmatprep.subr.bf16.mxu0 %v3297
        %3615 = vmatpush1.bf16.msra.mxu0 %v3296
        %3616 = vmatprep.subr.bf16.mxu0 %v3301
        %3617 = vmatpush1.bf16.msra.mxu0 %v3300
        %3618 = vmatprep.subr.bf16.mxu0 %v3305
        %3619 = vmatpush1.bf16.msra.mxu0 %v3304
        %3620 = vmatprep.subr.bf16.mxu0 %v3309
        %3621 = vmatpush1.bf16.msra.mxu0 %v3308
        %3622 = vmatprep.subr.bf16.mxu0 %v3313
        %3623 = vmatpush1.bf16.msra.mxu0 %v3312
        %3624 = vmatprep.subr.bf16.mxu0 %v3317
        %3625 = vmatpush1.bf16.msra.mxu0 %v3316
        %3626 = vmatprep.subr.bf16.mxu0 %v3321
        %3627 = vmatpush1.bf16.msra.mxu0 %v3320
        %3628 = vmatprep.mubr.bf16.mxu0 %v2721
        %3629 = vmatmul.mubr.bf16.gmra.mrb[0].mxu0 %v2720
        %v3630 = vpop.f32.mrb[0].mxu0
        %v3631 = vadd.f32 %v2865, %v3630
        %v3632 = vpop.f32.mrb[0].mxu0
        %v3633 = vadd.f32 %v2869, %v3632
        %v3634 = vpop.f32.mrb[0].mxu0
        %v3635 = vpop.f32.mrb[0].mxu0
        %3636 = vdwg.mxu0
        %3637 = vmatprep.subr.bf16.mxu0 %v3325
        %3638 = vmatpush1.bf16.msra.mxu0 %v3324
        %3639 = vmatprep.subr.bf16.mxu0 %v3329
        %3640 = vmatpush1.bf16.msra.mxu0 %v3328
        %3641 = vmatprep.subr.bf16.mxu0 %v3333
        %3642 = vmatpush1.bf16.msra.mxu0 %v3332
        %3643 = vmatprep.subr.bf16.mxu0 %v3337
        %3644 = vmatpush1.bf16.msra.mxu0 %v3336
        %3645 = vmatprep.subr.bf16.mxu0 %v3341
        %3646 = vmatpush1.bf16.msra.mxu0 %v3340
        %3647 = vmatprep.subr.bf16.mxu0 %v3345
        %3648 = vmatpush1.bf16.msra.mxu0 %v3344
        %3649 = vmatprep.subr.bf16.mxu0 %v3349
        %3650 = vmatpush1.bf16.msra.mxu0 %v3348
        %3651 = vmatprep.subr.bf16.mxu0 %v3353
        %3652 = vmatpush1.bf16.msra.mxu0 %v3352
        %3653 = vmatprep.subr.bf16.mxu0 %v3357
        %3654 = vmatpush1.bf16.msra.mxu0 %v3356
        %3655 = vmatprep.subr.bf16.mxu0 %v3361
        %3656 = vmatpush1.bf16.msra.mxu0 %v3360
        %3657 = vmatprep.subr.bf16.mxu0 %v3365
        %3658 = vmatpush1.bf16.msra.mxu0 %v3364
        %3659 = vmatprep.subr.bf16.mxu0 %v3369
        %3660 = vmatpush1.bf16.msra.mxu0 %v3368
        %3661 = vmatprep.subr.bf16.mxu0 %v3373
        %3662 = vmatpush1.bf16.msra.mxu0 %v3372
        %3663 = vmatprep.subr.bf16.mxu0 %v3377
        %3664 = vmatpush1.bf16.msra.mxu0 %v3376
        %3665 = vmatprep.subr.bf16.mxu0 %v3381
        %3666 = vmatpush1.bf16.msra.mxu0 %v3380
        %3667 = vmatprep.subr.bf16.mxu0 %v3385
        %3668 = vmatpush1.bf16.msra.mxu0 %v3384
        %3669 = vmatprep.mubr.bf16.mxu0 %v2723
        %3670 = vmatmul.mubr.bf16.gmra.mrb[0].mxu0 %v2722
        %v3671 = vpop.f32.mrb[0].mxu0
        %v3672 = vadd.f32 %v3631, %v3671
        %v3673 = vpop.f32.mrb[0].mxu0
        %v3674 = vadd.f32 %v3633, %v3673
        %v3675 = vpop.f32.mrb[0].mxu0
        %v3676 = vpop.f32.mrb[0].mxu0
        %3677 = vdwg.mxu0
        %v3678 = vmax.f32 %v3590, 0.0
        %v3679 = vmax.f32 %v3592, 0.0
        %v3680 = vmax.f32 %v3672, 0.0
        %v3681 = vmax.f32 %v3674, 0.0
        %v3682 = vpack.c.bf16 %v3678, %v3678
        %v3683 = vpack.c.bf16 %v3679, %v3679
        %v3684 = vpack.c.bf16 %v3680, %v3680
        %v3685 = vpack.c.bf16 %v3681, %v3681
        %v3686 = vld [vmem:[#allocation19] sm:$0xff]
        %v3687 = vld [vmem:[#allocation19 + $0x8] sm:$0xff]
        %v3688 = vld [vmem:[#allocation19 + $0x10] sm:$0xff]
        %v3689 = vld [vmem:[#allocation19 + $0x18] sm:$0xff]
        %v3690 = vld [vmem:[#allocation19 + $0x20] sm:$0xff]
        %v3691 = vld [vmem:[#allocation19 + $0x28] sm:$0xff]
        %v3692 = vld [vmem:[#allocation19 + $0x30] sm:$0xff]
        %v3693 = vld [vmem:[#allocation19 + $0x38] sm:$0xff]
        %v3694 = vld [vmem:[#allocation19 + $0x40] sm:$0xff]
        %v3695 = vld [vmem:[#allocation19 + $0x48] sm:$0xff]
        %v3696 = vld [vmem:[#allocation19 + $0x50] sm:$0xff]
        %v3697 = vld [vmem:[#allocation19 + $0x58] sm:$0xff]
        %v3698 = vld [vmem:[#allocation19 + $0x60] sm:$0xff]
        %v3699 = vld [vmem:[#allocation19 + $0x68] sm:$0xff]
        %v3700 = vld [vmem:[#allocation19 + $0x70] sm:$0xff]
        %v3701 = vld [vmem:[#allocation19 + $0x78] sm:$0xff]
        %v3702 = vld [vmem:[#allocation19 + $0x80] sm:$0xff]
        %v3703 = vld [vmem:[#allocation19 + $0x88] sm:$0xff]
        %v3704 = vld [vmem:[#allocation19 + $0x90] sm:$0xff]
        %v3705 = vld [vmem:[#allocation19 + $0x98] sm:$0xff]
        %v3706 = vld [vmem:[#allocation19 + $0xa0] sm:$0xff]
        %v3707 = vld [vmem:[#allocation19 + $0xa8] sm:$0xff]
        %v3708 = vld [vmem:[#allocation19 + $0xb0] sm:$0xff]
        %v3709 = vld [vmem:[#allocation19 + $0xb8] sm:$0xff]
        %v3710 = vld [vmem:[#allocation19 + $0xc0] sm:$0xff]
        %v3711 = vld [vmem:[#allocation19 + $0xc8] sm:$0xff]
        %v3712 = vld [vmem:[#allocation19 + $0xd0] sm:$0xff]
        %v3713 = vld [vmem:[#allocation19 + $0xd8] sm:$0xff]
        %v3714 = vld [vmem:[#allocation19 + $0xe0] sm:$0xff]
        %v3715 = vld [vmem:[#allocation19 + $0xe8] sm:$0xff]
        %v3716 = vld [vmem:[#allocation19 + $0xf0] sm:$0xff]
        %v3717 = vld [vmem:[#allocation19 + $0xf8] sm:$0xff]
        %v3718 = vld [vmem:[#allocation19 + $0x100] sm:$0xff]
        %v3719 = vld [vmem:[#allocation19 + $0x108] sm:$0xff]
        %v3720 = vld [vmem:[#allocation19 + $0x110] sm:$0xff]
        %v3721 = vld [vmem:[#allocation19 + $0x118] sm:$0xff]
        %v3722 = vld [vmem:[#allocation19 + $0x120] sm:$0xff]
        %v3723 = vld [vmem:[#allocation19 + $0x128] sm:$0xff]
        %v3724 = vld [vmem:[#allocation19 + $0x130] sm:$0xff]
        %v3725 = vld [vmem:[#allocation19 + $0x138] sm:$0xff]
        %v3726 = vld [vmem:[#allocation19 + $0x140] sm:$0xff]
        %v3727 = vld [vmem:[#allocation19 + $0x148] sm:$0xff]
        %v3728 = vld [vmem:[#allocation19 + $0x150] sm:$0xff]
        %v3729 = vld [vmem:[#allocation19 + $0x158] sm:$0xff]
        %v3730 = vld [vmem:[#allocation19 + $0x160] sm:$0xff]
        %v3731 = vld [vmem:[#allocation19 + $0x168] sm:$0xff]
        %v3732 = vld [vmem:[#allocation19 + $0x170] sm:$0xff]
        %v3733 = vld [vmem:[#allocation19 + $0x178] sm:$0xff]
        %v3734 = vld [vmem:[#allocation19 + $0x180] sm:$0xff]
        %v3735 = vld [vmem:[#allocation19 + $0x188] sm:$0xff]
        %v3736 = vld [vmem:[#allocation19 + $0x190] sm:$0xff]
        %v3737 = vld [vmem:[#allocation19 + $0x198] sm:$0xff]
        %v3738 = vld [vmem:[#allocation19 + $0x1a0] sm:$0xff]
        %v3739 = vld [vmem:[#allocation19 + $0x1a8] sm:$0xff]
        %v3740 = vld [vmem:[#allocation19 + $0x1b0] sm:$0xff]
        %v3741 = vld [vmem:[#allocation19 + $0x1b8] sm:$0xff]
        %v3742 = vld [vmem:[#allocation19 + $0x1c0] sm:$0xff]
        %v3743 = vld [vmem:[#allocation19 + $0x1c8] sm:$0xff]
        %v3744 = vld [vmem:[#allocation19 + $0x1d0] sm:$0xff]
        %v3745 = vld [vmem:[#allocation19 + $0x1d8] sm:$0xff]
        %v3746 = vld [vmem:[#allocation19 + $0x1e0] sm:$0xff]
        %v3747 = vld [vmem:[#allocation19 + $0x1e8] sm:$0xff]
        %v3748 = vld [vmem:[#allocation19 + $0x1f0] sm:$0xff]
        %v3749 = vld [vmem:[#allocation19 + $0x1f8] sm:$0xff]
        %v3750 = vld [vmem:[%s11] sm:$0x3]
        %v3752 = vlaneseq
        %v3753 = vshrl.u32 %v3752, 7
        %v3754 = vsub.s32 0, %v3753
        %v3755 = vrot.slane %v3750, %v3754
        %v3756 = vlaneseq
        %v3757 = vshrl.u32 %v3756, 7
        %v3758 = vsub.s32 1, %v3757
        %v3759 = vrot.slane %v3750, %v3758
        %v3826 = vunpack.c.l.b16 %v3686
        %v3827 = vunpack.c.h.b16 %v3686
        %v3828 = vunpack.c.l.b16 %v3687
        %v3829 = vunpack.c.h.b16 %v3687
        %v3830 = vunpack.c.l.b16 %v3688
        %v3831 = vunpack.c.h.b16 %v3688
        %v3832 = vunpack.c.l.b16 %v3689
        %v3833 = vunpack.c.h.b16 %v3689
        %v3834 = vunpack.c.l.b16 %v3690
        %v3835 = vunpack.c.h.b16 %v3690
        %v3836 = vunpack.c.l.b16 %v3691
        %v3837 = vunpack.c.h.b16 %v3691
        %v3838 = vunpack.c.l.b16 %v3692
        %v3839 = vunpack.c.h.b16 %v3692
        %v3840 = vunpack.c.l.b16 %v3693
        %v3841 = vunpack.c.h.b16 %v3693
        %v3842 = vunpack.c.l.b16 %v3694
        %v3843 = vunpack.c.h.b16 %v3694
        %v3844 = vunpack.c.l.b16 %v3695
        %v3845 = vunpack.c.h.b16 %v3695
        %v3846 = vunpack.c.l.b16 %v3696
        %v3847 = vunpack.c.h.b16 %v3696
        %v3848 = vunpack.c.l.b16 %v3697
        %v3849 = vunpack.c.h.b16 %v3697
        %v3850 = vunpack.c.l.b16 %v3698
        %v3851 = vunpack.c.h.b16 %v3698
        %v3852 = vunpack.c.l.b16 %v3699
        %v3853 = vunpack.c.h.b16 %v3699
        %v3854 = vunpack.c.l.b16 %v3700
        %v3855 = vunpack.c.h.b16 %v3700
        %v3856 = vunpack.c.l.b16 %v3701
        %v3857 = vunpack.c.h.b16 %v3701
        %v3858 = vunpack.c.l.b16 %v3702
        %v3859 = vunpack.c.h.b16 %v3702
        %v3860 = vunpack.c.l.b16 %v3703
        %v3861 = vunpack.c.h.b16 %v3703
        %v3862 = vunpack.c.l.b16 %v3704
        %v3863 = vunpack.c.h.b16 %v3704
        %v3864 = vunpack.c.l.b16 %v3705
        %v3865 = vunpack.c.h.b16 %v3705
        %v3866 = vunpack.c.l.b16 %v3706
        %v3867 = vunpack.c.h.b16 %v3706
        %v3868 = vunpack.c.l.b16 %v3707
        %v3869 = vunpack.c.h.b16 %v3707
        %v3870 = vunpack.c.l.b16 %v3708
        %v3871 = vunpack.c.h.b16 %v3708
        %v3872 = vunpack.c.l.b16 %v3709
        %v3873 = vunpack.c.h.b16 %v3709
        %v3874 = vunpack.c.l.b16 %v3710
        %v3875 = vunpack.c.h.b16 %v3710
        %v3876 = vunpack.c.l.b16 %v3711
        %v3877 = vunpack.c.h.b16 %v3711
        %v3878 = vunpack.c.l.b16 %v3712
        %v3879 = vunpack.c.h.b16 %v3712
        %v3880 = vunpack.c.l.b16 %v3713
        %v3881 = vunpack.c.h.b16 %v3713
        %v3882 = vunpack.c.l.b16 %v3714
        %v3883 = vunpack.c.h.b16 %v3714
        %v3884 = vunpack.c.l.b16 %v3715
        %v3885 = vunpack.c.h.b16 %v3715
        %v3886 = vunpack.c.l.b16 %v3716
        %v3887 = vunpack.c.h.b16 %v3716
        %v3888 = vunpack.c.l.b16 %v3717
        %v3889 = vunpack.c.h.b16 %v3717
        %v3890 = vunpack.c.l.b16 %v3718
        %v3891 = vunpack.c.h.b16 %v3718
        %v3892 = vunpack.c.l.b16 %v3719
        %v3893 = vunpack.c.h.b16 %v3719
        %v3894 = vunpack.c.l.b16 %v3720
        %v3895 = vunpack.c.h.b16 %v3720
        %v3896 = vunpack.c.l.b16 %v3721
        %v3897 = vunpack.c.h.b16 %v3721
        %v3898 = vunpack.c.l.b16 %v3722
        %v3899 = vunpack.c.h.b16 %v3722
        %v3900 = vunpack.c.l.b16 %v3723
        %v3901 = vunpack.c.h.b16 %v3723
        %v3902 = vunpack.c.l.b16 %v3724
        %v3903 = vunpack.c.h.b16 %v3724
        %v3904 = vunpack.c.l.b16 %v3725
        %v3905 = vunpack.c.h.b16 %v3725
        %v3906 = vunpack.c.l.b16 %v3726
        %v3907 = vunpack.c.h.b16 %v3726
        %v3908 = vunpack.c.l.b16 %v3727
        %v3909 = vunpack.c.h.b16 %v3727
        %v3910 = vunpack.c.l.b16 %v3728
        %v3911 = vunpack.c.h.b16 %v3728
        %v3912 = vunpack.c.l.b16 %v3729
        %v3913 = vunpack.c.h.b16 %v3729
        %v3914 = vunpack.c.l.b16 %v3730
        %v3915 = vunpack.c.h.b16 %v3730
        %v3916 = vunpack.c.l.b16 %v3731
        %v3917 = vunpack.c.h.b16 %v3731
        %v3918 = vunpack.c.l.b16 %v3732
        %v3919 = vunpack.c.h.b16 %v3732
        %v3920 = vunpack.c.l.b16 %v3733
        %v3921 = vunpack.c.h.b16 %v3733
        %v3922 = vunpack.c.l.b16 %v3734
        %v3923 = vunpack.c.h.b16 %v3734
        %v3924 = vunpack.c.l.b16 %v3735
        %v3925 = vunpack.c.h.b16 %v3735
        %v3926 = vunpack.c.l.b16 %v3736
        %v3927 = vunpack.c.h.b16 %v3736
        %v3928 = vunpack.c.l.b16 %v3737
        %v3929 = vunpack.c.h.b16 %v3737
        %v3930 = vunpack.c.l.b16 %v3738
        %v3931 = vunpack.c.h.b16 %v3738
        %v3932 = vunpack.c.l.b16 %v3739
        %v3933 = vunpack.c.h.b16 %v3739
        %v3934 = vunpack.c.l.b16 %v3740
        %v3935 = vunpack.c.h.b16 %v3740
        %v3936 = vunpack.c.l.b16 %v3741
        %v3937 = vunpack.c.h.b16 %v3741
        %v3938 = vunpack.c.l.b16 %v3742
        %v3939 = vunpack.c.h.b16 %v3742
        %v3940 = vunpack.c.l.b16 %v3743
        %v3941 = vunpack.c.h.b16 %v3743
        %v3942 = vunpack.c.l.b16 %v3744
        %v3943 = vunpack.c.h.b16 %v3744
        %v3944 = vunpack.c.l.b16 %v3745
        %v3945 = vunpack.c.h.b16 %v3745
        %v3946 = vunpack.c.l.b16 %v3746
        %v3947 = vunpack.c.h.b16 %v3746
        %v3948 = vunpack.c.l.b16 %v3747
        %v3949 = vunpack.c.h.b16 %v3747
        %v3950 = vunpack.c.l.b16 %v3748
        %v3951 = vunpack.c.h.b16 %v3748
        %v3952 = vunpack.c.l.b16 %v3749
        %v3953 = vunpack.c.h.b16 %v3749
        %v3954 = vpack.c.b16 %v3828, %v3826
        %v3955 = vpack.c.b16 %v3829, %v3827
        %v3956 = vpack.c.b16 %v3832, %v3830
        %v3957 = vpack.c.b16 %v3833, %v3831
        %v3958 = vpack.c.b16 %v3836, %v3834
        %v3959 = vpack.c.b16 %v3837, %v3835
        %v3960 = vpack.c.b16 %v3840, %v3838
        %v3961 = vpack.c.b16 %v3841, %v3839
        %v3962 = vpack.c.b16 %v3844, %v3842
        %v3963 = vpack.c.b16 %v3845, %v3843
        %v3964 = vpack.c.b16 %v3848, %v3846
        %v3965 = vpack.c.b16 %v3849, %v3847
        %v3966 = vpack.c.b16 %v3852, %v3850
        %v3967 = vpack.c.b16 %v3853, %v3851
        %v3968 = vpack.c.b16 %v3856, %v3854
        %v3969 = vpack.c.b16 %v3857, %v3855
        %v3970 = vpack.c.b16 %v3860, %v3858
        %v3971 = vpack.c.b16 %v3861, %v3859
        %v3972 = vpack.c.b16 %v3864, %v3862
        %v3973 = vpack.c.b16 %v3865, %v3863
        %v3974 = vpack.c.b16 %v3868, %v3866
        %v3975 = vpack.c.b16 %v3869, %v3867
        %v3976 = vpack.c.b16 %v3872, %v3870
        %v3977 = vpack.c.b16 %v3873, %v3871
        %v3978 = vpack.c.b16 %v3876, %v3874
        %v3979 = vpack.c.b16 %v3877, %v3875
        %v3980 = vpack.c.b16 %v3880, %v3878
        %v3981 = vpack.c.b16 %v3881, %v3879
        %v3982 = vpack.c.b16 %v3884, %v3882
        %v3983 = vpack.c.b16 %v3885, %v3883
        %v3984 = vpack.c.b16 %v3888, %v3886
        %v3985 = vpack.c.b16 %v3889, %v3887
        %v3986 = vpack.c.b16 %v3892, %v3890
        %v3987 = vpack.c.b16 %v3893, %v3891
        %v3988 = vpack.c.b16 %v3896, %v3894
        %v3989 = vpack.c.b16 %v3897, %v3895
        %v3990 = vpack.c.b16 %v3900, %v3898
        %v3991 = vpack.c.b16 %v3901, %v3899
        %v3992 = vpack.c.b16 %v3904, %v3902
        %v3993 = vpack.c.b16 %v3905, %v3903
        %v3994 = vpack.c.b16 %v3908, %v3906
        %v3995 = vpack.c.b16 %v3909, %v3907
        %v3996 = vpack.c.b16 %v3912, %v3910
        %v3997 = vpack.c.b16 %v3913, %v3911
        %v3998 = vpack.c.b16 %v3916, %v3914
        %v3999 = vpack.c.b16 %v3917, %v3915
        %v4000 = vpack.c.b16 %v3920, %v3918
        %v4001 = vpack.c.b16 %v3921, %v3919
        %v4002 = vpack.c.b16 %v3924, %v3922
        %v4003 = vpack.c.b16 %v3925, %v3923
        %v4004 = vpack.c.b16 %v3928, %v3926
        %v4005 = vpack.c.b16 %v3929, %v3927
        %v4006 = vpack.c.b16 %v3932, %v3930
        %v4007 = vpack.c.b16 %v3933, %v3931
        %v4008 = vpack.c.b16 %v3936, %v3934
        %v4009 = vpack.c.b16 %v3937, %v3935
        %v4010 = vpack.c.b16 %v3940, %v3938
        %v4011 = vpack.c.b16 %v3941, %v3939
        %v4012 = vpack.c.b16 %v3944, %v3942
        %v4013 = vpack.c.b16 %v3945, %v3943
        %v4014 = vpack.c.b16 %v3948, %v3946
        %v4015 = vpack.c.b16 %v3949, %v3947
        %v4016 = vpack.c.b16 %v3952, %v3950
        %v4017 = vpack.c.b16 %v3953, %v3951
        %4082 = vmatprep.subr.bf16.mxu0 %v3955
        %4083 = vmatpush1.bf16.msra.mxu0 %v3954
        %4084 = vmatprep.subr.bf16.mxu0 %v3957
        %4085 = vmatpush1.bf16.msra.mxu0 %v3956
        %4086 = vmatprep.subr.bf16.mxu0 %v3959
        %4087 = vmatpush1.bf16.msra.mxu0 %v3958
        %4088 = vmatprep.subr.bf16.mxu0 %v3961
        %4089 = vmatpush1.bf16.msra.mxu0 %v3960
        %4090 = vmatprep.subr.bf16.mxu0 %v3963
        %4091 = vmatpush1.bf16.msra.mxu0 %v3962
        %4092 = vmatprep.subr.bf16.mxu0 %v3965
        %4093 = vmatpush1.bf16.msra.mxu0 %v3964
        %4094 = vmatprep.subr.bf16.mxu0 %v3967
        %4095 = vmatpush1.bf16.msra.mxu0 %v3966
        %4096 = vmatprep.subr.bf16.mxu0 %v3969
        %4097 = vmatpush1.bf16.msra.mxu0 %v3968
        %4098 = vmatprep.subr.bf16.mxu0 %v3971
        %4099 = vmatpush1.bf16.msra.mxu0 %v3970
        %4100 = vmatprep.subr.bf16.mxu0 %v3973
        %4101 = vmatpush1.bf16.msra.mxu0 %v3972
        %4102 = vmatprep.subr.bf16.mxu0 %v3975
        %4103 = vmatpush1.bf16.msra.mxu0 %v3974
        %4104 = vmatprep.subr.bf16.mxu0 %v3977
        %4105 = vmatpush1.bf16.msra.mxu0 %v3976
        %4106 = vmatprep.subr.bf16.mxu0 %v3979
        %4107 = vmatpush1.bf16.msra.mxu0 %v3978
        %4108 = vmatprep.subr.bf16.mxu0 %v3981
        %4109 = vmatpush1.bf16.msra.mxu0 %v3980
        %4110 = vmatprep.subr.bf16.mxu0 %v3983
        %4111 = vmatpush1.bf16.msra.mxu0 %v3982
        %4112 = vmatprep.subr.bf16.mxu0 %v3985
        %4113 = vmatpush1.bf16.msra.mxu0 %v3984
        %4114 = vmatprep.mubr.bf16.mxu0 %v3683
        %4115 = vmatmul.mubr.bf16.gmra.mrb[0].mxu0 %v3682
        %v4116 = vpop.f32.mrb[0].mxu0
        %v4117 = vadd.f32 %v3755, %v4116
        %v4118 = vpop.f32.mrb[0].mxu0
        %v4119 = vadd.f32 %v3759, %v4118
        %v4120 = vpop.f32.mrb[0].mxu0
        %v4121 = vpop.f32.mrb[0].mxu0
        %4122 = vdwg.mxu0
        %4123 = vmatprep.subr.bf16.mxu0 %v3987
        %4124 = vmatpush1.bf16.msra.mxu0 %v3986
        %4125 = vmatprep.subr.bf16.mxu0 %v3989
        %4126 = vmatpush1.bf16.msra.mxu0 %v3988
        %4127 = vmatprep.subr.bf16.mxu0 %v3991
        %4128 = vmatpush1.bf16.msra.mxu0 %v3990
        %4129 = vmatprep.subr.bf16.mxu0 %v3993
        %4130 = vmatpush1.bf16.msra.mxu0 %v3992
        %4131 = vmatprep.subr.bf16.mxu0 %v3995
        %4132 = vmatpush1.bf16.msra.mxu0 %v3994
        %4133 = vmatprep.subr.bf16.mxu0 %v3997
        %4134 = vmatpush1.bf16.msra.mxu0 %v3996
        %4135 = vmatprep.subr.bf16.mxu0 %v3999
        %4136 = vmatpush1.bf16.msra.mxu0 %v3998
        %4137 = vmatprep.subr.bf16.mxu0 %v4001
        %4138 = vmatpush1.bf16.msra.mxu0 %v4000
        %4139 = vmatprep.subr.bf16.mxu0 %v4003
        %4140 = vmatpush1.bf16.msra.mxu0 %v4002
        %4141 = vmatprep.subr.bf16.mxu0 %v4005
        %4142 = vmatpush1.bf16.msra.mxu0 %v4004
        %4143 = vmatprep.subr.bf16.mxu0 %v4007
        %4144 = vmatpush1.bf16.msra.mxu0 %v4006
        %4145 = vmatprep.subr.bf16.mxu0 %v4009
        %4146 = vmatpush1.bf16.msra.mxu0 %v4008
        %4147 = vmatprep.subr.bf16.mxu0 %v4011
        %4148 = vmatpush1.bf16.msra.mxu0 %v4010
        %4149 = vmatprep.subr.bf16.mxu0 %v4013
        %4150 = vmatpush1.bf16.msra.mxu0 %v4012
        %4151 = vmatprep.subr.bf16.mxu0 %v4015
        %4152 = vmatpush1.bf16.msra.mxu0 %v4014
        %4153 = vmatprep.subr.bf16.mxu0 %v4017
        %4154 = vmatpush1.bf16.msra.mxu0 %v4016
        %4155 = vmatprep.mubr.bf16.mxu0 %v3685
        %4156 = vmatmul.mubr.bf16.gmra.mrb[0].mxu0 %v3684
        %v4157 = vpop.f32.mrb[0].mxu0
        %v4158 = vadd.f32 %v4117, %v4157
        %v4159 = vpop.f32.mrb[0].mxu0
        %v4160 = vadd.f32 %v4119, %v4159
        %v4161 = vpop.f32.mrb[0].mxu0
        %v4162 = vpop.f32.mrb[0].mxu0
        %4163 = vdwg.mxu0
        %v4164 = vmax.f32 %v4160, 0.0
        %v4165 = vand.u32 2147483647, %v4160
        %v4166 = vsub.f32 0.0, %v4165
        %v4167 = vmul.f32 %v4166, 1.442695
        %v4168 = vpow.pop %v4167
        %v4169 = vadd.f32 %v4168, 1.0
        %v4170 = vlog2.pop %v4169
        %v4171 = vmul.f32 %v4170, 0.6931472
        %v4172 = vadd.f32 %v4164, %v4171
        %v4173 = vld [vmem:[%s691] sm:$0xff]
        %v4174 = vadd.f32 %v4172, 1e-10
        %v4175 = vrsqrt.pop %v4174
        %v4176 = vmul.f32 %v4174, %v4175
        %vm4177 = vcmp.eq.f32.partialorder %v4174, inf
        %v4178 = vsel %vm4177, %v4174, %v4176
        %vm4179 = vcmp.eq.f32.partialorder %v4174, 0.0
        %v4180 = vand.u32 %v4174, 2147483648
        %v4181 = vsel %vm4179, %v4180, %v4178
        %v4182 = vmul.f32 %v4173, %v4181
        %v4183 = vadd.f32 %v4158, %v4182
        %v4184 = vpack.c.bf16 %v2404, %v2404
        %4185 = vst [vmem:[%s676] sm:$0xf] %v4184
        %v4186 = vpack.c.bf16 %v2417, %v2417
        %4187 = vst [vmem:[%s676 + $0x4] sm:$0xf] %v4186
        %4188 = vst [vmem:[%s676 + $0x8] sm:$0xf] %v2437
        %v4189 = vpack.c.bf16 %v4158, %v4158
        %4190 = vst [vmem:[%s683] sm:$0xf] %v4189
        %v4191 = vpack.c.bf16 %v4172, %v4172
        %4192 = vst [vmem:[%s683 + $0x4] sm:$0xf] %v4191
        %v4193 = vpack.c.bf16 %v4183, %v4183
        %4194 = vst [vmem:[%s683 + $0x8] sm:$0xf] %v4193
        %s4195 = sand.u32 %s358, 1
        %s4196 = scalar_lea.sflag [#allocation4], %s4195
        %s4197 = sand.u32 %s358, 1
        %s4198 = smul.addr %s4197, 12
        %s4199 = scalar_lea.vmem [#allocation20], %s4198
        %s4200 = sand.u32 %s384, 1
        %s4201 = scalar_lea.sflag [#allocation22], %s4200
        %s4202 = sand.u32 %s384, 1
        %s4203 = smul.addr %s4202, 12
        %s4204 = scalar_lea.vmem [#allocation21], %s4203
        // Predicated region
        $region121: #{tpu_custom_call.1} parent=75 // pred_check
          %p4205 = pneg %p368
        $region122: #{tpu_custom_call.1} parent=75 // pred_check_branch
          %4207 = sbr.rel (%p4205) target = $region124
        $region123: #{tpu_custom_call.1} parent=75 // pred_region
          %s4209 = ssub.s32 192, 192
          %4210 = vsyncadd %s4196, %s4209
          %s4211 = smul.addr %s41, 3
          %s4212 = smul.addr %s4211, 64
          %s4213 = scalar_lea.hbm %s14, %s4212
          %s4215 = sshll.u32 %s4199, 4
          %s4216 = int_to_ptr.vmem [resolvable:$true] %s4215
          %4218 = dma.vmem_to_hbm [thread:$0]  %s4216, 192, %s4213, %s4196
        $region124: #{tpu_custom_call.1} parent=75 // pred_fallthru
          _
        // Predicated region
        $region125: #{tpu_custom_call.1} parent=75 // pred_check
          %p4219 = pneg %p394
        $region126: #{tpu_custom_call.1} parent=75 // pred_check_branch
          %4221 = sbr.rel (%p4219) target = $region128
        $region127: #{tpu_custom_call.1} parent=75 // pred_region
          %s4223 = ssub.s32 192, 192
          %4224 = vsyncadd %s4201, %s4223
          %s4225 = smul.addr %s41, 3
          %s4226 = smul.addr %s4225, 64
          %s4227 = scalar_lea.hbm %s15, %s4226
          %s4229 = sshll.u32 %s4204, 4
          %s4230 = int_to_ptr.vmem [resolvable:$true] %s4229
          %4232 = dma.vmem_to_hbm [thread:$0]  %s4230, 192, %s4227, %s4201
        $region128: #{tpu_custom_call.1} parent=75 // pred_fallthru
          _
      $region76: #{tpu_custom_call.1} parent=5 // pred_fallthru
        _
      %p4233 = scmp.le.s32.totalorder 2, %s36
      // Predicated region
      $region129: #{tpu_custom_call.1} parent=5 // pred_check
        %p4234 = pneg %p4233
      $region130: #{tpu_custom_call.1} parent=5 // pred_check_branch
        %4236 = sbr.rel (%p4234) target = $region132
      $region131: #{tpu_custom_call.1} parent=5 // pred_region
        %s4237 = ssub.s32 %s36, 2
        // Predicated region
        $region133: #{tpu_custom_call.1} parent=131 // pred_check
          %p4238 = pneg %p374
        $region134: #{tpu_custom_call.1} parent=131 // pred_check_branch
          %4240 = sbr.rel (%p4238) target = $region136
        $region135: #{tpu_custom_call.1} parent=131 // pred_region
          %s4241 = sand.u32 %s359, 1
          %s4242 = scalar_lea.sflag [#allocation4], %s4241
          %s4243 = sand.u32 %s359, 1
          %s4244 = smul.addr %s4243, 12
          %s4245 = scalar_lea.vmem [#allocation20], %s4244
          %4246 = dma.done %s4242, 192
        $region136: #{tpu_custom_call.1} parent=131 // pred_fallthru
          _
        // Predicated region
        $region137: #{tpu_custom_call.1} parent=131 // pred_check
          %p4247 = pneg %p400
        $region138: #{tpu_custom_call.1} parent=131 // pred_check_branch
          %4249 = sbr.rel (%p4247) target = $region140
        $region139: #{tpu_custom_call.1} parent=131 // pred_region
          %s4250 = sand.u32 %s385, 1
          %s4251 = scalar_lea.sflag [#allocation22], %s4250
          %s4252 = sand.u32 %s385, 1
          %s4253 = smul.addr %s4252, 12
          %s4254 = scalar_lea.vmem [#allocation21], %s4253
          %4255 = dma.done %s4251, 192
        $region140: #{tpu_custom_call.1} parent=131 // pred_fallthru
          _
      $region132: #{tpu_custom_call.1} parent=5 // pred_fallthru
        _
    $region6: #{tpu_custom_call.1} parent=1 // loop_footer
      %s40 = sadd.s32 1, %s36
    $region7: #{tpu_custom_call.1} parent=1 // loop_footer_branch
      %35 = sbr.rel target = $region3
    $region8: #{tpu_custom_call.1} parent=1 // loop_exit
      _
    %4256 = vsyncpa [#allocation3], 1
    %s4257 = scalar_lea.sflag [#allocation3], 1
    %4258 = vsyncpa %s4257, 1
    %4259 = vsyncpa [#allocation6], 1
    %4260 = vsyncpa [#allocation9], 1
    %4261 = vsyncpa [#allocation12], 1
    %4262 = vsyncpa [#allocation15], 1
    %4263 = vsyncpa [#allocation18], 1
    %4264 = vsyncpa [#allocation4], 1
    %s4265 = scalar_lea.sflag [#allocation4], 1
    %4266 = vsyncpa %s4265, 1
    %4267 = vsyncpa [#allocation22], 1
    %s4268 = scalar_lea.sflag [#allocation22], 1
    %4269 = vsyncpa %s4268, 1

</llo_original>
